<compile_context>
chip_gen: v6e
topology: v6e:2x2x1
jax: 0.10.0
libtpu: 0.0.40
codegen_flags: <defaults>
</compile_context>

<pallas_src>
import jax
import jax.numpy as jnp
import numpy as np
from jax.experimental import pallas as pl
from jax.experimental.pallas import tpu as pltpu

IN_NODE = 9
HIDDEN = 16
OUT_NODE = 2
N_LAYERS = 2

# per-layer fused-parameter ordering (weights [in, out]; biases [1, out])
_LAYER_KEYS = (
    "ew1ab",   # edge_mlp Linear(33,16): rows for [h_row | h_col]          [32,16]
    "ew1c",    # edge_mlp Linear(33,16): row for radial (VPU broadcast)    [1,16]
    "eb1",     # edge_mlp bias 1                                           [1,16]
    "ew2", "eb2",                # edge_mlp Linear(16,16)                  [16,16],[1,16]
    "acw",     # fused [att Linear(16,1) | coord Linear(16,16)]            [16,17]
    "ab",      # att bias                                                  [1,1]
    "cb1",     # coord Linear(16,16) bias                                  [1,16]
    "cw2",     # coord Linear(16,1, bias=False)                            [16,1]
    "nw1", "nb1",                # node_mlp Linear(32,16)                  [32,16],[1,16]
    "nw2", "nb2",                # node_mlp Linear(16,16)                  [16,16],[1,16]
)


def _silu(v):
    return v * jax.nn.sigmoid(v)


def _egnn_kernel(*refs):
    # refs = (h, x, S, S_rowT, inv_cnt, *flat_params, out)
    h_ref, x_ref, s_ref, srt_ref, icnt_ref = refs[:5]
    out_ref = refs[-1]
    pr = [r[...] for r in refs[5:-1]]

    emb_in_w, emb_in_b = pr[0], pr[1]
    nlk = len(_LAYER_KEYS)
    layers = [dict(zip(_LAYER_KEYS, pr[2 + l * nlk: 2 + (l + 1) * nlk]))
              for l in range(N_LAYERS)]
    emb_out_w = pr[2 + N_LAYERS * nlk]
    emb_out_b = pr[3 + N_LAYERS * nlk]

    # one-hot matrices arrive as bf16 (exact); do all math / accumulation in f32
    S = s_ref[...].astype(jnp.float32)        # [2E, N]  = [S_row ; S_col]
    SrT = srt_ref[...].astype(jnp.float32)    # [N, E]   = S_row^T
    inv_cnt = icnt_ref[...]                   # [N, 1]   1 / max(in_degree, 1)
    E = SrT.shape[1]

    dot = lambda a, b: jnp.dot(a, b, preferred_element_type=jnp.float32)

    # embedding_in
    h = dot(h_ref[...], emb_in_w) + emb_in_b  # [N, 16]
    x = x_ref[...]                            # [N, 3]

    for lp in layers:
        # ---- fused gather: one matmul gives h_row, h_col, x_row, x_col ----
        hx = jnp.concatenate([h, x], axis=1)               # [N, 19]
        G = dot(S, hx)                                      # [2E, 19]
        h_row = G[:E, :HIDDEN]                              # [E, 16]
        h_col = G[E:, :HIDDEN]                              # [E, 16]
        coord_diff = G[:E, HIDDEN:] - G[E:, HIDDEN:]        # [E, 3]
        radial = jnp.sum(coord_diff * coord_diff, axis=1, keepdims=True)  # [E, 1]

        # ---- edge model: fused first layer + VPU broadcast for radial ----
        hh = jnp.concatenate([h_row, h_col], axis=1)        # [E, 32]
        m = _silu(dot(hh, lp["ew1ab"]) + radial * lp["ew1c"] + lp["eb1"])
        m = _silu(dot(m, lp["ew2"]) + lp["eb2"])            # [E, 16]

        # ---- attention + coord-MLP first layer from one fused dot ----
        ac = dot(m, lp["acw"])                              # [E, 17] = [att_logit | m@cw1]
        att = jax.nn.sigmoid(ac[:, :1] + lp["ab"])          # [E, 1]
        t = _silu(att * ac[:, 1:] + lp["cb1"])              # == silu((m*att)@cw1 + cb1)
        m = m * att                                         # attention-weighted messages
        trans = coord_diff * dot(t, lp["cw2"])              # [E, 3]

        # ---- fused scatter: one matmul gives segment_sum(m) and segment_sum(trans) ----
        mt = jnp.concatenate([m, trans], axis=1)            # [E, 19]
        agg = dot(SrT, mt)                                  # [N, 19]
        x = x + agg[:, HIDDEN:] * inv_cnt                   # coords_agg='mean'

        # ---- node model (fused first layer, residual) ----
        nin = jnp.concatenate([h, agg[:, :HIDDEN]], axis=1)  # [N, 32]
        h = h + dot(_silu(dot(nin, lp["nw1"]) + lp["nb1"]), lp["nw2"]) + lp["nb2"]

    # embedding_out
    out_ref[...] = dot(h, emb_out_w) + emb_out_b            # [N, 2]


# ---------------------------------------------------------------------------
# parameter construction (deterministic, PyTorch-style uniform(-1/sqrt(fan_in)))
# ---------------------------------------------------------------------------
def _linear(key, fan_in, fan_out, bias=True, scale=None):
    kw, kb = jax.random.split(key)
    bound = 1.0 / np.sqrt(fan_in) if scale is None else scale
    w = jax.random.uniform(kw, (fan_in, fan_out), jnp.float32, -bound, bound)
    b = jax.random.uniform(kb, (1, fan_out), jnp.float32, -bound, bound) if bias else None
    return w, b


def init_params(key):
    keys = jax.random.split(key, 2 + 7 * N_LAYERS)
    it = iter(keys)
    params = {"emb_in": _linear(next(it), IN_NODE, HIDDEN)}
    layers = []
    for _ in range(N_LAYERS):
        ew1, eb1 = _linear(next(it), 2 * HIDDEN + 1, HIDDEN)
        ew2, eb2 = _linear(next(it), HIDDEN, HIDDEN)
        aw, ab = _linear(next(it), HIDDEN, 1)
        cw1, cb1 = _linear(next(it), HIDDEN, HIDDEN)
        # coord_mlp final layer: xavier_uniform with gain=0.001, no bias
        xav = 0.001 * np.sqrt(6.0 / (HIDDEN + 1))
        cw2, _ = _linear(next(it), HIDDEN, 1, bias=False, scale=xav)
        nw1, nb1 = _linear(next(it), 2 * HIDDEN, HIDDEN)
        nw2, nb2 = _linear(next(it), HIDDEN, HIDDEN)
        layers.append(dict(ew1=ew1, eb1=eb1, ew2=ew2, eb2=eb2, aw=aw, ab=ab,
                           cw1=cw1, cb1=cb1, cw2=cw2,
                           nw1=nw1, nb1=nb1, nw2=nw2, nb2=nb2))
    params["layers"] = layers
    params["emb_out"] = _linear(next(it), HIDDEN, OUT_NODE)
    return params


def _kernel_params(params):
    """Flatten + fuse weights into the layout the kernel expects."""
    flat = [params["emb_in"][0], params["emb_in"][1]]
    for lp in params["layers"]:
        ew1ab = lp["ew1"][:2 * HIDDEN]                         # [32,16]
        ew1c = lp["ew1"][2 * HIDDEN:]                          # [1,16]
        acw = jnp.concatenate([lp["aw"], lp["cw1"]], axis=1)   # [16,17]
        flat += [ew1ab, ew1c, lp["eb1"], lp["ew2"], lp["eb2"],
                 acw, lp["ab"], lp["cb1"], lp["cw2"],
                 lp["nw1"], lp["nb1"], lp["nw2"], lp["nb2"]]
    flat += [params["emb_out"][0], params["emb_out"][1]]
    return flat


# ---------------------------------------------------------------------------
# wrapper
# ---------------------------------------------------------------------------
def pl_egnn_forward(h, x, rows, cols, params):
    """h: [B, N, in_node], x: [B, N, 3]; rows/cols: [E] shared edge index lists."""
    B, N, _ = h.shape

    S_row = jax.nn.one_hot(rows, N, dtype=jnp.float32)     # [E, N]
    S_col = jax.nn.one_hot(cols, N, dtype=jnp.float32)     # [E, N]
    # one-hot values are exact in bf16 -> halve HBM/VMEM traffic of the big arrays
    S = jnp.concatenate([S_row, S_col], axis=0).astype(jnp.bfloat16)   # [2E, N]
    S_rowT = S_row.T.astype(jnp.bfloat16)                              # [N, E]
    inv_cnt = (1.0 / jnp.maximum(jnp.sum(S_row, axis=0), 1.0)).reshape(N, 1)

    kparams = _kernel_params(params)
    inputs = [h.astype(jnp.float32), x.astype(jnp.float32),
              S, S_rowT, inv_cnt] + kparams

    def batched(shape):      # per-graph inputs: pick graph b, squeeze batch dim
        return pl.BlockSpec((None,) + tuple(shape), lambda b: (b,) + (0,) * len(shape))

    def shared(arr):         # graph-structure / weights shared across the grid
        return pl.BlockSpec(arr.shape, lambda b, nd=arr.ndim: (0,) * nd)

    in_specs = ([batched((N, h.shape[-1])), batched((N, 3)),
                 shared(S), shared(S_rowT), shared(inv_cnt)]
                + [shared(p) for p in kparams])
    out_spec = pl.BlockSpec((None, N, OUT_NODE), lambda b: (b, 0, 0))

    return pl.pallas_call(
        _egnn_kernel,
        out_shape=jax.ShapeDtypeStruct((B, N, OUT_NODE), jnp.float32),
        grid=(B,),
        in_specs=in_specs,
        out_specs=out_spec,
        compiler_params=pltpu.CompilerParams(
            dimension_semantics=("parallel",),           # both TCs on v7x
            vmem_limit_bytes=32 * 1024 * 1024),
    )(*inputs)


# ---------------------------------------------------------------------------
# pure-JAX reference (gather + segment_sum semantics, mirrors the PyTorch code)
# ---------------------------------------------------------------------------
def egnn_reference(h, x, rows, cols, params):
    N = h.shape[0]
    E = rows.shape[0]
    silu = jax.nn.silu

    w, b = params["emb_in"]
    h = h @ w + b
    for lp in params["layers"]:
        h_row, h_col = h[rows], h[cols]
        coord_diff = x[rows] - x[cols]
        radial = jnp.sum(coord_diff ** 2, axis=1, keepdims=True)

        e_in = jnp.concatenate([h_row, h_col, radial], axis=1)
        m = silu(e_in @ lp["ew1"] + lp["eb1"])
        m = silu(m @ lp["ew2"] + lp["eb2"])
        att = jax.nn.sigmoid(m @ lp["aw"] + lp["ab"])
        m = m * att

        trans = coord_diff * (silu(m @ lp["cw1"] + lp["cb1"]) @ lp["cw2"])
        agg_x = jax.ops.segment_sum(trans, rows, num_segments=N)
        cnt = jnp.maximum(
            jax.ops.segment_sum(jnp.ones((E, 1), jnp.float32), rows, num_segments=N), 1.0)
        x = x + agg_x / cnt

        agg_h = jax.ops.segment_sum(m, rows, num_segments=N)
        n_in = jnp.concatenate([h, agg_h], axis=1)
        h = h + (silu(n_in @ lp["nw1"] + lp["nb1"]) @ lp["nw2"] + lp["nb2"])

    w, b = params["emb_out"]
    return h @ w + b


if __name__ == "__main__":
    key = jax.random.PRNGKey(0)
    k_h, k_x, k_p = jax.random.split(key, 3)

    B, N = 2, 8                                             # 2 graphs, 8 nodes each
    h = jax.random.normal(k_h, (B, N, IN_NODE), jnp.float32)  # [2, 8, 9]
    x = jax.random.normal(k_x, (B, N, 3), jnp.float32)        # [2, 8, 3]

    # fully-connected directed graph (no self loops): E = 56 edges
    rows, cols = [], []
    for i in range(N):
        for j in range(N):
            if i != j:
                rows.append(i)
                cols.append(j)
    rows = jnp.array(rows, jnp.int32)
    cols = jnp.array(cols, jnp.int32)

    params = init_params(k_p)

    out = jax.block_until_ready(pl_egnn_forward(h, x, rows, cols, params))
    assert out.shape == (B, N, OUT_NODE)

    with jax.default_matmul_precision("highest"):
        ref = jnp.stack([egnn_reference(h[b], x[b], rows, cols, params)
                         for b in range(B)])

    # MXU f32 matmuls inside the kernel may use bf16-pass precision vs the
    # "highest"-precision reference -> compare at 1e-2.
    np.testing.assert_allclose(np.asarray(out), np.asarray(ref), rtol=1e-2, atol=1e-2)

    print("KERNEL_OK")
</pallas_src>

<mosaic_0001>
module attributes {stable_mosaic.version = 11 : i64} {
  func.func @_egnn_kernel(%arg0: i32, %arg1: memref<1x8x9xf32, #tpu.memory_space<vmem>>, %arg2: memref<1x8x3xf32, #tpu.memory_space<vmem>>, %arg3: memref<112x8xbf16, #tpu.memory_space<vmem>>, %arg4: memref<8x56xbf16, #tpu.memory_space<vmem>>, %arg5: memref<8x1xf32, #tpu.memory_space<vmem>>, %arg6: memref<9x16xf32, #tpu.memory_space<vmem>>, %arg7: memref<1x16xf32, #tpu.memory_space<vmem>>, %arg8: memref<32x16xf32, #tpu.memory_space<vmem>>, %arg9: memref<1x16xf32, #tpu.memory_space<vmem>>, %arg10: memref<1x16xf32, #tpu.memory_space<vmem>>, %arg11: memref<16x16xf32, #tpu.memory_space<vmem>>, %arg12: memref<1x16xf32, #tpu.memory_space<vmem>>, %arg13: memref<16x17xf32, #tpu.memory_space<vmem>>, %arg14: memref<1x1xf32, #tpu.memory_space<vmem>>, %arg15: memref<1x16xf32, #tpu.memory_space<vmem>>, %arg16: memref<16x1xf32, #tpu.memory_space<vmem>>, %arg17: memref<32x16xf32, #tpu.memory_space<vmem>>, %arg18: memref<1x16xf32, #tpu.memory_space<vmem>>, %arg19: memref<16x16xf32, #tpu.memory_space<vmem>>, %arg20: memref<1x16xf32, #tpu.memory_space<vmem>>, %arg21: memref<32x16xf32, #tpu.memory_space<vmem>>, %arg22: memref<1x16xf32, #tpu.memory_space<vmem>>, %arg23: memref<1x16xf32, #tpu.memory_space<vmem>>, %arg24: memref<16x16xf32, #tpu.memory_space<vmem>>, %arg25: memref<1x16xf32, #tpu.memory_space<vmem>>, %arg26: memref<16x17xf32, #tpu.memory_space<vmem>>, %arg27: memref<1x1xf32, #tpu.memory_space<vmem>>, %arg28: memref<1x16xf32, #tpu.memory_space<vmem>>, %arg29: memref<16x1xf32, #tpu.memory_space<vmem>>, %arg30: memref<32x16xf32, #tpu.memory_space<vmem>>, %arg31: memref<1x16xf32, #tpu.memory_space<vmem>>, %arg32: memref<16x16xf32, #tpu.memory_space<vmem>>, %arg33: memref<1x16xf32, #tpu.memory_space<vmem>>, %arg34: memref<16x2xf32, #tpu.memory_space<vmem>>, %arg35: memref<1x2xf32, #tpu.memory_space<vmem>>, %arg36: memref<1x8x2xf32, #tpu.memory_space<vmem>>) attributes {dimension_semantics = [#tpu.dimension_semantics<parallel>], iteration_bounds = array<i64: 2>, scalar_prefetch = 0 : i64, scratch_operands = 0 : i64, tpu.core_type = #tpu.core_type<tc>, window_params = [{transform_indices = @transform_0, window_bounds = array<i64: 1, 8, 9>}, {transform_indices = @transform_1, window_bounds = array<i64: 1, 8, 3>}, {pipeline_mode = #tpu.pipeline_mode<synchronous>, transform_indices = @transform_2, window_bounds = array<i64: 112, 8>}, {pipeline_mode = #tpu.pipeline_mode<synchronous>, transform_indices = @transform_3, window_bounds = array<i64: 8, 56>}, {pipeline_mode = #tpu.pipeline_mode<synchronous>, transform_indices = @transform_4, window_bounds = array<i64: 8, 1>}, {pipeline_mode = #tpu.pipeline_mode<synchronous>, transform_indices = @transform_5, window_bounds = array<i64: 9, 16>}, {pipeline_mode = #tpu.pipeline_mode<synchronous>, transform_indices = @transform_6, window_bounds = array<i64: 1, 16>}, {pipeline_mode = #tpu.pipeline_mode<synchronous>, transform_indices = @transform_7, window_bounds = array<i64: 32, 16>}, {pipeline_mode = #tpu.pipeline_mode<synchronous>, transform_indices = @transform_8, window_bounds = array<i64: 1, 16>}, {pipeline_mode = #tpu.pipeline_mode<synchronous>, transform_indices = @transform_9, window_bounds = array<i64: 1, 16>}, {pipeline_mode = #tpu.pipeline_mode<synchronous>, transform_indices = @transform_10, window_bounds = array<i64: 16, 16>}, {pipeline_mode = #tpu.pipeline_mode<synchronous>, transform_indices = @transform_11, window_bounds = array<i64: 1, 16>}, {pipeline_mode = #tpu.pipeline_mode<synchronous>, transform_indices = @transform_12, window_bounds = array<i64: 16, 17>}, {pipeline_mode = #tpu.pipeline_mode<synchronous>, transform_indices = @transform_13, window_bounds = array<i64: 1, 1>}, {pipeline_mode = #tpu.pipeline_mode<synchronous>, transform_indices = @transform_14, window_bounds = array<i64: 1, 16>}, {pipeline_mode = #tpu.pipeline_mode<synchronous>, transform_indices = @transform_15, window_bounds = array<i64: 16, 1>}, {pipeline_mode = #tpu.pipeline_mode<synchronous>, transform_indices = @transform_16, window_bounds = array<i64: 32, 16>}, {pipeline_mode = #tpu.pipeline_mode<synchronous>, transform_indices = @transform_17, window_bounds = array<i64: 1, 16>}, {pipeline_mode = #tpu.pipeline_mode<synchronous>, transform_indices = @transform_18, window_bounds = array<i64: 16, 16>}, {pipeline_mode = #tpu.pipeline_mode<synchronous>, transform_indices = @transform_19, window_bounds = array<i64: 1, 16>}, {pipeline_mode = #tpu.pipeline_mode<synchronous>, transform_indices = @transform_20, window_bounds = array<i64: 32, 16>}, {pipeline_mode = #tpu.pipeline_mode<synchronous>, transform_indices = @transform_21, window_bounds = array<i64: 1, 16>}, {pipeline_mode = #tpu.pipeline_mode<synchronous>, transform_indices = @transform_22, window_bounds = array<i64: 1, 16>}, {pipeline_mode = #tpu.pipeline_mode<synchronous>, transform_indices = @transform_23, window_bounds = array<i64: 16, 16>}, {pipeline_mode = #tpu.pipeline_mode<synchronous>, transform_indices = @transform_24, window_bounds = array<i64: 1, 16>}, {pipeline_mode = #tpu.pipeline_mode<synchronous>, transform_indices = @transform_25, window_bounds = array<i64: 16, 17>}, {pipeline_mode = #tpu.pipeline_mode<synchronous>, transform_indices = @transform_26, window_bounds = array<i64: 1, 1>}, {pipeline_mode = #tpu.pipeline_mode<synchronous>, transform_indices = @transform_27, window_bounds = array<i64: 1, 16>}, {pipeline_mode = #tpu.pipeline_mode<synchronous>, transform_indices = @transform_28, window_bounds = array<i64: 16, 1>}, {pipeline_mode = #tpu.pipeline_mode<synchronous>, transform_indices = @transform_29, window_bounds = array<i64: 32, 16>}, {pipeline_mode = #tpu.pipeline_mode<synchronous>, transform_indices = @transform_30, window_bounds = array<i64: 1, 16>}, {pipeline_mode = #tpu.pipeline_mode<synchronous>, transform_indices = @transform_31, window_bounds = array<i64: 16, 16>}, {pipeline_mode = #tpu.pipeline_mode<synchronous>, transform_indices = @transform_32, window_bounds = array<i64: 1, 16>}, {pipeline_mode = #tpu.pipeline_mode<synchronous>, transform_indices = @transform_33, window_bounds = array<i64: 16, 2>}, {pipeline_mode = #tpu.pipeline_mode<synchronous>, transform_indices = @transform_34, window_bounds = array<i64: 1, 2>}, {transform_indices = @transform_35, window_bounds = array<i64: 1, 8, 2>}]} {
    %c0 = arith.constant 0 : index
    %c0_0 = arith.constant 0 : index
    %0 = vector.load %arg6[%c0, %c0_0] : memref<9x16xf32, #tpu.memory_space<vmem>>, vector<9x16xf32>
    %c0_1 = arith.constant 0 : index
    %c0_2 = arith.constant 0 : index
    %1 = vector.load %arg7[%c0_1, %c0_2] : memref<1x16xf32, #tpu.memory_space<vmem>>, vector<1x16xf32>
    %c0_3 = arith.constant 0 : index
    %c0_4 = arith.constant 0 : index
    %2 = vector.load %arg8[%c0_3, %c0_4] : memref<32x16xf32, #tpu.memory_space<vmem>>, vector<32x16xf32>
    %c0_5 = arith.constant 0 : index
    %c0_6 = arith.constant 0 : index
    %3 = vector.load %arg9[%c0_5, %c0_6] : memref<1x16xf32, #tpu.memory_space<vmem>>, vector<1x16xf32>
    %c0_7 = arith.constant 0 : index
    %c0_8 = arith.constant 0 : index
    %4 = vector.load %arg10[%c0_7, %c0_8] : memref<1x16xf32, #tpu.memory_space<vmem>>, vector<1x16xf32>
    %c0_9 = arith.constant 0 : index
    %c0_10 = arith.constant 0 : index
    %5 = vector.load %arg11[%c0_9, %c0_10] : memref<16x16xf32, #tpu.memory_space<vmem>>, vector<16x16xf32>
    %c0_11 = arith.constant 0 : index
    %c0_12 = arith.constant 0 : index
    %6 = vector.load %arg12[%c0_11, %c0_12] : memref<1x16xf32, #tpu.memory_space<vmem>>, vector<1x16xf32>
    %c0_13 = arith.constant 0 : index
    %c0_14 = arith.constant 0 : index
    %7 = vector.load %arg13[%c0_13, %c0_14] : memref<16x17xf32, #tpu.memory_space<vmem>>, vector<16x17xf32>
    %c0_15 = arith.constant 0 : index
    %c0_16 = arith.constant 0 : index
    %8 = vector.load %arg14[%c0_15, %c0_16] : memref<1x1xf32, #tpu.memory_space<vmem>>, vector<1x1xf32>
    %c0_17 = arith.constant 0 : index
    %c0_18 = arith.constant 0 : index
    %9 = vector.load %arg15[%c0_17, %c0_18] : memref<1x16xf32, #tpu.memory_space<vmem>>, vector<1x16xf32>
    %c0_19 = arith.constant 0 : index
    %c0_20 = arith.constant 0 : index
    %10 = vector.load %arg16[%c0_19, %c0_20] : memref<16x1xf32, #tpu.memory_space<vmem>>, vector<16x1xf32>
    %c0_21 = arith.constant 0 : index
    %c0_22 = arith.constant 0 : index
    %11 = vector.load %arg17[%c0_21, %c0_22] : memref<32x16xf32, #tpu.memory_space<vmem>>, vector<32x16xf32>
    %c0_23 = arith.constant 0 : index
    %c0_24 = arith.constant 0 : index
    %12 = vector.load %arg18[%c0_23, %c0_24] : memref<1x16xf32, #tpu.memory_space<vmem>>, vector<1x16xf32>
    %c0_25 = arith.constant 0 : index
    %c0_26 = arith.constant 0 : index
    %13 = vector.load %arg19[%c0_25, %c0_26] : memref<16x16xf32, #tpu.memory_space<vmem>>, vector<16x16xf32>
    %c0_27 = arith.constant 0 : index
    %c0_28 = arith.constant 0 : index
    %14 = vector.load %arg20[%c0_27, %c0_28] : memref<1x16xf32, #tpu.memory_space<vmem>>, vector<1x16xf32>
    %c0_29 = arith.constant 0 : index
    %c0_30 = arith.constant 0 : index
    %15 = vector.load %arg21[%c0_29, %c0_30] : memref<32x16xf32, #tpu.memory_space<vmem>>, vector<32x16xf32>
    %c0_31 = arith.constant 0 : index
    %c0_32 = arith.constant 0 : index
    %16 = vector.load %arg22[%c0_31, %c0_32] : memref<1x16xf32, #tpu.memory_space<vmem>>, vector<1x16xf32>
    %c0_33 = arith.constant 0 : index
    %c0_34 = arith.constant 0 : index
    %17 = vector.load %arg23[%c0_33, %c0_34] : memref<1x16xf32, #tpu.memory_space<vmem>>, vector<1x16xf32>
    %c0_35 = arith.constant 0 : index
    %c0_36 = arith.constant 0 : index
    %18 = vector.load %arg24[%c0_35, %c0_36] : memref<16x16xf32, #tpu.memory_space<vmem>>, vector<16x16xf32>
    %c0_37 = arith.constant 0 : index
    %c0_38 = arith.constant 0 : index
    %19 = vector.load %arg25[%c0_37, %c0_38] : memref<1x16xf32, #tpu.memory_space<vmem>>, vector<1x16xf32>
    %c0_39 = arith.constant 0 : index
    %c0_40 = arith.constant 0 : index
    %20 = vector.load %arg26[%c0_39, %c0_40] : memref<16x17xf32, #tpu.memory_space<vmem>>, vector<16x17xf32>
    %c0_41 = arith.constant 0 : index
    %c0_42 = arith.constant 0 : index
    %21 = vector.load %arg27[%c0_41, %c0_42] : memref<1x1xf32, #tpu.memory_space<vmem>>, vector<1x1xf32>
    %c0_43 = arith.constant 0 : index
    %c0_44 = arith.constant 0 : index
    %22 = vector.load %arg28[%c0_43, %c0_44] : memref<1x16xf32, #tpu.memory_space<vmem>>, vector<1x16xf32>
    %c0_45 = arith.constant 0 : index
    %c0_46 = arith.constant 0 : index
    %23 = vector.load %arg29[%c0_45, %c0_46] : memref<16x1xf32, #tpu.memory_space<vmem>>, vector<16x1xf32>
    %c0_47 = arith.constant 0 : index
    %c0_48 = arith.constant 0 : index
    %24 = vector.load %arg30[%c0_47, %c0_48] : memref<32x16xf32, #tpu.memory_space<vmem>>, vector<32x16xf32>
    %c0_49 = arith.constant 0 : index
    %c0_50 = arith.constant 0 : index
    %25 = vector.load %arg31[%c0_49, %c0_50] : memref<1x16xf32, #tpu.memory_space<vmem>>, vector<1x16xf32>
    %c0_51 = arith.constant 0 : index
    %c0_52 = arith.constant 0 : index
    %26 = vector.load %arg32[%c0_51, %c0_52] : memref<16x16xf32, #tpu.memory_space<vmem>>, vector<16x16xf32>
    %c0_53 = arith.constant 0 : index
    %c0_54 = arith.constant 0 : index
    %27 = vector.load %arg33[%c0_53, %c0_54] : memref<1x16xf32, #tpu.memory_space<vmem>>, vector<1x16xf32>
    %c0_55 = arith.constant 0 : index
    %c0_56 = arith.constant 0 : index
    %28 = vector.load %arg34[%c0_55, %c0_56] : memref<16x2xf32, #tpu.memory_space<vmem>>, vector<16x2xf32>
    %c0_57 = arith.constant 0 : index
    %c0_58 = arith.constant 0 : index
    %29 = vector.load %arg35[%c0_57, %c0_58] : memref<1x2xf32, #tpu.memory_space<vmem>>, vector<1x2xf32>
    %c0_59 = arith.constant 0 : index
    %c0_60 = arith.constant 0 : index
    %30 = vector.load %arg3[%c0_59, %c0_60] : memref<112x8xbf16, #tpu.memory_space<vmem>>, vector<112x8xbf16>
    %31 = arith.extf %30 : vector<112x8xbf16> to vector<112x8xf32>
    %c0_61 = arith.constant 0 : index
    %c0_62 = arith.constant 0 : index
    %32 = vector.load %arg4[%c0_61, %c0_62] : memref<8x56xbf16, #tpu.memory_space<vmem>>, vector<8x56xbf16>
    %33 = arith.extf %32 : vector<8x56xbf16> to vector<8x56xf32>
    %c0_63 = arith.constant 0 : index
    %c0_64 = arith.constant 0 : index
    %34 = vector.load %arg5[%c0_63, %c0_64] : memref<8x1xf32, #tpu.memory_space<vmem>>, vector<8x1xf32>
    %c0_65 = arith.constant 0 : index
    %c0_66 = arith.constant 0 : index
    %c0_67 = arith.constant 0 : index
    %35 = vector.load %arg1[%c0_65, %c0_66, %c0_67] : memref<1x8x9xf32, #tpu.memory_space<vmem>>, vector<1x8x9xf32>
    %36 = vector.shape_cast %35 : vector<1x8x9xf32> to vector<8x9xf32>
    %cst = arith.constant dense<0.000000e+00> : vector<8x16xf32>
    %37 = tpu.matmul %36, %0, %cst {dimension_numbers = #tpu.dot_dimension_numbers<[1], [0], [0], [1], [0, 0, 1, 1], [], []>} : vector<8x9xf32>, vector<9x16xf32>, vector<8x16xf32> -> vector<8x16xf32>
    %38 = vector.broadcast %1 : vector<1x16xf32> to vector<8x16xf32>
    %39 = arith.addf %37, %38 : vector<8x16xf32>
    %c0_68 = arith.constant 0 : index
    %c0_69 = arith.constant 0 : index
    %c0_70 = arith.constant 0 : index
    %40 = vector.load %arg2[%c0_68, %c0_69, %c0_70] : memref<1x8x3xf32, #tpu.memory_space<vmem>>, vector<1x8x3xf32>
    %41 = vector.shape_cast %40 : vector<1x8x3xf32> to vector<8x3xf32>
    %42 = tpu.concatenate %39, %41 in 1 : vector<8x16xf32>, vector<8x3xf32> -> vector<8x19xf32>
    %cst_71 = arith.constant dense<0.000000e+00> : vector<112x19xf32>
    %43 = tpu.matmul %31, %42, %cst_71 {dimension_numbers = #tpu.dot_dimension_numbers<[1], [0], [0], [1], [0, 0, 1, 1], [], []>} : vector<112x8xf32>, vector<8x19xf32>, vector<112x19xf32> -> vector<112x19xf32>
    %44 = vector.extract_strided_slice %43 {offsets = [0, 0], sizes = [56, 16], strides = [1, 1]} : vector<112x19xf32> to vector<56x16xf32>
    %45 = vector.extract_strided_slice %43 {offsets = [56, 0], sizes = [56, 16], strides = [1, 1]} : vector<112x19xf32> to vector<56x16xf32>
    %46 = vector.extract_strided_slice %43 {offsets = [0, 16], sizes = [56, 3], strides = [1, 1]} : vector<112x19xf32> to vector<56x3xf32>
    %47 = vector.extract_strided_slice %43 {offsets = [56, 16], sizes = [56, 3], strides = [1, 1]} : vector<112x19xf32> to vector<56x3xf32>
    %48 = arith.subf %46, %47 : vector<56x3xf32>
    %49 = arith.mulf %48, %48 : vector<56x3xf32>
    %cst_72 = arith.constant dense<0.000000e+00> : vector<56xf32>
    %50 = vector.multi_reduction <add>, %49, %cst_72 [1] : vector<56x3xf32> to vector<56xf32>
    %51 = vector.shape_cast %50 : vector<56xf32> to vector<56x1xf32>
    %52 = tpu.concatenate %44, %45 in 1 : vector<56x16xf32>, vector<56x16xf32> -> vector<56x32xf32>
    %cst_73 = arith.constant dense<0.000000e+00> : vector<56x16xf32>
    %53 = tpu.matmul %52, %2, %cst_73 {dimension_numbers = #tpu.dot_dimension_numbers<[1], [0], [0], [1], [0, 0, 1, 1], [], []>} : vector<56x32xf32>, vector<32x16xf32>, vector<56x16xf32> -> vector<56x16xf32>
    %54 = vector.broadcast %51 : vector<56x1xf32> to vector<56x16xf32>
    %55 = vector.broadcast %3 : vector<1x16xf32> to vector<56x16xf32>
    %56 = arith.mulf %54, %55 : vector<56x16xf32>
    %57 = arith.addf %53, %56 : vector<56x16xf32>
    %58 = vector.broadcast %4 : vector<1x16xf32> to vector<56x16xf32>
    %59 = arith.addf %57, %58 : vector<56x16xf32>
    %60 = arith.negf %59 : vector<56x16xf32>
    %61 = math.exp %60 : vector<56x16xf32>
    %cst_74 = arith.constant 1.000000e+00 : f32
    %62 = vector.broadcast %cst_74 : f32 to vector<56x16xf32>
    %63 = arith.addf %62, %61 : vector<56x16xf32>
    %64 = arith.divf %62, %63 : vector<56x16xf32>
    %65 = arith.mulf %59, %64 : vector<56x16xf32>
    %cst_75 = arith.constant dense<0.000000e+00> : vector<56x16xf32>
    %66 = tpu.matmul %65, %5, %cst_75 {dimension_numbers = #tpu.dot_dimension_numbers<[1], [0], [0], [1], [0, 0, 1, 1], [], []>} : vector<56x16xf32>, vector<16x16xf32>, vector<56x16xf32> -> vector<56x16xf32>
    %67 = vector.broadcast %6 : vector<1x16xf32> to vector<56x16xf32>
    %68 = arith.addf %66, %67 : vector<56x16xf32>
    %69 = arith.negf %68 : vector<56x16xf32>
    %70 = math.exp %69 : vector<56x16xf32>
    %cst_76 = arith.constant 1.000000e+00 : f32
    %71 = vector.broadcast %cst_76 : f32 to vector<56x16xf32>
    %72 = arith.addf %71, %70 : vector<56x16xf32>
    %73 = arith.divf %71, %72 : vector<56x16xf32>
    %74 = arith.mulf %68, %73 : vector<56x16xf32>
    %cst_77 = arith.constant dense<0.000000e+00> : vector<56x17xf32>
    %75 = tpu.matmul %74, %7, %cst_77 {dimension_numbers = #tpu.dot_dimension_numbers<[1], [0], [0], [1], [0, 0, 1, 1], [], []>} : vector<56x16xf32>, vector<16x17xf32>, vector<56x17xf32> -> vector<56x17xf32>
    %76 = vector.extract_strided_slice %75 {offsets = [0, 0], sizes = [56, 1], strides = [1, 1]} : vector<56x17xf32> to vector<56x1xf32>
    %77 = vector.broadcast %8 : vector<1x1xf32> to vector<56x1xf32>
    %78 = arith.addf %76, %77 : vector<56x1xf32>
    %79 = arith.negf %78 : vector<56x1xf32>
    %80 = math.exp %79 : vector<56x1xf32>
    %cst_78 = arith.constant 1.000000e+00 : f32
    %81 = vector.broadcast %cst_78 : f32 to vector<56x1xf32>
    %82 = arith.addf %81, %80 : vector<56x1xf32>
    %83 = arith.divf %81, %82 : vector<56x1xf32>
    %84 = vector.extract_strided_slice %75 {offsets = [0, 1], sizes = [56, 16], strides = [1, 1]} : vector<56x17xf32> to vector<56x16xf32>
    %85 = vector.broadcast %83 : vector<56x1xf32> to vector<56x16xf32>
    %86 = arith.mulf %85, %84 : vector<56x16xf32>
    %87 = vector.broadcast %9 : vector<1x16xf32> to vector<56x16xf32>
    %88 = arith.addf %86, %87 : vector<56x16xf32>
    %89 = arith.negf %88 : vector<56x16xf32>
    %90 = math.exp %89 : vector<56x16xf32>
    %cst_79 = arith.constant 1.000000e+00 : f32
    %91 = vector.broadcast %cst_79 : f32 to vector<56x16xf32>
    %92 = arith.addf %91, %90 : vector<56x16xf32>
    %93 = arith.divf %91, %92 : vector<56x16xf32>
    %94 = arith.mulf %88, %93 : vector<56x16xf32>
    %95 = vector.broadcast %83 : vector<56x1xf32> to vector<56x16xf32>
    %96 = arith.mulf %74, %95 : vector<56x16xf32>
    %cst_80 = arith.constant dense<0.000000e+00> : vector<56x1xf32>
    %97 = tpu.matmul %94, %10, %cst_80 {dimension_numbers = #tpu.dot_dimension_numbers<[1], [0], [0], [1], [0, 0, 1, 1], [], []>} : vector<56x16xf32>, vector<16x1xf32>, vector<56x1xf32> -> vector<56x1xf32>
    %98 = vector.broadcast %97 : vector<56x1xf32> to vector<56x3xf32>
    %99 = arith.mulf %48, %98 : vector<56x3xf32>
    %100 = tpu.concatenate %96, %99 in 1 : vector<56x16xf32>, vector<56x3xf32> -> vector<56x19xf32>
    %cst_81 = arith.constant dense<0.000000e+00> : vector<8x19xf32>
    %101 = tpu.matmul %33, %100, %cst_81 {dimension_numbers = #tpu.dot_dimension_numbers<[1], [0], [0], [1], [0, 0, 1, 1], [], []>} : vector<8x56xf32>, vector<56x19xf32>, vector<8x19xf32> -> vector<8x19xf32>
    %102 = vector.extract_strided_slice %101 {offsets = [0, 16], sizes = [8, 3], strides = [1, 1]} : vector<8x19xf32> to vector<8x3xf32>
    %103 = vector.broadcast %34 : vector<8x1xf32> to vector<8x3xf32>
    %104 = arith.mulf %102, %103 : vector<8x3xf32>
    %105 = arith.addf %41, %104 : vector<8x3xf32>
    %106 = vector.extract_strided_slice %101 {offsets = [0, 0], sizes = [8, 16], strides = [1, 1]} : vector<8x19xf32> to vector<8x16xf32>
    %107 = tpu.concatenate %39, %106 in 1 : vector<8x16xf32>, vector<8x16xf32> -> vector<8x32xf32>
    %cst_82 = arith.constant dense<0.000000e+00> : vector<8x16xf32>
    %108 = tpu.matmul %107, %11, %cst_82 {dimension_numbers = #tpu.dot_dimension_numbers<[1], [0], [0], [1], [0, 0, 1, 1], [], []>} : vector<8x32xf32>, vector<32x16xf32>, vector<8x16xf32> -> vector<8x16xf32>
    %109 = vector.broadcast %12 : vector<1x16xf32> to vector<8x16xf32>
    %110 = arith.addf %108, %109 : vector<8x16xf32>
    %111 = arith.negf %110 : vector<8x16xf32>
    %112 = math.exp %111 : vector<8x16xf32>
    %cst_83 = arith.constant 1.000000e+00 : f32
    %113 = vector.broadcast %cst_83 : f32 to vector<8x16xf32>
    %114 = arith.addf %113, %112 : vector<8x16xf32>
    %115 = arith.divf %113, %114 : vector<8x16xf32>
    %116 = arith.mulf %110, %115 : vector<8x16xf32>
    %cst_84 = arith.constant dense<0.000000e+00> : vector<8x16xf32>
    %117 = tpu.matmul %116, %13, %cst_84 {dimension_numbers = #tpu.dot_dimension_numbers<[1], [0], [0], [1], [0, 0, 1, 1], [], []>} : vector<8x16xf32>, vector<16x16xf32>, vector<8x16xf32> -> vector<8x16xf32>
    %118 = arith.addf %39, %117 : vector<8x16xf32>
    %119 = vector.broadcast %14 : vector<1x16xf32> to vector<8x16xf32>
    %120 = arith.addf %118, %119 : vector<8x16xf32>
    %121 = tpu.concatenate %120, %105 in 1 : vector<8x16xf32>, vector<8x3xf32> -> vector<8x19xf32>
    %cst_85 = arith.constant dense<0.000000e+00> : vector<112x19xf32>
    %122 = tpu.matmul %31, %121, %cst_85 {dimension_numbers = #tpu.dot_dimension_numbers<[1], [0], [0], [1], [0, 0, 1, 1], [], []>} : vector<112x8xf32>, vector<8x19xf32>, vector<112x19xf32> -> vector<112x19xf32>
    %123 = vector.extract_strided_slice %122 {offsets = [0, 0], sizes = [56, 16], strides = [1, 1]} : vector<112x19xf32> to vector<56x16xf32>
    %124 = vector.extract_strided_slice %122 {offsets = [56, 0], sizes = [56, 16], strides = [1, 1]} : vector<112x19xf32> to vector<56x16xf32>
    %125 = vector.extract_strided_slice %122 {offsets = [0, 16], sizes = [56, 3], strides = [1, 1]} : vector<112x19xf32> to vector<56x3xf32>
    %126 = vector.extract_strided_slice %122 {offsets = [56, 16], sizes = [56, 3], strides = [1, 1]} : vector<112x19xf32> to vector<56x3xf32>
    %127 = arith.subf %125, %126 : vector<56x3xf32>
    %128 = arith.mulf %127, %127 : vector<56x3xf32>
    %cst_86 = arith.constant dense<0.000000e+00> : vector<56xf32>
    %129 = vector.multi_reduction <add>, %128, %cst_86 [1] : vector<56x3xf32> to vector<56xf32>
    %130 = vector.shape_cast %129 : vector<56xf32> to vector<56x1xf32>
    %131 = tpu.concatenate %123, %124 in 1 : vector<56x16xf32>, vector<56x16xf32> -> vector<56x32xf32>
    %cst_87 = arith.constant dense<0.000000e+00> : vector<56x16xf32>
    %132 = tpu.matmul %131, %15, %cst_87 {dimension_numbers = #tpu.dot_dimension_numbers<[1], [0], [0], [1], [0, 0, 1, 1], [], []>} : vector<56x32xf32>, vector<32x16xf32>, vector<56x16xf32> -> vector<56x16xf32>
    %133 = vector.broadcast %130 : vector<56x1xf32> to vector<56x16xf32>
    %134 = vector.broadcast %16 : vector<1x16xf32> to vector<56x16xf32>
    %135 = arith.mulf %133, %134 : vector<56x16xf32>
    %136 = arith.addf %132, %135 : vector<56x16xf32>
    %137 = vector.broadcast %17 : vector<1x16xf32> to vector<56x16xf32>
    %138 = arith.addf %136, %137 : vector<56x16xf32>
    %139 = arith.negf %138 : vector<56x16xf32>
    %140 = math.exp %139 : vector<56x16xf32>
    %cst_88 = arith.constant 1.000000e+00 : f32
    %141 = vector.broadcast %cst_88 : f32 to vector<56x16xf32>
    %142 = arith.addf %141, %140 : vector<56x16xf32>
    %143 = arith.divf %141, %142 : vector<56x16xf32>
    %144 = arith.mulf %138, %143 : vector<56x16xf32>
    %cst_89 = arith.constant dense<0.000000e+00> : vector<56x16xf32>
    %145 = tpu.matmul %144, %18, %cst_89 {dimension_numbers = #tpu.dot_dimension_numbers<[1], [0], [0], [1], [0, 0, 1, 1], [], []>} : vector<56x16xf32>, vector<16x16xf32>, vector<56x16xf32> -> vector<56x16xf32>
    %146 = vector.broadcast %19 : vector<1x16xf32> to vector<56x16xf32>
    %147 = arith.addf %145, %146 : vector<56x16xf32>
    %148 = arith.negf %147 : vector<56x16xf32>
    %149 = math.exp %148 : vector<56x16xf32>
    %cst_90 = arith.constant 1.000000e+00 : f32
    %150 = vector.broadcast %cst_90 : f32 to vector<56x16xf32>
    %151 = arith.addf %150, %149 : vector<56x16xf32>
    %152 = arith.divf %150, %151 : vector<56x16xf32>
    %153 = arith.mulf %147, %152 : vector<56x16xf32>
    %cst_91 = arith.constant dense<0.000000e+00> : vector<56x17xf32>
    %154 = tpu.matmul %153, %20, %cst_91 {dimension_numbers = #tpu.dot_dimension_numbers<[1], [0], [0], [1], [0, 0, 1, 1], [], []>} : vector<56x16xf32>, vector<16x17xf32>, vector<56x17xf32> -> vector<56x17xf32>
    %155 = vector.extract_strided_slice %154 {offsets = [0, 0], sizes = [56, 1], strides = [1, 1]} : vector<56x17xf32> to vector<56x1xf32>
    %156 = vector.broadcast %21 : vector<1x1xf32> to vector<56x1xf32>
    %157 = arith.addf %155, %156 : vector<56x1xf32>
    %158 = arith.negf %157 : vector<56x1xf32>
    %159 = math.exp %158 : vector<56x1xf32>
    %cst_92 = arith.constant 1.000000e+00 : f32
    %160 = vector.broadcast %cst_92 : f32 to vector<56x1xf32>
    %161 = arith.addf %160, %159 : vector<56x1xf32>
    %162 = arith.divf %160, %161 : vector<56x1xf32>
    %163 = vector.extract_strided_slice %154 {offsets = [0, 1], sizes = [56, 16], strides = [1, 1]} : vector<56x17xf32> to vector<56x16xf32>
    %164 = vector.broadcast %162 : vector<56x1xf32> to vector<56x16xf32>
    %165 = arith.mulf %164, %163 : vector<56x16xf32>
    %166 = vector.broadcast %22 : vector<1x16xf32> to vector<56x16xf32>
    %167 = arith.addf %165, %166 : vector<56x16xf32>
    %168 = arith.negf %167 : vector<56x16xf32>
    %169 = math.exp %168 : vector<56x16xf32>
    %cst_93 = arith.constant 1.000000e+00 : f32
    %170 = vector.broadcast %cst_93 : f32 to vector<56x16xf32>
    %171 = arith.addf %170, %169 : vector<56x16xf32>
    %172 = arith.divf %170, %171 : vector<56x16xf32>
    %173 = arith.mulf %167, %172 : vector<56x16xf32>
    %174 = vector.broadcast %162 : vector<56x1xf32> to vector<56x16xf32>
    %175 = arith.mulf %153, %174 : vector<56x16xf32>
    %cst_94 = arith.constant dense<0.000000e+00> : vector<56x1xf32>
    %176 = tpu.matmul %173, %23, %cst_94 {dimension_numbers = #tpu.dot_dimension_numbers<[1], [0], [0], [1], [0, 0, 1, 1], [], []>} : vector<56x16xf32>, vector<16x1xf32>, vector<56x1xf32> -> vector<56x1xf32>
    %177 = vector.broadcast %176 : vector<56x1xf32> to vector<56x3xf32>
    %178 = arith.mulf %127, %177 : vector<56x3xf32>
    %179 = tpu.concatenate %175, %178 in 1 : vector<56x16xf32>, vector<56x3xf32> -> vector<56x19xf32>
    %cst_95 = arith.constant dense<0.000000e+00> : vector<8x19xf32>
    %180 = tpu.matmul %33, %179, %cst_95 {dimension_numbers = #tpu.dot_dimension_numbers<[1], [0], [0], [1], [0, 0, 1, 1], [], []>} : vector<8x56xf32>, vector<56x19xf32>, vector<8x19xf32> -> vector<8x19xf32>
    %181 = vector.extract_strided_slice %180 {offsets = [0, 0], sizes = [8, 16], strides = [1, 1]} : vector<8x19xf32> to vector<8x16xf32>
    %182 = tpu.concatenate %120, %181 in 1 : vector<8x16xf32>, vector<8x16xf32> -> vector<8x32xf32>
    %cst_96 = arith.constant dense<0.000000e+00> : vector<8x16xf32>
    %183 = tpu.matmul %182, %24, %cst_96 {dimension_numbers = #tpu.dot_dimension_numbers<[1], [0], [0], [1], [0, 0, 1, 1], [], []>} : vector<8x32xf32>, vector<32x16xf32>, vector<8x16xf32> -> vector<8x16xf32>
    %184 = vector.broadcast %25 : vector<1x16xf32> to vector<8x16xf32>
    %185 = arith.addf %183, %184 : vector<8x16xf32>
    %186 = arith.negf %185 : vector<8x16xf32>
    %187 = math.exp %186 : vector<8x16xf32>
    %cst_97 = arith.constant 1.000000e+00 : f32
    %188 = vector.broadcast %cst_97 : f32 to vector<8x16xf32>
    %189 = arith.addf %188, %187 : vector<8x16xf32>
    %190 = arith.divf %188, %189 : vector<8x16xf32>
    %191 = arith.mulf %185, %190 : vector<8x16xf32>
    %cst_98 = arith.constant dense<0.000000e+00> : vector<8x16xf32>
    %192 = tpu.matmul %191, %26, %cst_98 {dimension_numbers = #tpu.dot_dimension_numbers<[1], [0], [0], [1], [0, 0, 1, 1], [], []>} : vector<8x16xf32>, vector<16x16xf32>, vector<8x16xf32> -> vector<8x16xf32>
    %193 = arith.addf %120, %192 : vector<8x16xf32>
    %194 = vector.broadcast %27 : vector<1x16xf32> to vector<8x16xf32>
    %195 = arith.addf %193, %194 : vector<8x16xf32>
    %cst_99 = arith.constant dense<0.000000e+00> : vector<8x2xf32>
    %196 = tpu.matmul %195, %28, %cst_99 {dimension_numbers = #tpu.dot_dimension_numbers<[1], [0], [0], [1], [0, 0, 1, 1], [], []>} : vector<8x16xf32>, vector<16x2xf32>, vector<8x2xf32> -> vector<8x2xf32>
    %197 = vector.broadcast %29 : vector<1x2xf32> to vector<8x2xf32>
    %198 = arith.addf %196, %197 : vector<8x2xf32>
    %c0_100 = arith.constant 0 : index
    %c0_101 = arith.constant 0 : index
    %c0_102 = arith.constant 0 : index
    %199 = vector.load %arg36[%c0_100, %c0_101, %c0_102] : memref<1x8x2xf32, #tpu.memory_space<vmem>>, vector<1x8x2xf32>
    %200 = vector.shape_cast %199 : vector<1x8x2xf32> to vector<8x2xf32>
    %201 = vector.shape_cast %198 : vector<8x2xf32> to vector<1x8x2xf32>
    tpu.vector_store %arg36[%c0_100, %c0_101, %c0_102], %201 {strides = array<i32>} : memref<1x8x2xf32, #tpu.memory_space<vmem>>, vector<1x8x2xf32>,
    return
  }
  func.func @transform_0(%arg0: i32) -> (i32, i32, i32) {
    %c0_i32 = arith.constant 0 : i32
    %c0_i32_0 = arith.constant 0 : i32
    %c0_i32_1 = arith.constant 0 : i32
    return %arg0, %c0_i32, %c0_i32_0 : i32, i32, i32
  }
  func.func @transform_1(%arg0: i32) -> (i32, i32, i32) {
    %c0_i32 = arith.constant 0 : i32
    %c0_i32_0 = arith.constant 0 : i32
    %c0_i32_1 = arith.constant 0 : i32
    return %arg0, %c0_i32, %c0_i32_0 : i32, i32, i32
  }
  func.func @transform_2(%arg0: i32) -> (i32, i32) {
    %c0_i32 = arith.constant 0 : i32
    %c0_i32_0 = arith.constant 0 : i32
    %c0_i32_1 = arith.constant 0 : i32
    return %c0_i32, %c0_i32_0 : i32, i32
  }
  func.func @transform_3(%arg0: i32) -> (i32, i32) {
    %c0_i32 = arith.constant 0 : i32
    %c0_i32_0 = arith.constant 0 : i32
    %c0_i32_1 = arith.constant 0 : i32
    return %c0_i32, %c0_i32_0 : i32, i32
  }
  func.func @transform_4(%arg0: i32) -> (i32, i32) {
    %c0_i32 = arith.constant 0 : i32
    %c0_i32_0 = arith.constant 0 : i32
    %c0_i32_1 = arith.constant 0 : i32
    return %c0_i32, %c0_i32_0 : i32, i32
  }
  func.func @transform_5(%arg0: i32) -> (i32, i32) {
    %c0_i32 = arith.constant 0 : i32
    %c0_i32_0 = arith.constant 0 : i32
    %c0_i32_1 = arith.constant 0 : i32
    return %c0_i32, %c0_i32_0 : i32, i32
  }
  func.func @transform_6(%arg0: i32) -> (i32, i32) {
    %c0_i32 = arith.constant 0 : i32
    %c0_i32_0 = arith.constant 0 : i32
    %c0_i32_1 = arith.constant 0 : i32
    return %c0_i32, %c0_i32_0 : i32, i32
  }
  func.func @transform_7(%arg0: i32) -> (i32, i32) {
    %c0_i32 = arith.constant 0 : i32
    %c0_i32_0 = arith.constant 0 : i32
    %c0_i32_1 = arith.constant 0 : i32
    return %c0_i32, %c0_i32_0 : i32, i32
  }
  func.func @transform_8(%arg0: i32) -> (i32, i32) {
    %c0_i32 = arith.constant 0 : i32
    %c0_i32_0 = arith.constant 0 : i32
    %c0_i32_1 = arith.constant 0 : i32
    return %c0_i32, %c0_i32_0 : i32, i32
  }
  func.func @transform_9(%arg0: i32) -> (i32, i32) {
    %c0_i32 = arith.constant 0 : i32
    %c0_i32_0 = arith.constant 0 : i32
    %c0_i32_1 = arith.constant 0 : i32
    return %c0_i32, %c0_i32_0 : i32, i32
  }
  func.func @transform_10(%arg0: i32) -> (i32, i32) {
    %c0_i32 = arith.constant 0 : i32
    %c0_i32_0 = arith.constant 0 : i32
    %c0_i32_1 = arith.constant 0 : i32
    return %c0_i32, %c0_i32_0 : i32, i32
  }
  func.func @transform_11(%arg0: i32) -> (i32, i32) {
    %c0_i32 = arith.constant 0 : i32
    %c0_i32_0 = arith.constant 0 : i32
    %c0_i32_1 = arith.constant 0 : i32
    return %c0_i32, %c0_i32_0 : i32, i32
  }
  func.func @transform_12(%arg0: i32) -> (i32, i32) {
    %c0_i32 = arith.constant 0 : i32
    %c0_i32_0 = arith.constant 0 : i32
    %c0_i32_1 = arith.constant 0 : i32
    return %c0_i32, %c0_i32_0 : i32, i32
  }
  func.func @transform_13(%arg0: i32) -> (i32, i32) {
    %c0_i32 = arith.constant 0 : i32
    %c0_i32_0 = arith.constant 0 : i32
    %c0_i32_1 = arith.constant 0 : i32
    return %c0_i32, %c0_i32_0 : i32, i32
  }
  func.func @transform_14(%arg0: i32) -> (i32, i32) {
    %c0_i32 = arith.constant 0 : i32
    %c0_i32_0 = arith.constant 0 : i32
    %c0_i32_1 = arith.constant 0 : i32
    return %c0_i32, %c0_i32_0 : i32, i32
  }
  func.func @transform_15(%arg0: i32) -> (i32, i32) {
    %c0_i32 = arith.constant 0 : i32
    %c0_i32_0 = arith.constant 0 : i32
    %c0_i32_1 = arith.constant 0 : i32
    return %c0_i32, %c0_i32_0 : i32, i32
  }
  func.func @transform_16(%arg0: i32) -> (i32, i32) {
    %c0_i32 = arith.constant 0 : i32
    %c0_i32_0 = arith.constant 0 : i32
    %c0_i32_1 = arith.constant 0 : i32
    return %c0_i32, %c0_i32_0 : i32, i32
  }
  func.func @transform_17(%arg0: i32) -> (i32, i32) {
    %c0_i32 = arith.constant 0 : i32
    %c0_i32_0 = arith.constant 0 : i32
    %c0_i32_1 = arith.constant 0 : i32
    return %c0_i32, %c0_i32_0 : i32, i32
  }
  func.func @transform_18(%arg0: i32) -> (i32, i32) {
    %c0_i32 = arith.constant 0 : i32
    %c0_i32_0 = arith.constant 0 : i32
    %c0_i32_1 = arith.constant 0 : i32
    return %c0_i32, %c0_i32_0 : i32, i32
  }
  func.func @transform_19(%arg0: i32) -> (i32, i32) {
    %c0_i32 = arith.constant 0 : i32
    %c0_i32_0 = arith.constant 0 : i32
    %c0_i32_1 = arith.constant 0 : i32
    return %c0_i32, %c0_i32_0 : i32, i32
  }
  func.func @transform_20(%arg0: i32) -> (i32, i32) {
    %c0_i32 = arith.constant 0 : i32
    %c0_i32_0 = arith.constant 0 : i32
    %c0_i32_1 = arith.constant 0 : i32
    return %c0_i32, %c0_i32_0 : i32, i32
  }
  func.func @transform_21(%arg0: i32) -> (i32, i32) {
    %c0_i32 = arith.constant 0 : i32
    %c0_i32_0 = arith.constant 0 : i32
    %c0_i32_1 = arith.constant 0 : i32
    return %c0_i32, %c0_i32_0 : i32, i32
  }
  func.func @transform_22(%arg0: i32) -> (i32, i32) {
    %c0_i32 = arith.constant 0 : i32
    %c0_i32_0 = arith.constant 0 : i32
    %c0_i32_1 = arith.constant 0 : i32
    return %c0_i32, %c0_i32_0 : i32, i32
  }
  func.func @transform_23(%arg0: i32) -> (i32, i32) {
    %c0_i32 = arith.constant 0 : i32
    %c0_i32_0 = arith.constant 0 : i32
    %c0_i32_1 = arith.constant 0 : i32
    return %c0_i32, %c0_i32_0 : i32, i32
  }
  func.func @transform_24(%arg0: i32) -> (i32, i32) {
    %c0_i32 = arith.constant 0 : i32
    %c0_i32_0 = arith.constant 0 : i32
    %c0_i32_1 = arith.constant 0 : i32
    return %c0_i32, %c0_i32_0 : i32, i32
  }
  func.func @transform_25(%arg0: i32) -> (i32, i32) {
    %c0_i32 = arith.constant 0 : i32
    %c0_i32_0 = arith.constant 0 : i32
    %c0_i32_1 = arith.constant 0 : i32
    return %c0_i32, %c0_i32_0 : i32, i32
  }
  func.func @transform_26(%arg0: i32) -> (i32, i32) {
    %c0_i32 = arith.constant 0 : i32
    %c0_i32_0 = arith.constant 0 : i32
    %c0_i32_1 = arith.constant 0 : i32
    return %c0_i32, %c0_i32_0 : i32, i32
  }
  func.func @transform_27(%arg0: i32) -> (i32, i32) {
    %c0_i32 = arith.constant 0 : i32
    %c0_i32_0 = arith.constant 0 : i32
    %c0_i32_1 = arith.constant 0 : i32
    return %c0_i32, %c0_i32_0 : i32, i32
  }
  func.func @transform_28(%arg0: i32) -> (i32, i32) {
    %c0_i32 = arith.constant 0 : i32
    %c0_i32_0 = arith.constant 0 : i32
    %c0_i32_1 = arith.constant 0 : i32
    return %c0_i32, %c0_i32_0 : i32, i32
  }
  func.func @transform_29(%arg0: i32) -> (i32, i32) {
    %c0_i32 = arith.constant 0 : i32
    %c0_i32_0 = arith.constant 0 : i32
    %c0_i32_1 = arith.constant 0 : i32
    return %c0_i32, %c0_i32_0 : i32, i32
  }
  func.func @transform_30(%arg0: i32) -> (i32, i32) {
    %c0_i32 = arith.constant 0 : i32
    %c0_i32_0 = arith.constant 0 : i32
    %c0_i32_1 = arith.constant 0 : i32
    return %c0_i32, %c0_i32_0 : i32, i32
  }
  func.func @transform_31(%arg0: i32) -> (i32, i32) {
    %c0_i32 = arith.constant 0 : i32
    %c0_i32_0 = arith.constant 0 : i32
    %c0_i32_1 = arith.constant 0 : i32
    return %c0_i32, %c0_i32_0 : i32, i32
  }
  func.func @transform_32(%arg0: i32) -> (i32, i32) {
    %c0_i32 = arith.constant 0 : i32
    %c0_i32_0 = arith.constant 0 : i32
    %c0_i32_1 = arith.constant 0 : i32
    return %c0_i32, %c0_i32_0 : i32, i32
  }
  func.func @transform_33(%arg0: i32) -> (i32, i32) {
    %c0_i32 = arith.constant 0 : i32
    %c0_i32_0 = arith.constant 0 : i32
    %c0_i32_1 = arith.constant 0 : i32
    return %c0_i32, %c0_i32_0 : i32, i32
  }
  func.func @transform_34(%arg0: i32) -> (i32, i32) {
    %c0_i32 = arith.constant 0 : i32
    %c0_i32_0 = arith.constant 0 : i32
    %c0_i32_1 = arith.constant 0 : i32
    return %c0_i32, %c0_i32_0 : i32, i32
  }
  func.func @transform_35(%arg0: i32) -> (i32, i32, i32) {
    %c0_i32 = arith.constant 0 : i32
    %c0_i32_0 = arith.constant 0 : i32
    %c0_i32_1 = arith.constant 0 : i32
    return %arg0, %c0_i32, %c0_i32_0 : i32, i32, i32
  }
}

</mosaic_0001>

<llo_original>
// kernel: tpu_custom_call.1
$region0: #{tpu_custom_call.1}
  #allocation0 [shape = 'u32[]', space=smem, size = 0x4, offset = 0x4, fixed_abs, tag = 'smem constant byte address 0x4 - core index']
  #allocation1 [shape = 'u32[144,128]{1,0:T(1,128)}', space=vmem, size = 0x12000, scoped, tag = 'internal scratch']
  #allocation2 [shape = 'f32[1,1]{1,0:T(1,128)S(1)}', space=vmem, size = 0x200, scoped, tag = 'scoped memory for tpu_custom_call.1']
  #allocation3 [shape = 'f32[1,1]{1,0:T(1,128)S(1)}', space=vmem, size = 0x200, scoped, tag = 'scoped memory for tpu_custom_call.1']
  %s0 = inlined_call_operand.smem [shape: u32[36], index: -1, kind: input, shape index: {}]
  %s1 = sld [smem:[%s0]]
  %s2 = scalar_lea.smem %s0, 1
  %s3 = sld [smem:[%s2]]
  %s4 = scalar_lea.smem %s0, 2
  %s5 = sld [smem:[%s4]]
  %s6 = scalar_lea.smem %s0, 3
  %s7 = sld [smem:[%s6]]
  %s8 = scalar_lea.smem %s0, 4
  %s9 = sld [smem:[%s8]]
  %s10 = scalar_lea.smem %s0, 5
  %s11 = sld [smem:[%s10]]
  %s12 = scalar_lea.smem %s0, 6
  %s13 = sld [smem:[%s12]]
  %s14 = scalar_lea.smem %s0, 7
  %s15 = sld [smem:[%s14]]
  %s16 = scalar_lea.smem %s0, 8
  %s17 = sld [smem:[%s16]]
  %s18 = scalar_lea.smem %s0, 9
  %s19 = sld [smem:[%s18]]
  %s20 = scalar_lea.smem %s0, 10
  %s21 = sld [smem:[%s20]]
  %s22 = scalar_lea.smem %s0, 11
  %s23 = sld [smem:[%s22]]
  %s24 = scalar_lea.smem %s0, 12
  %s25 = sld [smem:[%s24]]
  %s26 = scalar_lea.smem %s0, 13
  %s27 = sld [smem:[%s26]]
  %s28 = scalar_lea.smem %s0, 14
  %s29 = sld [smem:[%s28]]
  %s30 = scalar_lea.smem %s0, 15
  %s31 = sld [smem:[%s30]]
  %s32 = scalar_lea.smem %s0, 16
  %s33 = sld [smem:[%s32]]
  %s34 = scalar_lea.smem %s0, 17
  %s35 = sld [smem:[%s34]]
  %s36 = scalar_lea.smem %s0, 18
  %s37 = sld [smem:[%s36]]
  %s38 = scalar_lea.smem %s0, 19
  %s39 = sld [smem:[%s38]]
  %s40 = scalar_lea.smem %s0, 20
  %s41 = sld [smem:[%s40]]
  %s42 = scalar_lea.smem %s0, 21
  %s43 = sld [smem:[%s42]]
  %s44 = scalar_lea.smem %s0, 22
  %s45 = sld [smem:[%s44]]
  %s46 = scalar_lea.smem %s0, 23
  %s47 = sld [smem:[%s46]]
  %s48 = scalar_lea.smem %s0, 24
  %s49 = sld [smem:[%s48]]
  %s50 = scalar_lea.smem %s0, 25
  %s51 = sld [smem:[%s50]]
  %s52 = scalar_lea.smem %s0, 26
  %s53 = sld [smem:[%s52]]
  %s54 = scalar_lea.smem %s0, 27
  %s55 = sld [smem:[%s54]]
  %s56 = scalar_lea.smem %s0, 28
  %s57 = sld [smem:[%s56]]
  %s58 = scalar_lea.smem %s0, 29
  %s59 = sld [smem:[%s58]]
  %s60 = scalar_lea.smem %s0, 30
  %s61 = sld [smem:[%s60]]
  %s62 = scalar_lea.smem %s0, 31
  %s63 = sld [smem:[%s62]]
  %s64 = scalar_lea.smem %s0, 32
  %s65 = sld [smem:[%s64]]
  %s66 = scalar_lea.smem %s0, 33
  %s67 = sld [smem:[%s66]]
  %s68 = scalar_lea.smem %s0, 34
  %s69 = sld [smem:[%s68]]
  %s70 = scalar_lea.smem %s0, 35
  %s71 = sld [smem:[%s70]]
  %s72 = sld [smem:[#allocation0]]
  $region173: #{tpu_custom_call.1} parent=0
    _
  %s74 = ssub.s32 1, %s72
  %s75 = scalar_select 0, %s74, %s72
  %v76 = vstv %s27
  %77 = vst [vmem:[#allocation2] sm:$0x1] %v76
  %v78 = vstv %s53
  %79 = vst [vmem:[#allocation3] sm:$0x1] %v78
  loop: start=0, step=1, limit=4
  $region2: #{tpu_custom_call.1} parent=0 // loop_pre_header
    _
  $region3: #{tpu_custom_call.1} parent=0 // loop_header
    %s81 = sphi 0, %s85
    %p82 = scmp.ge.s32.totalorder %s81, 4
    %s91 = sphi 0, %s93
    %s94 = sphi 0, %s91
    %s95 = sphi 0, %s94
    %s111 = sphi 0, %s95
    %s117 = sphi 0, %s119
    %s120 = sphi 0, %s117
    %s121 = sphi 0, %s120
    %s137 = sphi 0, %s121
    %s141 = sphi 0, %s141
    %s143 = sphi 0, %s141
    %s144 = sphi 0, %s143
    %s158 = sphi 0, %s144
    %s162 = sphi 0, %s162
    %s164 = sphi 0, %s162
    %s165 = sphi 0, %s164
    %s179 = sphi 0, %s165
    %s183 = sphi 0, %s183
    %s185 = sphi 0, %s183
    %s186 = sphi 0, %s185
    %s200 = sphi 0, %s186
    %s204 = sphi 0, %s204
    %s206 = sphi 0, %s204
    %s207 = sphi 0, %s206
    %s221 = sphi 0, %s207
    %s225 = sphi 0, %s225
    %s227 = sphi 0, %s225
    %s228 = sphi 0, %s227
    %s242 = sphi 0, %s228
    %s246 = sphi 0, %s246
    %s248 = sphi 0, %s246
    %s249 = sphi 0, %s248
    %s263 = sphi 0, %s249
    %s267 = sphi 0, %s267
    %s269 = sphi 0, %s267
    %s270 = sphi 0, %s269
    %s284 = sphi 0, %s270
    %s288 = sphi 0, %s288
    %s290 = sphi 0, %s288
    %s291 = sphi 0, %s290
    %s305 = sphi 0, %s291
    %s309 = sphi 0, %s309
    %s311 = sphi 0, %s309
    %s312 = sphi 0, %s311
    %s326 = sphi 0, %s312
    %s330 = sphi 0, %s330
    %s332 = sphi 0, %s330
    %s333 = sphi 0, %s332
    %s347 = sphi 0, %s333
    %s351 = sphi 0, %s351
    %s353 = sphi 0, %s351
    %s354 = sphi 0, %s353
    %s368 = sphi 0, %s354
    %s372 = sphi 0, %s372
    %s374 = sphi 0, %s372
    %s375 = sphi 0, %s374
    %s389 = sphi 0, %s375
    %s393 = sphi 0, %s393
    %s395 = sphi 0, %s393
    %s396 = sphi 0, %s395
    %s410 = sphi 0, %s396
    %s414 = sphi 0, %s414
    %s416 = sphi 0, %s414
    %s417 = sphi 0, %s416
    %s431 = sphi 0, %s417
    %s435 = sphi 0, %s435
    %s437 = sphi 0, %s435
    %s438 = sphi 0, %s437
    %s452 = sphi 0, %s438
    %s456 = sphi 0, %s456
    %s458 = sphi 0, %s456
    %s459 = sphi 0, %s458
    %s473 = sphi 0, %s459
    %s477 = sphi 0, %s477
    %s479 = sphi 0, %s477
    %s480 = sphi 0, %s479
    %s494 = sphi 0, %s480
    %s498 = sphi 0, %s498
    %s500 = sphi 0, %s498
    %s501 = sphi 0, %s500
    %s515 = sphi 0, %s501
    %s519 = sphi 0, %s519
    %s521 = sphi 0, %s519
    %s522 = sphi 0, %s521
    %s536 = sphi 0, %s522
    %s540 = sphi 0, %s540
    %s542 = sphi 0, %s540
    %s543 = sphi 0, %s542
    %s557 = sphi 0, %s543
    %s561 = sphi 0, %s561
    %s563 = sphi 0, %s561
    %s564 = sphi 0, %s563
    %s578 = sphi 0, %s564
    %s582 = sphi 0, %s582
    %s584 = sphi 0, %s582
    %s585 = sphi 0, %s584
    %s599 = sphi 0, %s585
    %s603 = sphi 0, %s603
    %s605 = sphi 0, %s603
    %s606 = sphi 0, %s605
    %s620 = sphi 0, %s606
    %s624 = sphi 0, %s624
    %s626 = sphi 0, %s624
    %s627 = sphi 0, %s626
    %s641 = sphi 0, %s627
    %s645 = sphi 0, %s645
    %s647 = sphi 0, %s645
    %s648 = sphi 0, %s647
    %s662 = sphi 0, %s648
    %s666 = sphi 0, %s666
    %s668 = sphi 0, %s666
    %s669 = sphi 0, %s668
    %s683 = sphi 0, %s669
    %s687 = sphi 0, %s687
    %s689 = sphi 0, %s687
    %s690 = sphi 0, %s689
    %s704 = sphi 0, %s690
    %s708 = sphi 0, %s708
    %s710 = sphi 0, %s708
    %s711 = sphi 0, %s710
    %s725 = sphi 0, %s711
    %s729 = sphi 0, %s729
    %s731 = sphi 0, %s729
    %s732 = sphi 0, %s731
    %s746 = sphi 0, %s732
    %s750 = sphi 0, %s750
    %s752 = sphi 0, %s750
    %s753 = sphi 0, %s752
    %s767 = sphi 0, %s753
    %s771 = sphi 0, %s771
    %s773 = sphi 0, %s771
    %s774 = sphi 0, %s773
    %s788 = sphi 0, %s774
    %s792 = sphi 0, %s792
    %s794 = sphi 0, %s792
    %s795 = sphi 0, %s794
    %s809 = sphi 0, %s795
    %s813 = sphi 0, %s813
    %s815 = sphi 0, %s813
    %s816 = sphi 0, %s815
    %s830 = sphi 0, %s816
    %s836 = sphi 0, %s838
    %s839 = sphi 0, %s836
    %s840 = sphi 0, %s839
    %s856 = sphi 0, %s840
  $region4: #{tpu_custom_call.1} parent=0 // loop_header_branch
    %84 = sbr.rel (%p82) target = $region8
  $region5: #{tpu_custom_call.1} parent=0 // loop_body
    %s86 = ssub.s32 %s81, 1
    %s87 = ssub.s32 %s81, 2
    %s88 = sadd.s32 %s81, 1
    %s89 = ssub.s32 %s81, %s88
    %p90 = scmp.eq.s32.totalorder %s89, 0
    %s92 = sadd.s32 %s91, 1
    %s93 = scalar_select %p90, %s91, %s92
    %p96 = pneg %p90
    %p97 = scmp.eq.s32.totalorder %s81, 1
    %p98 = por %p96, %p97
    %p99 = scmp.ne.s32.totalorder %s91, %s94
    %p100 = scmp.eq.s32.totalorder %s81, 0
    %p101 = por %p99, %p100
    %p102 = scmp.ne.s32.totalorder %s91, %s94
    %p103 = scmp.eq.s32.totalorder %s86, 1
    %p104 = por %p102, %p103
    %p105 = scmp.ne.s32.totalorder %s94, %s95
    %p106 = scmp.eq.s32.totalorder %s86, 0
    %p107 = por %p105, %p106
    %p108 = scmp.ne.s32.totalorder %s94, %s95
    %p109 = scmp.eq.s32.totalorder %s87, 1
    %p110 = por %p108, %p109
    %p112 = scmp.ne.s32.totalorder %s95, %s111
    %p113 = scmp.eq.s32.totalorder %s87, 0
    %p114 = por %p112, %p113
    %s115 = ssub.s32 %s81, %s88
    %p116 = scmp.eq.s32.totalorder %s115, 0
    %s118 = sadd.s32 %s117, 1
    %s119 = scalar_select %p116, %s117, %s118
    %p122 = pneg %p116
    %p123 = scmp.eq.s32.totalorder %s81, 1
    %p124 = por %p122, %p123
    %p125 = scmp.ne.s32.totalorder %s117, %s120
    %p126 = scmp.eq.s32.totalorder %s81, 0
    %p127 = por %p125, %p126
    %p128 = scmp.ne.s32.totalorder %s117, %s120
    %p129 = scmp.eq.s32.totalorder %s86, 1
    %p130 = por %p128, %p129
    %p131 = scmp.ne.s32.totalorder %s120, %s121
    %p132 = scmp.eq.s32.totalorder %s86, 0
    %p133 = por %p131, %p132
    %p134 = scmp.ne.s32.totalorder %s120, %s121
    %p135 = scmp.eq.s32.totalorder %s87, 1
    %p136 = por %p134, %p135
    %p138 = scmp.ne.s32.totalorder %s121, %s137
    %p139 = scmp.eq.s32.totalorder %s87, 0
    %p140 = por %p138, %p139
    %s142 = sadd.s32 %s141, 1
    %p145 = scmp.eq.s32.totalorder %s81, 1
    %p146 = scmp.ne.s32.totalorder %s141, %s143
    %p147 = scmp.eq.s32.totalorder %s81, 0
    %p148 = por %p146, %p147
    %p149 = scmp.ne.s32.totalorder %s141, %s143
    %p150 = scmp.eq.s32.totalorder %s86, 1
    %p151 = por %p149, %p150
    %p152 = scmp.ne.s32.totalorder %s143, %s144
    %p153 = scmp.eq.s32.totalorder %s86, 0
    %p154 = por %p152, %p153
    %p155 = scmp.ne.s32.totalorder %s143, %s144
    %p156 = scmp.eq.s32.totalorder %s87, 1
    %p157 = por %p155, %p156
    %p159 = scmp.ne.s32.totalorder %s144, %s158
    %p160 = scmp.eq.s32.totalorder %s87, 0
    %p161 = por %p159, %p160
    %s163 = sadd.s32 %s162, 1
    %p166 = scmp.eq.s32.totalorder %s81, 1
    %p167 = scmp.ne.s32.totalorder %s162, %s164
    %p168 = scmp.eq.s32.totalorder %s81, 0
    %p169 = por %p167, %p168
    %p170 = scmp.ne.s32.totalorder %s162, %s164
    %p171 = scmp.eq.s32.totalorder %s86, 1
    %p172 = por %p170, %p171
    %p173 = scmp.ne.s32.totalorder %s164, %s165
    %p174 = scmp.eq.s32.totalorder %s86, 0
    %p175 = por %p173, %p174
    %p176 = scmp.ne.s32.totalorder %s164, %s165
    %p177 = scmp.eq.s32.totalorder %s87, 1
    %p178 = por %p176, %p177
    %p180 = scmp.ne.s32.totalorder %s165, %s179
    %p181 = scmp.eq.s32.totalorder %s87, 0
    %p182 = por %p180, %p181
    %s184 = sadd.s32 %s183, 1
    %p187 = scmp.eq.s32.totalorder %s81, 1
    %p188 = scmp.ne.s32.totalorder %s183, %s185
    %p189 = scmp.eq.s32.totalorder %s81, 0
    %p190 = por %p188, %p189
    %p191 = scmp.ne.s32.totalorder %s183, %s185
    %p192 = scmp.eq.s32.totalorder %s86, 1
    %p193 = por %p191, %p192
    %p194 = scmp.ne.s32.totalorder %s185, %s186
    %p195 = scmp.eq.s32.totalorder %s86, 0
    %p196 = por %p194, %p195
    %p197 = scmp.ne.s32.totalorder %s185, %s186
    %p198 = scmp.eq.s32.totalorder %s87, 1
    %p199 = por %p197, %p198
    %p201 = scmp.ne.s32.totalorder %s186, %s200
    %p202 = scmp.eq.s32.totalorder %s87, 0
    %p203 = por %p201, %p202
    %s205 = sadd.s32 %s204, 1
    %p208 = scmp.eq.s32.totalorder %s81, 1
    %p209 = scmp.ne.s32.totalorder %s204, %s206
    %p210 = scmp.eq.s32.totalorder %s81, 0
    %p211 = por %p209, %p210
    %p212 = scmp.ne.s32.totalorder %s204, %s206
    %p213 = scmp.eq.s32.totalorder %s86, 1
    %p214 = por %p212, %p213
    %p215 = scmp.ne.s32.totalorder %s206, %s207
    %p216 = scmp.eq.s32.totalorder %s86, 0
    %p217 = por %p215, %p216
    %p218 = scmp.ne.s32.totalorder %s206, %s207
    %p219 = scmp.eq.s32.totalorder %s87, 1
    %p220 = por %p218, %p219
    %p222 = scmp.ne.s32.totalorder %s207, %s221
    %p223 = scmp.eq.s32.totalorder %s87, 0
    %p224 = por %p222, %p223
    %s226 = sadd.s32 %s225, 1
    %p229 = scmp.eq.s32.totalorder %s81, 1
    %p230 = scmp.ne.s32.totalorder %s225, %s227
    %p231 = scmp.eq.s32.totalorder %s81, 0
    %p232 = por %p230, %p231
    %p233 = scmp.ne.s32.totalorder %s225, %s227
    %p234 = scmp.eq.s32.totalorder %s86, 1
    %p235 = por %p233, %p234
    %p236 = scmp.ne.s32.totalorder %s227, %s228
    %p237 = scmp.eq.s32.totalorder %s86, 0
    %p238 = por %p236, %p237
    %p239 = scmp.ne.s32.totalorder %s227, %s228
    %p240 = scmp.eq.s32.totalorder %s87, 1
    %p241 = por %p239, %p240
    %p243 = scmp.ne.s32.totalorder %s228, %s242
    %p244 = scmp.eq.s32.totalorder %s87, 0
    %p245 = por %p243, %p244
    %s247 = sadd.s32 %s246, 1
    %p250 = scmp.eq.s32.totalorder %s81, 1
    %p251 = scmp.ne.s32.totalorder %s246, %s248
    %p252 = scmp.eq.s32.totalorder %s81, 0
    %p253 = por %p251, %p252
    %p254 = scmp.ne.s32.totalorder %s246, %s248
    %p255 = scmp.eq.s32.totalorder %s86, 1
    %p256 = por %p254, %p255
    %p257 = scmp.ne.s32.totalorder %s248, %s249
    %p258 = scmp.eq.s32.totalorder %s86, 0
    %p259 = por %p257, %p258
    %p260 = scmp.ne.s32.totalorder %s248, %s249
    %p261 = scmp.eq.s32.totalorder %s87, 1
    %p262 = por %p260, %p261
    %p264 = scmp.ne.s32.totalorder %s249, %s263
    %p265 = scmp.eq.s32.totalorder %s87, 0
    %p266 = por %p264, %p265
    %s268 = sadd.s32 %s267, 1
    %p271 = scmp.eq.s32.totalorder %s81, 1
    %p272 = scmp.ne.s32.totalorder %s267, %s269
    %p273 = scmp.eq.s32.totalorder %s81, 0
    %p274 = por %p272, %p273
    %p275 = scmp.ne.s32.totalorder %s267, %s269
    %p276 = scmp.eq.s32.totalorder %s86, 1
    %p277 = por %p275, %p276
    %p278 = scmp.ne.s32.totalorder %s269, %s270
    %p279 = scmp.eq.s32.totalorder %s86, 0
    %p280 = por %p278, %p279
    %p281 = scmp.ne.s32.totalorder %s269, %s270
    %p282 = scmp.eq.s32.totalorder %s87, 1
    %p283 = por %p281, %p282
    %p285 = scmp.ne.s32.totalorder %s270, %s284
    %p286 = scmp.eq.s32.totalorder %s87, 0
    %p287 = por %p285, %p286
    %s289 = sadd.s32 %s288, 1
    %p292 = scmp.eq.s32.totalorder %s81, 1
    %p293 = scmp.ne.s32.totalorder %s288, %s290
    %p294 = scmp.eq.s32.totalorder %s81, 0
    %p295 = por %p293, %p294
    %p296 = scmp.ne.s32.totalorder %s288, %s290
    %p297 = scmp.eq.s32.totalorder %s86, 1
    %p298 = por %p296, %p297
    %p299 = scmp.ne.s32.totalorder %s290, %s291
    %p300 = scmp.eq.s32.totalorder %s86, 0
    %p301 = por %p299, %p300
    %p302 = scmp.ne.s32.totalorder %s290, %s291
    %p303 = scmp.eq.s32.totalorder %s87, 1
    %p304 = por %p302, %p303
    %p306 = scmp.ne.s32.totalorder %s291, %s305
    %p307 = scmp.eq.s32.totalorder %s87, 0
    %p308 = por %p306, %p307
    %s310 = sadd.s32 %s309, 1
    %p313 = scmp.eq.s32.totalorder %s81, 1
    %p314 = scmp.ne.s32.totalorder %s309, %s311
    %p315 = scmp.eq.s32.totalorder %s81, 0
    %p316 = por %p314, %p315
    %p317 = scmp.ne.s32.totalorder %s309, %s311
    %p318 = scmp.eq.s32.totalorder %s86, 1
    %p319 = por %p317, %p318
    %p320 = scmp.ne.s32.totalorder %s311, %s312
    %p321 = scmp.eq.s32.totalorder %s86, 0
    %p322 = por %p320, %p321
    %p323 = scmp.ne.s32.totalorder %s311, %s312
    %p324 = scmp.eq.s32.totalorder %s87, 1
    %p325 = por %p323, %p324
    %p327 = scmp.ne.s32.totalorder %s312, %s326
    %p328 = scmp.eq.s32.totalorder %s87, 0
    %p329 = por %p327, %p328
    %s331 = sadd.s32 %s330, 1
    %p334 = scmp.eq.s32.totalorder %s81, 1
    %p335 = scmp.ne.s32.totalorder %s330, %s332
    %p336 = scmp.eq.s32.totalorder %s81, 0
    %p337 = por %p335, %p336
    %p338 = scmp.ne.s32.totalorder %s330, %s332
    %p339 = scmp.eq.s32.totalorder %s86, 1
    %p340 = por %p338, %p339
    %p341 = scmp.ne.s32.totalorder %s332, %s333
    %p342 = scmp.eq.s32.totalorder %s86, 0
    %p343 = por %p341, %p342
    %p344 = scmp.ne.s32.totalorder %s332, %s333
    %p345 = scmp.eq.s32.totalorder %s87, 1
    %p346 = por %p344, %p345
    %p348 = scmp.ne.s32.totalorder %s333, %s347
    %p349 = scmp.eq.s32.totalorder %s87, 0
    %p350 = por %p348, %p349
    %s352 = sadd.s32 %s351, 1
    %p355 = scmp.eq.s32.totalorder %s81, 1
    %p356 = scmp.ne.s32.totalorder %s351, %s353
    %p357 = scmp.eq.s32.totalorder %s81, 0
    %p358 = por %p356, %p357
    %p359 = scmp.ne.s32.totalorder %s351, %s353
    %p360 = scmp.eq.s32.totalorder %s86, 1
    %p361 = por %p359, %p360
    %p362 = scmp.ne.s32.totalorder %s353, %s354
    %p363 = scmp.eq.s32.totalorder %s86, 0
    %p364 = por %p362, %p363
    %p365 = scmp.ne.s32.totalorder %s353, %s354
    %p366 = scmp.eq.s32.totalorder %s87, 1
    %p367 = por %p365, %p366
    %p369 = scmp.ne.s32.totalorder %s354, %s368
    %p370 = scmp.eq.s32.totalorder %s87, 0
    %p371 = por %p369, %p370
    %s373 = sadd.s32 %s372, 1
    %p376 = scmp.eq.s32.totalorder %s81, 1
    %p377 = scmp.ne.s32.totalorder %s372, %s374
    %p378 = scmp.eq.s32.totalorder %s81, 0
    %p379 = por %p377, %p378
    %p380 = scmp.ne.s32.totalorder %s372, %s374
    %p381 = scmp.eq.s32.totalorder %s86, 1
    %p382 = por %p380, %p381
    %p383 = scmp.ne.s32.totalorder %s374, %s375
    %p384 = scmp.eq.s32.totalorder %s86, 0
    %p385 = por %p383, %p384
    %p386 = scmp.ne.s32.totalorder %s374, %s375
    %p387 = scmp.eq.s32.totalorder %s87, 1
    %p388 = por %p386, %p387
    %p390 = scmp.ne.s32.totalorder %s375, %s389
    %p391 = scmp.eq.s32.totalorder %s87, 0
    %p392 = por %p390, %p391
    %s394 = sadd.s32 %s393, 1
    %p397 = scmp.eq.s32.totalorder %s81, 1
    %p398 = scmp.ne.s32.totalorder %s393, %s395
    %p399 = scmp.eq.s32.totalorder %s81, 0
    %p400 = por %p398, %p399
    %p401 = scmp.ne.s32.totalorder %s393, %s395
    %p402 = scmp.eq.s32.totalorder %s86, 1
    %p403 = por %p401, %p402
    %p404 = scmp.ne.s32.totalorder %s395, %s396
    %p405 = scmp.eq.s32.totalorder %s86, 0
    %p406 = por %p404, %p405
    %p407 = scmp.ne.s32.totalorder %s395, %s396
    %p408 = scmp.eq.s32.totalorder %s87, 1
    %p409 = por %p407, %p408
    %p411 = scmp.ne.s32.totalorder %s396, %s410
    %p412 = scmp.eq.s32.totalorder %s87, 0
    %p413 = por %p411, %p412
    %s415 = sadd.s32 %s414, 1
    %p418 = scmp.eq.s32.totalorder %s81, 1
    %p419 = scmp.ne.s32.totalorder %s414, %s416
    %p420 = scmp.eq.s32.totalorder %s81, 0
    %p421 = por %p419, %p420
    %p422 = scmp.ne.s32.totalorder %s414, %s416
    %p423 = scmp.eq.s32.totalorder %s86, 1
    %p424 = por %p422, %p423
    %p425 = scmp.ne.s32.totalorder %s416, %s417
    %p426 = scmp.eq.s32.totalorder %s86, 0
    %p427 = por %p425, %p426
    %p428 = scmp.ne.s32.totalorder %s416, %s417
    %p429 = scmp.eq.s32.totalorder %s87, 1
    %p430 = por %p428, %p429
    %p432 = scmp.ne.s32.totalorder %s417, %s431
    %p433 = scmp.eq.s32.totalorder %s87, 0
    %p434 = por %p432, %p433
    %s436 = sadd.s32 %s435, 1
    %p439 = scmp.eq.s32.totalorder %s81, 1
    %p440 = scmp.ne.s32.totalorder %s435, %s437
    %p441 = scmp.eq.s32.totalorder %s81, 0
    %p442 = por %p440, %p441
    %p443 = scmp.ne.s32.totalorder %s435, %s437
    %p444 = scmp.eq.s32.totalorder %s86, 1
    %p445 = por %p443, %p444
    %p446 = scmp.ne.s32.totalorder %s437, %s438
    %p447 = scmp.eq.s32.totalorder %s86, 0
    %p448 = por %p446, %p447
    %p449 = scmp.ne.s32.totalorder %s437, %s438
    %p450 = scmp.eq.s32.totalorder %s87, 1
    %p451 = por %p449, %p450
    %p453 = scmp.ne.s32.totalorder %s438, %s452
    %p454 = scmp.eq.s32.totalorder %s87, 0
    %p455 = por %p453, %p454
    %s457 = sadd.s32 %s456, 1
    %p460 = scmp.eq.s32.totalorder %s81, 1
    %p461 = scmp.ne.s32.totalorder %s456, %s458
    %p462 = scmp.eq.s32.totalorder %s81, 0
    %p463 = por %p461, %p462
    %p464 = scmp.ne.s32.totalorder %s456, %s458
    %p465 = scmp.eq.s32.totalorder %s86, 1
    %p466 = por %p464, %p465
    %p467 = scmp.ne.s32.totalorder %s458, %s459
    %p468 = scmp.eq.s32.totalorder %s86, 0
    %p469 = por %p467, %p468
    %p470 = scmp.ne.s32.totalorder %s458, %s459
    %p471 = scmp.eq.s32.totalorder %s87, 1
    %p472 = por %p470, %p471
    %p474 = scmp.ne.s32.totalorder %s459, %s473
    %p475 = scmp.eq.s32.totalorder %s87, 0
    %p476 = por %p474, %p475
    %s478 = sadd.s32 %s477, 1
    %p481 = scmp.eq.s32.totalorder %s81, 1
    %p482 = scmp.ne.s32.totalorder %s477, %s479
    %p483 = scmp.eq.s32.totalorder %s81, 0
    %p484 = por %p482, %p483
    %p485 = scmp.ne.s32.totalorder %s477, %s479
    %p486 = scmp.eq.s32.totalorder %s86, 1
    %p487 = por %p485, %p486
    %p488 = scmp.ne.s32.totalorder %s479, %s480
    %p489 = scmp.eq.s32.totalorder %s86, 0
    %p490 = por %p488, %p489
    %p491 = scmp.ne.s32.totalorder %s479, %s480
    %p492 = scmp.eq.s32.totalorder %s87, 1
    %p493 = por %p491, %p492
    %p495 = scmp.ne.s32.totalorder %s480, %s494
    %p496 = scmp.eq.s32.totalorder %s87, 0
    %p497 = por %p495, %p496
    %s499 = sadd.s32 %s498, 1
    %p502 = scmp.eq.s32.totalorder %s81, 1
    %p503 = scmp.ne.s32.totalorder %s498, %s500
    %p504 = scmp.eq.s32.totalorder %s81, 0
    %p505 = por %p503, %p504
    %p506 = scmp.ne.s32.totalorder %s498, %s500
    %p507 = scmp.eq.s32.totalorder %s86, 1
    %p508 = por %p506, %p507
    %p509 = scmp.ne.s32.totalorder %s500, %s501
    %p510 = scmp.eq.s32.totalorder %s86, 0
    %p511 = por %p509, %p510
    %p512 = scmp.ne.s32.totalorder %s500, %s501
    %p513 = scmp.eq.s32.totalorder %s87, 1
    %p514 = por %p512, %p513
    %p516 = scmp.ne.s32.totalorder %s501, %s515
    %p517 = scmp.eq.s32.totalorder %s87, 0
    %p518 = por %p516, %p517
    %s520 = sadd.s32 %s519, 1
    %p523 = scmp.eq.s32.totalorder %s81, 1
    %p524 = scmp.ne.s32.totalorder %s519, %s521
    %p525 = scmp.eq.s32.totalorder %s81, 0
    %p526 = por %p524, %p525
    %p527 = scmp.ne.s32.totalorder %s519, %s521
    %p528 = scmp.eq.s32.totalorder %s86, 1
    %p529 = por %p527, %p528
    %p530 = scmp.ne.s32.totalorder %s521, %s522
    %p531 = scmp.eq.s32.totalorder %s86, 0
    %p532 = por %p530, %p531
    %p533 = scmp.ne.s32.totalorder %s521, %s522
    %p534 = scmp.eq.s32.totalorder %s87, 1
    %p535 = por %p533, %p534
    %p537 = scmp.ne.s32.totalorder %s522, %s536
    %p538 = scmp.eq.s32.totalorder %s87, 0
    %p539 = por %p537, %p538
    %s541 = sadd.s32 %s540, 1
    %p544 = scmp.eq.s32.totalorder %s81, 1
    %p545 = scmp.ne.s32.totalorder %s540, %s542
    %p546 = scmp.eq.s32.totalorder %s81, 0
    %p547 = por %p545, %p546
    %p548 = scmp.ne.s32.totalorder %s540, %s542
    %p549 = scmp.eq.s32.totalorder %s86, 1
    %p550 = por %p548, %p549
    %p551 = scmp.ne.s32.totalorder %s542, %s543
    %p552 = scmp.eq.s32.totalorder %s86, 0
    %p553 = por %p551, %p552
    %p554 = scmp.ne.s32.totalorder %s542, %s543
    %p555 = scmp.eq.s32.totalorder %s87, 1
    %p556 = por %p554, %p555
    %p558 = scmp.ne.s32.totalorder %s543, %s557
    %p559 = scmp.eq.s32.totalorder %s87, 0
    %p560 = por %p558, %p559
    %s562 = sadd.s32 %s561, 1
    %p565 = scmp.eq.s32.totalorder %s81, 1
    %p566 = scmp.ne.s32.totalorder %s561, %s563
    %p567 = scmp.eq.s32.totalorder %s81, 0
    %p568 = por %p566, %p567
    %p569 = scmp.ne.s32.totalorder %s561, %s563
    %p570 = scmp.eq.s32.totalorder %s86, 1
    %p571 = por %p569, %p570
    %p572 = scmp.ne.s32.totalorder %s563, %s564
    %p573 = scmp.eq.s32.totalorder %s86, 0
    %p574 = por %p572, %p573
    %p575 = scmp.ne.s32.totalorder %s563, %s564
    %p576 = scmp.eq.s32.totalorder %s87, 1
    %p577 = por %p575, %p576
    %p579 = scmp.ne.s32.totalorder %s564, %s578
    %p580 = scmp.eq.s32.totalorder %s87, 0
    %p581 = por %p579, %p580
    %s583 = sadd.s32 %s582, 1
    %p586 = scmp.eq.s32.totalorder %s81, 1
    %p587 = scmp.ne.s32.totalorder %s582, %s584
    %p588 = scmp.eq.s32.totalorder %s81, 0
    %p589 = por %p587, %p588
    %p590 = scmp.ne.s32.totalorder %s582, %s584
    %p591 = scmp.eq.s32.totalorder %s86, 1
    %p592 = por %p590, %p591
    %p593 = scmp.ne.s32.totalorder %s584, %s585
    %p594 = scmp.eq.s32.totalorder %s86, 0
    %p595 = por %p593, %p594
    %p596 = scmp.ne.s32.totalorder %s584, %s585
    %p597 = scmp.eq.s32.totalorder %s87, 1
    %p598 = por %p596, %p597
    %p600 = scmp.ne.s32.totalorder %s585, %s599
    %p601 = scmp.eq.s32.totalorder %s87, 0
    %p602 = por %p600, %p601
    %s604 = sadd.s32 %s603, 1
    %p607 = scmp.eq.s32.totalorder %s81, 1
    %p608 = scmp.ne.s32.totalorder %s603, %s605
    %p609 = scmp.eq.s32.totalorder %s81, 0
    %p610 = por %p608, %p609
    %p611 = scmp.ne.s32.totalorder %s603, %s605
    %p612 = scmp.eq.s32.totalorder %s86, 1
    %p613 = por %p611, %p612
    %p614 = scmp.ne.s32.totalorder %s605, %s606
    %p615 = scmp.eq.s32.totalorder %s86, 0
    %p616 = por %p614, %p615
    %p617 = scmp.ne.s32.totalorder %s605, %s606
    %p618 = scmp.eq.s32.totalorder %s87, 1
    %p619 = por %p617, %p618
    %p621 = scmp.ne.s32.totalorder %s606, %s620
    %p622 = scmp.eq.s32.totalorder %s87, 0
    %p623 = por %p621, %p622
    %s625 = sadd.s32 %s624, 1
    %p628 = scmp.eq.s32.totalorder %s81, 1
    %p629 = scmp.ne.s32.totalorder %s624, %s626
    %p630 = scmp.eq.s32.totalorder %s81, 0
    %p631 = por %p629, %p630
    %p632 = scmp.ne.s32.totalorder %s624, %s626
    %p633 = scmp.eq.s32.totalorder %s86, 1
    %p634 = por %p632, %p633
    %p635 = scmp.ne.s32.totalorder %s626, %s627
    %p636 = scmp.eq.s32.totalorder %s86, 0
    %p637 = por %p635, %p636
    %p638 = scmp.ne.s32.totalorder %s626, %s627
    %p639 = scmp.eq.s32.totalorder %s87, 1
    %p640 = por %p638, %p639
    %p642 = scmp.ne.s32.totalorder %s627, %s641
    %p643 = scmp.eq.s32.totalorder %s87, 0
    %p644 = por %p642, %p643
    %s646 = sadd.s32 %s645, 1
    %p649 = scmp.eq.s32.totalorder %s81, 1
    %p650 = scmp.ne.s32.totalorder %s645, %s647
    %p651 = scmp.eq.s32.totalorder %s81, 0
    %p652 = por %p650, %p651
    %p653 = scmp.ne.s32.totalorder %s645, %s647
    %p654 = scmp.eq.s32.totalorder %s86, 1
    %p655 = por %p653, %p654
    %p656 = scmp.ne.s32.totalorder %s647, %s648
    %p657 = scmp.eq.s32.totalorder %s86, 0
    %p658 = por %p656, %p657
    %p659 = scmp.ne.s32.totalorder %s647, %s648
    %p660 = scmp.eq.s32.totalorder %s87, 1
    %p661 = por %p659, %p660
    %p663 = scmp.ne.s32.totalorder %s648, %s662
    %p664 = scmp.eq.s32.totalorder %s87, 0
    %p665 = por %p663, %p664
    %s667 = sadd.s32 %s666, 1
    %p670 = scmp.eq.s32.totalorder %s81, 1
    %p671 = scmp.ne.s32.totalorder %s666, %s668
    %p672 = scmp.eq.s32.totalorder %s81, 0
    %p673 = por %p671, %p672
    %p674 = scmp.ne.s32.totalorder %s666, %s668
    %p675 = scmp.eq.s32.totalorder %s86, 1
    %p676 = por %p674, %p675
    %p677 = scmp.ne.s32.totalorder %s668, %s669
    %p678 = scmp.eq.s32.totalorder %s86, 0
    %p679 = por %p677, %p678
    %p680 = scmp.ne.s32.totalorder %s668, %s669
    %p681 = scmp.eq.s32.totalorder %s87, 1
    %p682 = por %p680, %p681
    %p684 = scmp.ne.s32.totalorder %s669, %s683
    %p685 = scmp.eq.s32.totalorder %s87, 0
    %p686 = por %p684, %p685
    %s688 = sadd.s32 %s687, 1
    %p691 = scmp.eq.s32.totalorder %s81, 1
    %p692 = scmp.ne.s32.totalorder %s687, %s689
    %p693 = scmp.eq.s32.totalorder %s81, 0
    %p694 = por %p692, %p693
    %p695 = scmp.ne.s32.totalorder %s687, %s689
    %p696 = scmp.eq.s32.totalorder %s86, 1
    %p697 = por %p695, %p696
    %p698 = scmp.ne.s32.totalorder %s689, %s690
    %p699 = scmp.eq.s32.totalorder %s86, 0
    %p700 = por %p698, %p699
    %p701 = scmp.ne.s32.totalorder %s689, %s690
    %p702 = scmp.eq.s32.totalorder %s87, 1
    %p703 = por %p701, %p702
    %p705 = scmp.ne.s32.totalorder %s690, %s704
    %p706 = scmp.eq.s32.totalorder %s87, 0
    %p707 = por %p705, %p706
    %s709 = sadd.s32 %s708, 1
    %p712 = scmp.eq.s32.totalorder %s81, 1
    %p713 = scmp.ne.s32.totalorder %s708, %s710
    %p714 = scmp.eq.s32.totalorder %s81, 0
    %p715 = por %p713, %p714
    %p716 = scmp.ne.s32.totalorder %s708, %s710
    %p717 = scmp.eq.s32.totalorder %s86, 1
    %p718 = por %p716, %p717
    %p719 = scmp.ne.s32.totalorder %s710, %s711
    %p720 = scmp.eq.s32.totalorder %s86, 0
    %p721 = por %p719, %p720
    %p722 = scmp.ne.s32.totalorder %s710, %s711
    %p723 = scmp.eq.s32.totalorder %s87, 1
    %p724 = por %p722, %p723
    %p726 = scmp.ne.s32.totalorder %s711, %s725
    %p727 = scmp.eq.s32.totalorder %s87, 0
    %p728 = por %p726, %p727
    %s730 = sadd.s32 %s729, 1
    %p733 = scmp.eq.s32.totalorder %s81, 1
    %p734 = scmp.ne.s32.totalorder %s729, %s731
    %p735 = scmp.eq.s32.totalorder %s81, 0
    %p736 = por %p734, %p735
    %p737 = scmp.ne.s32.totalorder %s729, %s731
    %p738 = scmp.eq.s32.totalorder %s86, 1
    %p739 = por %p737, %p738
    %p740 = scmp.ne.s32.totalorder %s731, %s732
    %p741 = scmp.eq.s32.totalorder %s86, 0
    %p742 = por %p740, %p741
    %p743 = scmp.ne.s32.totalorder %s731, %s732
    %p744 = scmp.eq.s32.totalorder %s87, 1
    %p745 = por %p743, %p744
    %p747 = scmp.ne.s32.totalorder %s732, %s746
    %p748 = scmp.eq.s32.totalorder %s87, 0
    %p749 = por %p747, %p748
    %s751 = sadd.s32 %s750, 1
    %p754 = scmp.eq.s32.totalorder %s81, 1
    %p755 = scmp.ne.s32.totalorder %s750, %s752
    %p756 = scmp.eq.s32.totalorder %s81, 0
    %p757 = por %p755, %p756
    %p758 = scmp.ne.s32.totalorder %s750, %s752
    %p759 = scmp.eq.s32.totalorder %s86, 1
    %p760 = por %p758, %p759
    %p761 = scmp.ne.s32.totalorder %s752, %s753
    %p762 = scmp.eq.s32.totalorder %s86, 0
    %p763 = por %p761, %p762
    %p764 = scmp.ne.s32.totalorder %s752, %s753
    %p765 = scmp.eq.s32.totalorder %s87, 1
    %p766 = por %p764, %p765
    %p768 = scmp.ne.s32.totalorder %s753, %s767
    %p769 = scmp.eq.s32.totalorder %s87, 0
    %p770 = por %p768, %p769
    %s772 = sadd.s32 %s771, 1
    %p775 = scmp.eq.s32.totalorder %s81, 1
    %p776 = scmp.ne.s32.totalorder %s771, %s773
    %p777 = scmp.eq.s32.totalorder %s81, 0
    %p778 = por %p776, %p777
    %p779 = scmp.ne.s32.totalorder %s771, %s773
    %p780 = scmp.eq.s32.totalorder %s86, 1
    %p781 = por %p779, %p780
    %p782 = scmp.ne.s32.totalorder %s773, %s774
    %p783 = scmp.eq.s32.totalorder %s86, 0
    %p784 = por %p782, %p783
    %p785 = scmp.ne.s32.totalorder %s773, %s774
    %p786 = scmp.eq.s32.totalorder %s87, 1
    %p787 = por %p785, %p786
    %p789 = scmp.ne.s32.totalorder %s774, %s788
    %p790 = scmp.eq.s32.totalorder %s87, 0
    %p791 = por %p789, %p790
    %s793 = sadd.s32 %s792, 1
    %p796 = scmp.eq.s32.totalorder %s81, 1
    %p797 = scmp.ne.s32.totalorder %s792, %s794
    %p798 = scmp.eq.s32.totalorder %s81, 0
    %p799 = por %p797, %p798
    %p800 = scmp.ne.s32.totalorder %s792, %s794
    %p801 = scmp.eq.s32.totalorder %s86, 1
    %p802 = por %p800, %p801
    %p803 = scmp.ne.s32.totalorder %s794, %s795
    %p804 = scmp.eq.s32.totalorder %s86, 0
    %p805 = por %p803, %p804
    %p806 = scmp.ne.s32.totalorder %s794, %s795
    %p807 = scmp.eq.s32.totalorder %s87, 1
    %p808 = por %p806, %p807
    %p810 = scmp.ne.s32.totalorder %s795, %s809
    %p811 = scmp.eq.s32.totalorder %s87, 0
    %p812 = por %p810, %p811
    %s814 = sadd.s32 %s813, 1
    %p817 = scmp.eq.s32.totalorder %s81, 1
    %p818 = scmp.ne.s32.totalorder %s813, %s815
    %p819 = scmp.eq.s32.totalorder %s81, 0
    %p820 = por %p818, %p819
    %p821 = scmp.ne.s32.totalorder %s813, %s815
    %p822 = scmp.eq.s32.totalorder %s86, 1
    %p823 = por %p821, %p822
    %p824 = scmp.ne.s32.totalorder %s815, %s816
    %p825 = scmp.eq.s32.totalorder %s86, 0
    %p826 = por %p824, %p825
    %p827 = scmp.ne.s32.totalorder %s815, %s816
    %p828 = scmp.eq.s32.totalorder %s87, 1
    %p829 = por %p827, %p828
    %p831 = scmp.ne.s32.totalorder %s816, %s830
    %p832 = scmp.eq.s32.totalorder %s87, 0
    %p833 = por %p831, %p832
    %s834 = ssub.s32 %s81, %s88
    %p835 = scmp.eq.s32.totalorder %s834, 0
    %s837 = sadd.s32 %s836, 1
    %s838 = scalar_select %p835, %s836, %s837
    %p841 = pneg %p835
    %p842 = scmp.eq.s32.totalorder %s81, 1
    %p843 = por %p841, %p842
    %p844 = scmp.ne.s32.totalorder %s836, %s839
    %p845 = scmp.eq.s32.totalorder %s81, 0
    %p846 = por %p844, %p845
    %p847 = scmp.ne.s32.totalorder %s836, %s839
    %p848 = scmp.eq.s32.totalorder %s86, 1
    %p849 = por %p847, %p848
    %p850 = scmp.ne.s32.totalorder %s839, %s840
    %p851 = scmp.eq.s32.totalorder %s86, 0
    %p852 = por %p850, %p851
    %p853 = scmp.ne.s32.totalorder %s839, %s840
    %p854 = scmp.eq.s32.totalorder %s87, 1
    %p855 = por %p853, %p854
    %p857 = scmp.ne.s32.totalorder %s840, %s856
    %p858 = scmp.eq.s32.totalorder %s87, 0
    %p859 = por %p857, %p858
    %p860 = scmp.le.s32.totalorder 1, %s81
    %p861 = scmp.lt.s32.totalorder %s81, 3
    %p862 = pnand %p860, %p861
    %p863 = pneg %p862
    // Predicated region
    $region9: #{tpu_custom_call.1} parent=5 // pred_check
      _
    $region10: #{tpu_custom_call.1} parent=5 // pred_check_branch
      %865 = sbr.rel (%p862) target = $region12
    $region11: #{tpu_custom_call.1} parent=5 // pred_region
      %s866 = ssub.s32 %s81, 1
      // Predicated region
      $region13: #{tpu_custom_call.1} parent=11 // pred_check
        %p867 = pneg %p154
      $region14: #{tpu_custom_call.1} parent=11 // pred_check_branch
        %869 = sbr.rel (%p867) target = $region16
      $region15: #{tpu_custom_call.1} parent=11 // pred_region
        _
      $region16: #{tpu_custom_call.1} parent=11 // pred_fallthru
        _
      // Predicated region
      $region17: #{tpu_custom_call.1} parent=11 // pred_check
        %p870 = pneg %p175
      $region18: #{tpu_custom_call.1} parent=11 // pred_check_branch
        %872 = sbr.rel (%p870) target = $region20
      $region19: #{tpu_custom_call.1} parent=11 // pred_region
        _
      $region20: #{tpu_custom_call.1} parent=11 // pred_fallthru
        _
      // Predicated region
      $region21: #{tpu_custom_call.1} parent=11 // pred_check
        %p873 = pneg %p196
      $region22: #{tpu_custom_call.1} parent=11 // pred_check_branch
        %875 = sbr.rel (%p873) target = $region24
      $region23: #{tpu_custom_call.1} parent=11 // pred_region
        _
      $region24: #{tpu_custom_call.1} parent=11 // pred_fallthru
        _
      // Predicated region
      $region25: #{tpu_custom_call.1} parent=11 // pred_check
        %p876 = pneg %p217
      $region26: #{tpu_custom_call.1} parent=11 // pred_check_branch
        %878 = sbr.rel (%p876) target = $region28
      $region27: #{tpu_custom_call.1} parent=11 // pred_region
        _
      $region28: #{tpu_custom_call.1} parent=11 // pred_fallthru
        _
      // Predicated region
      $region29: #{tpu_custom_call.1} parent=11 // pred_check
        %p879 = pneg %p238
      $region30: #{tpu_custom_call.1} parent=11 // pred_check_branch
        %881 = sbr.rel (%p879) target = $region32
      $region31: #{tpu_custom_call.1} parent=11 // pred_region
        _
      $region32: #{tpu_custom_call.1} parent=11 // pred_fallthru
        _
      // Predicated region
      $region33: #{tpu_custom_call.1} parent=11 // pred_check
        %p882 = pneg %p259
      $region34: #{tpu_custom_call.1} parent=11 // pred_check_branch
        %884 = sbr.rel (%p882) target = $region36
      $region35: #{tpu_custom_call.1} parent=11 // pred_region
        _
      $region36: #{tpu_custom_call.1} parent=11 // pred_fallthru
        _
      // Predicated region
      $region37: #{tpu_custom_call.1} parent=11 // pred_check
        %p885 = pneg %p280
      $region38: #{tpu_custom_call.1} parent=11 // pred_check_branch
        %887 = sbr.rel (%p885) target = $region40
      $region39: #{tpu_custom_call.1} parent=11 // pred_region
        _
      $region40: #{tpu_custom_call.1} parent=11 // pred_fallthru
        _
      // Predicated region
      $region41: #{tpu_custom_call.1} parent=11 // pred_check
        %p888 = pneg %p301
      $region42: #{tpu_custom_call.1} parent=11 // pred_check_branch
        %890 = sbr.rel (%p888) target = $region44
      $region43: #{tpu_custom_call.1} parent=11 // pred_region
        _
      $region44: #{tpu_custom_call.1} parent=11 // pred_fallthru
        _
      // Predicated region
      $region45: #{tpu_custom_call.1} parent=11 // pred_check
        %p891 = pneg %p322
      $region46: #{tpu_custom_call.1} parent=11 // pred_check_branch
        %893 = sbr.rel (%p891) target = $region48
      $region47: #{tpu_custom_call.1} parent=11 // pred_region
        _
      $region48: #{tpu_custom_call.1} parent=11 // pred_fallthru
        _
      // Predicated region
      $region49: #{tpu_custom_call.1} parent=11 // pred_check
        %p894 = pneg %p343
      $region50: #{tpu_custom_call.1} parent=11 // pred_check_branch
        %896 = sbr.rel (%p894) target = $region52
      $region51: #{tpu_custom_call.1} parent=11 // pred_region
        _
      $region52: #{tpu_custom_call.1} parent=11 // pred_fallthru
        _
      // Predicated region
      $region53: #{tpu_custom_call.1} parent=11 // pred_check
        %p897 = pneg %p364
      $region54: #{tpu_custom_call.1} parent=11 // pred_check_branch
        %899 = sbr.rel (%p897) target = $region56
      $region55: #{tpu_custom_call.1} parent=11 // pred_region
        _
      $region56: #{tpu_custom_call.1} parent=11 // pred_fallthru
        _
      // Predicated region
      $region57: #{tpu_custom_call.1} parent=11 // pred_check
        %p900 = pneg %p385
      $region58: #{tpu_custom_call.1} parent=11 // pred_check_branch
        %902 = sbr.rel (%p900) target = $region60
      $region59: #{tpu_custom_call.1} parent=11 // pred_region
        _
      $region60: #{tpu_custom_call.1} parent=11 // pred_fallthru
        _
      // Predicated region
      $region61: #{tpu_custom_call.1} parent=11 // pred_check
        %p903 = pneg %p406
      $region62: #{tpu_custom_call.1} parent=11 // pred_check_branch
        %905 = sbr.rel (%p903) target = $region64
      $region63: #{tpu_custom_call.1} parent=11 // pred_region
        _
      $region64: #{tpu_custom_call.1} parent=11 // pred_fallthru
        _
      // Predicated region
      $region65: #{tpu_custom_call.1} parent=11 // pred_check
        %p906 = pneg %p427
      $region66: #{tpu_custom_call.1} parent=11 // pred_check_branch
        %908 = sbr.rel (%p906) target = $region68
      $region67: #{tpu_custom_call.1} parent=11 // pred_region
        _
      $region68: #{tpu_custom_call.1} parent=11 // pred_fallthru
        _
      // Predicated region
      $region69: #{tpu_custom_call.1} parent=11 // pred_check
        %p909 = pneg %p448
      $region70: #{tpu_custom_call.1} parent=11 // pred_check_branch
        %911 = sbr.rel (%p909) target = $region72
      $region71: #{tpu_custom_call.1} parent=11 // pred_region
        _
      $region72: #{tpu_custom_call.1} parent=11 // pred_fallthru
        _
      // Predicated region
      $region73: #{tpu_custom_call.1} parent=11 // pred_check
        %p912 = pneg %p469
      $region74: #{tpu_custom_call.1} parent=11 // pred_check_branch
        %914 = sbr.rel (%p912) target = $region76
      $region75: #{tpu_custom_call.1} parent=11 // pred_region
        _
      $region76: #{tpu_custom_call.1} parent=11 // pred_fallthru
        _
      // Predicated region
      $region77: #{tpu_custom_call.1} parent=11 // pred_check
        %p915 = pneg %p490
      $region78: #{tpu_custom_call.1} parent=11 // pred_check_branch
        %917 = sbr.rel (%p915) target = $region80
      $region79: #{tpu_custom_call.1} parent=11 // pred_region
        _
      $region80: #{tpu_custom_call.1} parent=11 // pred_fallthru
        _
      // Predicated region
      $region81: #{tpu_custom_call.1} parent=11 // pred_check
        %p918 = pneg %p511
      $region82: #{tpu_custom_call.1} parent=11 // pred_check_branch
        %920 = sbr.rel (%p918) target = $region84
      $region83: #{tpu_custom_call.1} parent=11 // pred_region
        _
      $region84: #{tpu_custom_call.1} parent=11 // pred_fallthru
        _
      // Predicated region
      $region85: #{tpu_custom_call.1} parent=11 // pred_check
        %p921 = pneg %p532
      $region86: #{tpu_custom_call.1} parent=11 // pred_check_branch
        %923 = sbr.rel (%p921) target = $region88
      $region87: #{tpu_custom_call.1} parent=11 // pred_region
        _
      $region88: #{tpu_custom_call.1} parent=11 // pred_fallthru
        _
      // Predicated region
      $region89: #{tpu_custom_call.1} parent=11 // pred_check
        %p924 = pneg %p553
      $region90: #{tpu_custom_call.1} parent=11 // pred_check_branch
        %926 = sbr.rel (%p924) target = $region92
      $region91: #{tpu_custom_call.1} parent=11 // pred_region
        _
      $region92: #{tpu_custom_call.1} parent=11 // pred_fallthru
        _
      // Predicated region
      $region93: #{tpu_custom_call.1} parent=11 // pred_check
        %p927 = pneg %p574
      $region94: #{tpu_custom_call.1} parent=11 // pred_check_branch
        %929 = sbr.rel (%p927) target = $region96
      $region95: #{tpu_custom_call.1} parent=11 // pred_region
        _
      $region96: #{tpu_custom_call.1} parent=11 // pred_fallthru
        _
      // Predicated region
      $region97: #{tpu_custom_call.1} parent=11 // pred_check
        %p930 = pneg %p595
      $region98: #{tpu_custom_call.1} parent=11 // pred_check_branch
        %932 = sbr.rel (%p930) target = $region100
      $region99: #{tpu_custom_call.1} parent=11 // pred_region
        _
      $region100: #{tpu_custom_call.1} parent=11 // pred_fallthru
        _
      // Predicated region
      $region101: #{tpu_custom_call.1} parent=11 // pred_check
        %p933 = pneg %p616
      $region102: #{tpu_custom_call.1} parent=11 // pred_check_branch
        %935 = sbr.rel (%p933) target = $region104
      $region103: #{tpu_custom_call.1} parent=11 // pred_region
        _
      $region104: #{tpu_custom_call.1} parent=11 // pred_fallthru
        _
      // Predicated region
      $region105: #{tpu_custom_call.1} parent=11 // pred_check
        %p936 = pneg %p637
      $region106: #{tpu_custom_call.1} parent=11 // pred_check_branch
        %938 = sbr.rel (%p936) target = $region108
      $region107: #{tpu_custom_call.1} parent=11 // pred_region
        _
      $region108: #{tpu_custom_call.1} parent=11 // pred_fallthru
        _
      // Predicated region
      $region109: #{tpu_custom_call.1} parent=11 // pred_check
        %p939 = pneg %p658
      $region110: #{tpu_custom_call.1} parent=11 // pred_check_branch
        %941 = sbr.rel (%p939) target = $region112
      $region111: #{tpu_custom_call.1} parent=11 // pred_region
        _
      $region112: #{tpu_custom_call.1} parent=11 // pred_fallthru
        _
      // Predicated region
      $region113: #{tpu_custom_call.1} parent=11 // pred_check
        %p942 = pneg %p679
      $region114: #{tpu_custom_call.1} parent=11 // pred_check_branch
        %944 = sbr.rel (%p942) target = $region116
      $region115: #{tpu_custom_call.1} parent=11 // pred_region
        _
      $region116: #{tpu_custom_call.1} parent=11 // pred_fallthru
        _
      // Predicated region
      $region117: #{tpu_custom_call.1} parent=11 // pred_check
        %p945 = pneg %p700
      $region118: #{tpu_custom_call.1} parent=11 // pred_check_branch
        %947 = sbr.rel (%p945) target = $region120
      $region119: #{tpu_custom_call.1} parent=11 // pred_region
        _
      $region120: #{tpu_custom_call.1} parent=11 // pred_fallthru
        _
      // Predicated region
      $region121: #{tpu_custom_call.1} parent=11 // pred_check
        %p948 = pneg %p721
      $region122: #{tpu_custom_call.1} parent=11 // pred_check_branch
        %950 = sbr.rel (%p948) target = $region124
      $region123: #{tpu_custom_call.1} parent=11 // pred_region
        _
      $region124: #{tpu_custom_call.1} parent=11 // pred_fallthru
        _
      // Predicated region
      $region125: #{tpu_custom_call.1} parent=11 // pred_check
        %p951 = pneg %p742
      $region126: #{tpu_custom_call.1} parent=11 // pred_check_branch
        %953 = sbr.rel (%p951) target = $region128
      $region127: #{tpu_custom_call.1} parent=11 // pred_region
        _
      $region128: #{tpu_custom_call.1} parent=11 // pred_fallthru
        _
      // Predicated region
      $region129: #{tpu_custom_call.1} parent=11 // pred_check
        %p954 = pneg %p763
      $region130: #{tpu_custom_call.1} parent=11 // pred_check_branch
        %956 = sbr.rel (%p954) target = $region132
      $region131: #{tpu_custom_call.1} parent=11 // pred_region
        _
      $region132: #{tpu_custom_call.1} parent=11 // pred_fallthru
        _
      // Predicated region
      $region133: #{tpu_custom_call.1} parent=11 // pred_check
        %p957 = pneg %p784
      $region134: #{tpu_custom_call.1} parent=11 // pred_check_branch
        %959 = sbr.rel (%p957) target = $region136
      $region135: #{tpu_custom_call.1} parent=11 // pred_region
        _
      $region136: #{tpu_custom_call.1} parent=11 // pred_fallthru
        _
      // Predicated region
      $region137: #{tpu_custom_call.1} parent=11 // pred_check
        %p960 = pneg %p805
      $region138: #{tpu_custom_call.1} parent=11 // pred_check_branch
        %962 = sbr.rel (%p960) target = $region140
      $region139: #{tpu_custom_call.1} parent=11 // pred_region
        _
      $region140: #{tpu_custom_call.1} parent=11 // pred_fallthru
        _
      // Predicated region
      $region141: #{tpu_custom_call.1} parent=11 // pred_check
        %p963 = pneg %p826
      $region142: #{tpu_custom_call.1} parent=11 // pred_check_branch
        %965 = sbr.rel (%p963) target = $region144
      $region143: #{tpu_custom_call.1} parent=11 // pred_region
        _
      $region144: #{tpu_custom_call.1} parent=11 // pred_fallthru
        _
    $region12: #{tpu_custom_call.1} parent=5 // pred_fallthru
      _
    %p966 = scmp.lt.s32.totalorder %s81, 2
    // Predicated region
    $region145: #{tpu_custom_call.1} parent=5 // pred_check
      %p967 = pneg %p966
    $region146: #{tpu_custom_call.1} parent=5 // pred_check_branch
      %969 = sbr.rel (%p967) target = $region148
    $region147: #{tpu_custom_call.1} parent=5 // pred_region
      // Predicated region
      $region149: #{tpu_custom_call.1} parent=147 // pred_check
        %p970 = pneg %p101
      $region150: #{tpu_custom_call.1} parent=147 // pred_check_branch
        %972 = sbr.rel (%p970) target = $region152
      $region151: #{tpu_custom_call.1} parent=147 // pred_region
        %p973 = scmp.lt.s32.totalorder %s81, 1
        %s974 = scalar_select %p973, %s81, 1
        %s975 = smul.addr %s974, 8
        %s976 = scalar_lea.vmem %s1, %s975
      $region152: #{tpu_custom_call.1} parent=147 // pred_fallthru
        _
      // Predicated region
      $region153: #{tpu_custom_call.1} parent=147 // pred_check
        %p977 = pneg %p127
      $region154: #{tpu_custom_call.1} parent=147 // pred_check_branch
        %979 = sbr.rel (%p977) target = $region156
      $region155: #{tpu_custom_call.1} parent=147 // pred_region
        %p980 = scmp.lt.s32.totalorder %s81, 1
        %s981 = scalar_select %p980, %s81, 1
        %s982 = smul.addr %s981, 8
        %s983 = scalar_lea.vmem %s3, %s982
      $region156: #{tpu_custom_call.1} parent=147 // pred_fallthru
        _
    $region148: #{tpu_custom_call.1} parent=5 // pred_fallthru
      _
    %p984 = scmp.le.s32.totalorder 1, %s81
    %p985 = scmp.lt.s32.totalorder %s81, 3
    %p986 = pnand %p984, %p985
    %p987 = pneg %p986
    // Predicated region
    $region157: #{tpu_custom_call.1} parent=5 // pred_check
      _
    $region158: #{tpu_custom_call.1} parent=5 // pred_check_branch
      %989 = sbr.rel (%p986) target = $region160
    $region159: #{tpu_custom_call.1} parent=5 // pred_region
      %s990 = ssub.s32 %s81, 1
      %p991 = scmp.lt.s32.totalorder %s86, 1
      %s992 = scalar_select %p991, %s86, 1
      %s993 = smul.addr %s992, 8
      %s994 = scalar_lea.vmem %s1, %s993
      %p995 = pneg %p107
      %p996 = pneg %p104
      %p997 = scmp.lt.s32.totalorder %s86, 1
      %s998 = scalar_select %p997, %s86, 1
      %s999 = smul.addr %s998, 8
      %s1000 = scalar_lea.vmem %s3, %s999
      %p1001 = pneg %p133
      %p1002 = pneg %p130
      %p1003 = pneg %p154
      %p1004 = pneg %p151
      %p1005 = pneg %p175
      %p1006 = pneg %p172
      %p1007 = pneg %p196
      %p1008 = pneg %p193
      %p1009 = pneg %p217
      %p1010 = pneg %p214
      %p1011 = pneg %p238
      %p1012 = pneg %p235
      %p1013 = pneg %p259
      %p1014 = pneg %p256
      %p1015 = pneg %p280
      %p1016 = pneg %p277
      %p1017 = pneg %p301
      %p1018 = pneg %p298
      %p1019 = pneg %p322
      %p1020 = pneg %p319
      %p1021 = pneg %p343
      %p1022 = pneg %p340
      %p1023 = pneg %p364
      %p1024 = pneg %p361
      %p1025 = pneg %p385
      %p1026 = pneg %p382
      %p1027 = pneg %p406
      %p1028 = pneg %p403
      %p1029 = pneg %p427
      %p1030 = pneg %p424
      %p1031 = pneg %p448
      %p1032 = pneg %p445
      %p1033 = pneg %p469
      %p1034 = pneg %p466
      %p1035 = pneg %p490
      %p1036 = pneg %p487
      %p1037 = pneg %p511
      %p1038 = pneg %p508
      %p1039 = pneg %p532
      %p1040 = pneg %p529
      %p1041 = pneg %p553
      %p1042 = pneg %p550
      %p1043 = pneg %p574
      %p1044 = pneg %p571
      %p1045 = pneg %p595
      %p1046 = pneg %p592
      %p1047 = pneg %p616
      %p1048 = pneg %p613
      %p1049 = pneg %p637
      %p1050 = pneg %p634
      %p1051 = pneg %p658
      %p1052 = pneg %p655
      %p1053 = pneg %p679
      %p1054 = pneg %p676
      %p1055 = pneg %p700
      %p1056 = pneg %p697
      %p1057 = pneg %p721
      %p1058 = pneg %p718
      %p1059 = pneg %p742
      %p1060 = pneg %p739
      %p1061 = pneg %p763
      %p1062 = pneg %p760
      %p1063 = pneg %p784
      %p1064 = pneg %p781
      %p1065 = pneg %p805
      %p1066 = pneg %p802
      %p1067 = pneg %p826
      %p1068 = pneg %p823
      %p1069 = pneg %p852
      %p1070 = pneg %p849
      %p1071 = scmp.lt.s32.totalorder %s86, 1
      %s1072 = scalar_select %p1071, %s86, 1
      %s1073 = smul.addr %s1072, 8
      %s1074 = scalar_lea.vmem %s71, %s1073
      %p1075 = scmp.lt.s32.totalorder %s86, 1
      %s1076 = scalar_select %p1075, %s86, 1
      %s1077 = smul.addr %s1076, 8
      %s1078 = scalar_lea.vmem %s1, %s1077
      %p1079 = scmp.lt.s32.totalorder %s86, 1
      %s1080 = scalar_select %p1079, %s86, 1
      %s1081 = smul.addr %s1080, 8
      %s1082 = scalar_lea.vmem %s3, %s1081
      %p1083 = scmp.lt.s32.totalorder %s86, 1
      %s1084 = scalar_select %p1083, %s86, 1
      %s1085 = smul.addr %s1084, 8
      %s1086 = scalar_lea.vmem %s71, %s1085
      %v1087 = vld [vmem:[%s11] sm:$0xff]
      %v1088 = vld [vmem:[%s11 + $0x8] sm:$0x1]
      %v1089 = vld [vmem:[%s13] sm:$0x1]
      %v1090 = vld [vmem:[%s15] sm:$0xff]
      %v1091 = vld [vmem:[%s15 + $0x8] sm:$0xff]
      %v1092 = vld [vmem:[%s15 + $0x10] sm:$0xff]
      %v1093 = vld [vmem:[%s15 + $0x18] sm:$0xff]
      %v1094 = vld [vmem:[%s17] sm:$0x1]
      %v1095 = vld [vmem:[%s19] sm:$0x1]
      %v1096 = vld [vmem:[%s21] sm:$0xff]
      %v1097 = vld [vmem:[%s21 + $0x8] sm:$0xff]
      %v1098 = vld [vmem:[%s23] sm:$0x1]
      %v1099 = vld [vmem:[%s25] sm:$0xff]
      %v1100 = vld [vmem:[%s25 + $0x8] sm:$0xff]
      %v1101 = vld [vmem:[#allocation2] sm:$0x1]
      %v1102 = vld [vmem:[%s29] sm:$0x1]
      %v1103 = vld [vmem:[%s31] sm:$0xff]
      %v1104 = vld [vmem:[%s31 + $0x8] sm:$0xff]
      %v1105 = vld [vmem:[%s33] sm:$0xff]
      %v1106 = vld [vmem:[%s33 + $0x8] sm:$0xff]
      %v1107 = vld [vmem:[%s33 + $0x10] sm:$0xff]
      %v1108 = vld [vmem:[%s33 + $0x18] sm:$0xff]
      %v1109 = vld [vmem:[%s35] sm:$0x1]
      %v1110 = vld [vmem:[%s37] sm:$0xff]
      %v1111 = vld [vmem:[%s37 + $0x8] sm:$0xff]
      %v1112 = vld [vmem:[%s39] sm:$0x1]
      %v1113 = vld [vmem:[%s41] sm:$0xff]
      %v1114 = vld [vmem:[%s41 + $0x8] sm:$0xff]
      %v1115 = vld [vmem:[%s41 + $0x10] sm:$0xff]
      %v1116 = vld [vmem:[%s41 + $0x18] sm:$0xff]
      %v1117 = vld [vmem:[%s43] sm:$0x1]
      %v1118 = vld [vmem:[%s45] sm:$0x1]
      %v1119 = vld [vmem:[%s47] sm:$0xff]
      %v1120 = vld [vmem:[%s47 + $0x8] sm:$0xff]
      %v1121 = vld [vmem:[%s49] sm:$0x1]
      %v1122 = vld [vmem:[%s51] sm:$0xff]
      %v1123 = vld [vmem:[%s51 + $0x8] sm:$0xff]
      %v1124 = vld [vmem:[#allocation3] sm:$0x1]
      %v1125 = vld [vmem:[%s55] sm:$0x1]
      %v1126 = vld [vmem:[%s57] sm:$0xff]
      %v1127 = vld [vmem:[%s57 + $0x8] sm:$0xff]
      %v1128 = vld [vmem:[%s59] sm:$0xff]
      %v1129 = vld [vmem:[%s59 + $0x8] sm:$0xff]
      %v1130 = vld [vmem:[%s59 + $0x10] sm:$0xff]
      %v1131 = vld [vmem:[%s59 + $0x18] sm:$0xff]
      %v1132 = vld [vmem:[%s61] sm:$0x1]
      %v1133 = vld [vmem:[%s63] sm:$0xff]
      %v1134 = vld [vmem:[%s63 + $0x8] sm:$0xff]
      %v1135 = vld [vmem:[%s65] sm:$0x1]
      %v1136 = vld [vmem:[%s67] sm:$0xff]
      %v1137 = vld [vmem:[%s67 + $0x8] sm:$0xff]
      %v1138 = vld [vmem:[%s69] sm:$0x1]
      %v1139 = vld [vmem:[%s5] sm:$0xf]
      %v1140 = vld [vmem:[%s5 + $0x4] sm:$0xf]
      %v1141 = vld [vmem:[%s5 + $0x8] sm:$0xf]
      %v1142 = vld [vmem:[%s5 + $0xc] sm:$0xf]
      %v1143 = vld [vmem:[%s5 + $0x10] sm:$0xf]
      %v1144 = vld [vmem:[%s5 + $0x14] sm:$0xf]
      %v1145 = vld [vmem:[%s5 + $0x18] sm:$0xf]
      %v1146 = vld [vmem:[%s5 + $0x1c] sm:$0xf]
      %v1147 = vld [vmem:[%s5 + $0x20] sm:$0xf]
      %v1148 = vld [vmem:[%s5 + $0x24] sm:$0xf]
      %v1149 = vld [vmem:[%s5 + $0x28] sm:$0xf]
      %v1150 = vld [vmem:[%s5 + $0x2c] sm:$0xf]
      %v1151 = vld [vmem:[%s5 + $0x30] sm:$0xf]
      %v1152 = vld [vmem:[%s5 + $0x34] sm:$0xf]
      %v1153 = vunpack.c.l.bf16 %v1139
      %v1154 = vunpack.c.l.bf16 %v1140
      %v1155 = vunpack.c.l.bf16 %v1141
      %v1156 = vunpack.c.l.bf16 %v1142
      %v1157 = vunpack.c.l.bf16 %v1143
      %v1158 = vunpack.c.l.bf16 %v1144
      %v1159 = vunpack.c.l.bf16 %v1145
      %v1160 = vunpack.c.l.bf16 %v1146
      %v1161 = vunpack.c.l.bf16 %v1147
      %v1162 = vunpack.c.l.bf16 %v1148
      %v1163 = vunpack.c.l.bf16 %v1149
      %v1164 = vunpack.c.l.bf16 %v1150
      %v1165 = vunpack.c.l.bf16 %v1151
      %v1166 = vunpack.c.l.bf16 %v1152
      %v1167 = vld [vmem:[%s7] sm:$0xf]
      %v1168 = vunpack.c.l.bf16 %v1167
      %v1169 = vld [vmem:[%s9] sm:$0xff]
      %v1170 = vld [vmem:[%s1078] sm:$0xff]
      %v1172 = vlaneseq
      %v1173 = vshrl.u32 %v1172, 7
      %v1174 = vsub.s32 0, %v1173
      %v1175 = vrot.slane %v1089, %v1174
      %vm1177 = vcmask 72704
      %v1179 = vsel %vm1177, %v1170, 0
      %vm1181 = vcmask 1040384
      %v1183 = vsel %vm1181, %v1088, 0
      %1185 = vmatprep.subr.mxu0 0.0
      %1186 = vmatpush1.msra.mxu0 0.0
      %1187 = vmatprep.subr.mxu0 0.0
      %1188 = vmatpush1.msra.mxu0 0.0
      %1189 = vmatprep.subr.mxu0 0.0
      %1190 = vmatpush1.msra.mxu0 0.0
      %1191 = vmatprep.subr.mxu0 0.0
      %1192 = vmatpush1.msra.mxu0 0.0
      %1193 = vmatprep.subr.mxu0 0.0
      %1194 = vmatpush1.msra.mxu0 0.0
      %1195 = vmatprep.subr.mxu0 0.0
      %1196 = vmatpush1.msra.mxu0 0.0
      %1197 = vmatprep.subr.mxu0 0.0
      %1198 = vmatpush1.msra.mxu0 0.0
      %1199 = vmatprep.subr.mxu0 0.0
      %1200 = vmatpush1.msra.mxu0 0.0
      %1201 = vmatprep.subr.mxu0 0.0
      %1202 = vmatpush1.msra.mxu0 0.0
      %1203 = vmatprep.subr.mxu0 0.0
      %1204 = vmatpush1.msra.mxu0 0.0
      %1205 = vmatprep.subr.mxu0 0.0
      %1206 = vmatpush1.msra.mxu0 0.0
      %1207 = vmatprep.subr.mxu0 0.0
      %1208 = vmatpush1.msra.mxu0 0.0
      %1209 = vmatprep.subr.mxu0 0.0
      %1210 = vmatpush1.msra.mxu0 0.0
      %1211 = vmatprep.subr.mxu0 0.0
      %1212 = vmatpush1.msra.mxu0 0.0
      %1213 = vmatprep.subr.mxu0 0.0
      %1214 = vmatpush1.msra.mxu0 %v1183
      %1215 = vmatprep.subr.mxu0 0.0
      %1216 = vmatpush1.msra.mxu0 %v1087
      %1217 = vmatprep.subr.mxu0 0.0
      %1218 = vmatpush2.msra.mxu0 0.0
      %1219 = vmatprep.subr.mxu0 0.0
      %1220 = vmatpush2.msra.mxu0 0.0
      %1221 = vmatprep.subr.mxu0 0.0
      %1222 = vmatpush2.msra.mxu0 0.0
      %1223 = vmatprep.subr.mxu0 0.0
      %1224 = vmatpush2.msra.mxu0 0.0
      %1225 = vmatprep.subr.mxu0 0.0
      %1226 = vmatpush2.msra.mxu0 0.0
      %1227 = vmatprep.subr.mxu0 0.0
      %1228 = vmatpush2.msra.mxu0 0.0
      %1229 = vmatprep.subr.mxu0 0.0
      %1230 = vmatpush2.msra.mxu0 0.0
      %1231 = vmatprep.subr.mxu0 0.0
      %1232 = vmatpush2.msra.mxu0 0.0
      %1233 = vmatprep.subr.mxu0 0.0
      %1234 = vmatpush2.msra.mxu0 0.0
      %1235 = vmatprep.subr.mxu0 0.0
      %1236 = vmatpush2.msra.mxu0 0.0
      %1237 = vmatprep.subr.mxu0 0.0
      %1238 = vmatpush2.msra.mxu0 0.0
      %1239 = vmatprep.subr.mxu0 0.0
      %1240 = vmatpush2.msra.mxu0 0.0
      %1241 = vmatprep.subr.mxu0 0.0
      %1242 = vmatpush2.msra.mxu0 0.0
      %1243 = vmatprep.subr.mxu0 0.0
      %1244 = vmatpush2.msra.mxu0 0.0
      %1245 = vmatprep.subr.mxu0 0.0
      %1246 = vmatpush2.msra.mxu0 0.0
      %1247 = vmatprep.subr.mxu0 0.0
      %1248 = vmatpush2.msra.mxu0 0.0
      %1249 = vmatprep.mubr.f32.mxu0 0.0
      %1250 = vmatmul.mubr.f32.gmra.mxu0 %v1179
      %v1251 = vpop.f32.mrf.mxu0
      %v1252 = vadd.f32 %v1175, %v1251
      %v1253 = vpop.f32.mrf.mxu0
      %1254 = vdwg.mxu0
      %v1255 = vld [vmem:[%s1082] sm:$0xff]
      %1257 = vrot.lane.b32.xlu0 %v1255, 16
      %v1258 = vpop.permute.xlu0 %1257
      %vm1260 = vcmask 130048
      %v1261 = vsel %vm1260, %v1252, %v1258
      %vm1262 = vcmask 64512
      %v1264 = vsel %vm1262, %v1153, 0
      %v1267 = vsel %vm1262, %v1154, 0
      %v1270 = vsel %vm1262, %v1155, 0
      %v1273 = vsel %vm1262, %v1156, 0
      %v1276 = vsel %vm1262, %v1157, 0
      %v1279 = vsel %vm1262, %v1158, 0
      %v1282 = vsel %vm1262, %v1159, 0
      %v1285 = vsel %vm1262, %v1160, 0
      %v1288 = vsel %vm1262, %v1161, 0
      %v1291 = vsel %vm1262, %v1162, 0
      %v1294 = vsel %vm1262, %v1163, 0
      %v1297 = vsel %vm1262, %v1164, 0
      %v1300 = vsel %vm1262, %v1165, 0
      %v1303 = vsel %vm1262, %v1166, 0
      %1305 = vmatprep.subr.mxu0 0.0
      %1306 = vmatpush1.msra.mxu0 0.0
      %1307 = vmatprep.subr.mxu0 0.0
      %1308 = vmatpush1.msra.mxu0 0.0
      %1309 = vmatprep.subr.mxu0 0.0
      %1310 = vmatpush1.msra.mxu0 0.0
      %1311 = vmatprep.subr.mxu0 0.0
      %1312 = vmatpush1.msra.mxu0 0.0
      %1313 = vmatprep.subr.mxu0 0.0
      %1314 = vmatpush1.msra.mxu0 0.0
      %1315 = vmatprep.subr.mxu0 0.0
      %1316 = vmatpush1.msra.mxu0 0.0
      %1317 = vmatprep.subr.mxu0 0.0
      %1318 = vmatpush1.msra.mxu0 0.0
      %1319 = vmatprep.subr.mxu0 0.0
      %1320 = vmatpush1.msra.mxu0 0.0
      %1321 = vmatprep.subr.mxu0 0.0
      %1322 = vmatpush1.msra.mxu0 0.0
      %1323 = vmatprep.subr.mxu0 0.0
      %1324 = vmatpush1.msra.mxu0 0.0
      %1325 = vmatprep.subr.mxu0 0.0
      %1326 = vmatpush1.msra.mxu0 0.0
      %1327 = vmatprep.subr.mxu0 0.0
      %1328 = vmatpush1.msra.mxu0 0.0
      %1329 = vmatprep.subr.mxu0 0.0
      %1330 = vmatpush1.msra.mxu0 0.0
      %1331 = vmatprep.subr.mxu0 0.0
      %1332 = vmatpush1.msra.mxu0 0.0
      %1333 = vmatprep.subr.mxu0 0.0
      %1334 = vmatpush1.msra.mxu0 0.0
      %1335 = vmatprep.subr.mxu0 0.0
      %1336 = vmatpush1.msra.mxu0 %v1261
      %1337 = vmatprep.subr.mxu0 0.0
      %1338 = vmatpush2.msra.mxu0 0.0
      %1339 = vmatprep.subr.mxu0 0.0
      %1340 = vmatpush2.msra.mxu0 0.0
      %1341 = vmatprep.subr.mxu0 0.0
      %1342 = vmatpush2.msra.mxu0 0.0
      %1343 = vmatprep.subr.mxu0 0.0
      %1344 = vmatpush2.msra.mxu0 0.0
      %1345 = vmatprep.subr.mxu0 0.0
      %1346 = vmatpush2.msra.mxu0 0.0
      %1347 = vmatprep.subr.mxu0 0.0
      %1348 = vmatpush2.msra.mxu0 0.0
      %1349 = vmatprep.subr.mxu0 0.0
      %1350 = vmatpush2.msra.mxu0 0.0
      %1351 = vmatprep.subr.mxu0 0.0
      %1352 = vmatpush2.msra.mxu0 0.0
      %1353 = vmatprep.subr.mxu0 0.0
      %1354 = vmatpush2.msra.mxu0 0.0
      %1355 = vmatprep.subr.mxu0 0.0
      %1356 = vmatpush2.msra.mxu0 0.0
      %1357 = vmatprep.subr.mxu0 0.0
      %1358 = vmatpush2.msra.mxu0 0.0
      %1359 = vmatprep.subr.mxu0 0.0
      %1360 = vmatpush2.msra.mxu0 0.0
      %1361 = vmatprep.subr.mxu0 0.0
      %1362 = vmatpush2.msra.mxu0 0.0
      %1363 = vmatprep.subr.mxu0 0.0
      %1364 = vmatpush2.msra.mxu0 0.0
      %1365 = vmatprep.subr.mxu0 0.0
      %1366 = vmatpush2.msra.mxu0 0.0
      %1367 = vmatprep.subr.mxu0 0.0
      %1368 = vmatpush2.msra.mxu0 0.0
      %1369 = vmatprep.mubr.f32.mxu0 0.0
      %1370 = vmatmul.mubr.f32.gmra.mxu0 %v1264
      %v1371 = vpop.f32.mrf.mxu0
      %v1372 = vadd.f32 0.0, %v1371
      %v1373 = vpop.f32.mrf.mxu0
      %1374 = vmatprep.mubr.f32.mxu0 0.0
      %1375 = vmatmul.mubr.f32.gmra.mxu0 %v1267
      %v1376 = vpop.f32.mrf.mxu0
      %v1377 = vadd.f32 0.0, %v1376
      %v1378 = vpop.f32.mrf.mxu0
      %1379 = vmatprep.mubr.f32.mxu0 0.0
      %1380 = vmatmul.mubr.f32.gmra.mxu0 %v1270
      %v1381 = vpop.f32.mrf.mxu0
      %v1382 = vadd.f32 0.0, %v1381
      %v1383 = vpop.f32.mrf.mxu0
      %1384 = vmatprep.mubr.f32.mxu0 0.0
      %1385 = vmatmul.mubr.f32.gmra.mxu0 %v1273
      %v1386 = vpop.f32.mrf.mxu0
      %v1387 = vadd.f32 0.0, %v1386
      %v1388 = vpop.f32.mrf.mxu0
      %1389 = vmatprep.mubr.f32.mxu0 0.0
      %1390 = vmatmul.mubr.f32.gmra.mxu0 %v1276
      %v1391 = vpop.f32.mrf.mxu0
      %v1392 = vadd.f32 0.0, %v1391
      %v1393 = vpop.f32.mrf.mxu0
      %1394 = vmatprep.mubr.f32.mxu0 0.0
      %1395 = vmatmul.mubr.f32.gmra.mxu0 %v1279
      %v1396 = vpop.f32.mrf.mxu0
      %v1397 = vadd.f32 0.0, %v1396
      %v1398 = vpop.f32.mrf.mxu0
      %1399 = vmatprep.mubr.f32.mxu0 0.0
      %1400 = vmatmul.mubr.f32.gmra.mxu0 %v1282
      %v1401 = vpop.f32.mrf.mxu0
      %v1402 = vadd.f32 0.0, %v1401
      %v1403 = vpop.f32.mrf.mxu0
      %1404 = vmatprep.mubr.f32.mxu0 0.0
      %1405 = vmatmul.mubr.f32.gmra.mxu0 %v1285
      %v1406 = vpop.f32.mrf.mxu0
      %v1407 = vadd.f32 0.0, %v1406
      %v1408 = vpop.f32.mrf.mxu0
      %1409 = vmatprep.mubr.f32.mxu0 0.0
      %1410 = vmatmul.mubr.f32.gmra.mxu0 %v1288
      %v1411 = vpop.f32.mrf.mxu0
      %v1412 = vadd.f32 0.0, %v1411
      %v1413 = vpop.f32.mrf.mxu0
      %1414 = vmatprep.mubr.f32.mxu0 0.0
      %1415 = vmatmul.mubr.f32.gmra.mxu0 %v1291
      %v1416 = vpop.f32.mrf.mxu0
      %v1417 = vadd.f32 0.0, %v1416
      %v1418 = vpop.f32.mrf.mxu0
      %1419 = vmatprep.mubr.f32.mxu0 0.0
      %1420 = vmatmul.mubr.f32.gmra.mxu0 %v1294
      %v1421 = vpop.f32.mrf.mxu0
      %v1422 = vadd.f32 0.0, %v1421
      %v1423 = vpop.f32.mrf.mxu0
      %1424 = vmatprep.mubr.f32.mxu0 0.0
      %1425 = vmatmul.mubr.f32.gmra.mxu0 %v1297
      %v1426 = vpop.f32.mrf.mxu0
      %v1427 = vadd.f32 0.0, %v1426
      %v1428 = vpop.f32.mrf.mxu0
      %1429 = vmatprep.mubr.f32.mxu0 0.0
      %1430 = vmatmul.mubr.f32.gmra.mxu0 %v1300
      %v1431 = vpop.f32.mrf.mxu0
      %v1432 = vadd.f32 0.0, %v1431
      %v1433 = vpop.f32.mrf.mxu0
      %1434 = vmatprep.mubr.f32.mxu0 0.0
      %1435 = vmatmul.mubr.f32.gmra.mxu0 %v1303
      %v1436 = vpop.f32.mrf.mxu0
      %v1437 = vadd.f32 0.0, %v1436
      %v1438 = vpop.f32.mrf.mxu0
      %1439 = vdwg.mxu0
      %v1440 = vsub.f32 %v1372, %v1407
      %v1441 = vsub.f32 %v1377, %v1412
      %v1442 = vsub.f32 %v1382, %v1417
      %v1443 = vsub.f32 %v1387, %v1422
      %v1444 = vsub.f32 %v1392, %v1427
      %v1445 = vsub.f32 %v1397, %v1432
      %v1446 = vsub.f32 %v1402, %v1437
      %v1447 = vmul.f32 %v1440, %v1440
      %v1448 = vmul.f32 %v1441, %v1441
      %v1449 = vmul.f32 %v1442, %v1442
      %v1450 = vmul.f32 %v1443, %v1443
      %v1451 = vmul.f32 %v1444, %v1444
      %v1452 = vmul.f32 %v1445, %v1445
      %v1453 = vmul.f32 %v1446, %v1446
      %1461 = vrot.lane.b32.xlu0 %v1447, 112
      %v1462 = vpop.permute.xlu0 %1461
      %1463 = vrot.lane.b32.xlu0 %v1448, 112
      %v1464 = vpop.permute.xlu0 %1463
      %1465 = vrot.lane.b32.xlu0 %v1449, 112
      %v1466 = vpop.permute.xlu0 %1465
      %1467 = vrot.lane.b32.xlu0 %v1450, 112
      %v1468 = vpop.permute.xlu0 %1467
      %1469 = vrot.lane.b32.xlu0 %v1451, 112
      %v1470 = vpop.permute.xlu0 %1469
      %1471 = vrot.lane.b32.xlu0 %v1452, 112
      %v1472 = vpop.permute.xlu0 %1471
      %1473 = vrot.lane.b32.xlu0 %v1453, 112
      %v1474 = vpop.permute.xlu0 %1473
      %vm1482 = vcmask 23552
      %v1483 = vsel %vm1482, %v1462, 0.0
      %1484 = vadd.xlane.f32.xlu0 %v1483
      %v1485 = vpop.xlane.xlu0 %1484
      %v1486 = vsel %vm1482, %v1464, 0.0
      %1487 = vadd.xlane.f32.xlu0 %v1486
      %v1488 = vpop.xlane.xlu0 %1487
      %v1489 = vsel %vm1482, %v1466, 0.0
      %1490 = vadd.xlane.f32.xlu0 %v1489
      %v1491 = vpop.xlane.xlu0 %1490
      %v1492 = vsel %vm1482, %v1468, 0.0
      %1493 = vadd.xlane.f32.xlu0 %v1492
      %v1494 = vpop.xlane.xlu0 %1493
      %v1495 = vsel %vm1482, %v1470, 0.0
      %1496 = vadd.xlane.f32.xlu0 %v1495
      %v1497 = vpop.xlane.xlu0 %1496
      %v1498 = vsel %vm1482, %v1472, 0.0
      %1499 = vadd.xlane.f32.xlu0 %v1498
      %v1500 = vpop.xlane.xlu0 %1499
      %v1501 = vsel %vm1482, %v1474, 0.0
      %1502 = vadd.xlane.f32.xlu0 %v1501
      %v1503 = vpop.xlane.xlu0 %1502
      %1511 = vrot.lane.b32.xlu0 %v1407, 16
      %v1512 = vpop.permute.xlu0 %1511
      %1513 = vrot.lane.b32.xlu0 %v1412, 16
      %v1514 = vpop.permute.xlu0 %1513
      %1515 = vrot.lane.b32.xlu0 %v1417, 16
      %v1516 = vpop.permute.xlu0 %1515
      %1517 = vrot.lane.b32.xlu0 %v1422, 16
      %v1518 = vpop.permute.xlu0 %1517
      %1519 = vrot.lane.b32.xlu0 %v1427, 16
      %v1520 = vpop.permute.xlu0 %1519
      %1521 = vrot.lane.b32.xlu0 %v1432, 16
      %v1522 = vpop.permute.xlu0 %1521
      %1523 = vrot.lane.b32.xlu0 %v1437, 16
      %v1524 = vpop.permute.xlu0 %1523
      %v1532 = vsel %vm1260, %v1372, %v1512
      %v1533 = vsel %vm1260, %v1377, %v1514
      %v1534 = vsel %vm1260, %v1382, %v1516
      %v1535 = vsel %vm1260, %v1387, %v1518
      %v1536 = vsel %vm1260, %v1392, %v1520
      %v1537 = vsel %vm1260, %v1397, %v1522
      %v1538 = vsel %vm1260, %v1402, %v1524
      %v1540 = vlaneseq
      %v1541 = vshrl.u32 %v1540, 7
      %v1542 = vsub.s32 0, %v1541
      %v1543 = vrot.slane %v1094, %v1542
      %v1545 = vmul.f32 %v1485, %v1543
      %v1546 = vmul.f32 %v1488, %v1543
      %v1547 = vmul.f32 %v1491, %v1543
      %v1548 = vmul.f32 %v1494, %v1543
      %v1549 = vmul.f32 %v1497, %v1543
      %v1550 = vmul.f32 %v1500, %v1543
      %v1551 = vmul.f32 %v1503, %v1543
      %vm1552 = vcmask 261120
      %v1554 = vsel %vm1552, %v1532, 0
      %v1557 = vsel %vm1552, %v1533, 0
      %v1560 = vsel %vm1552, %v1534, 0
      %v1563 = vsel %vm1552, %v1535, 0
      %v1566 = vsel %vm1552, %v1536, 0
      %v1569 = vsel %vm1552, %v1537, 0
      %v1572 = vsel %vm1552, %v1538, 0
      %1574 = vmatprep.subr.mxu0 0.0
      %1575 = vmatpush1.msra.mxu0 0.0
      %1576 = vmatprep.subr.mxu0 0.0
      %1577 = vmatpush1.msra.mxu0 0.0
      %1578 = vmatprep.subr.mxu0 0.0
      %1579 = vmatpush1.msra.mxu0 0.0
      %1580 = vmatprep.subr.mxu0 0.0
      %1581 = vmatpush1.msra.mxu0 0.0
      %1582 = vmatprep.subr.mxu0 0.0
      %1583 = vmatpush1.msra.mxu0 0.0
      %1584 = vmatprep.subr.mxu0 0.0
      %1585 = vmatpush1.msra.mxu0 0.0
      %1586 = vmatprep.subr.mxu0 0.0
      %1587 = vmatpush1.msra.mxu0 0.0
      %1588 = vmatprep.subr.mxu0 0.0
      %1589 = vmatpush1.msra.mxu0 0.0
      %1590 = vmatprep.subr.mxu0 0.0
      %1591 = vmatpush1.msra.mxu0 0.0
      %1592 = vmatprep.subr.mxu0 0.0
      %1593 = vmatpush1.msra.mxu0 0.0
      %1594 = vmatprep.subr.mxu0 0.0
      %1595 = vmatpush1.msra.mxu0 0.0
      %1596 = vmatprep.subr.mxu0 0.0
      %1597 = vmatpush1.msra.mxu0 0.0
      %1598 = vmatprep.subr.mxu0 0.0
      %1599 = vmatpush1.msra.mxu0 %v1093
      %1600 = vmatprep.subr.mxu0 0.0
      %1601 = vmatpush1.msra.mxu0 %v1092
      %1602 = vmatprep.subr.mxu0 0.0
      %1603 = vmatpush1.msra.mxu0 %v1091
      %1604 = vmatprep.subr.mxu0 0.0
      %1605 = vmatpush1.msra.mxu0 %v1090
      %1606 = vmatprep.subr.mxu0 0.0
      %1607 = vmatpush2.msra.mxu0 0.0
      %1608 = vmatprep.subr.mxu0 0.0
      %1609 = vmatpush2.msra.mxu0 0.0
      %1610 = vmatprep.subr.mxu0 0.0
      %1611 = vmatpush2.msra.mxu0 0.0
      %1612 = vmatprep.subr.mxu0 0.0
      %1613 = vmatpush2.msra.mxu0 0.0
      %1614 = vmatprep.subr.mxu0 0.0
      %1615 = vmatpush2.msra.mxu0 0.0
      %1616 = vmatprep.subr.mxu0 0.0
      %1617 = vmatpush2.msra.mxu0 0.0
      %1618 = vmatprep.subr.mxu0 0.0
      %1619 = vmatpush2.msra.mxu0 0.0
      %1620 = vmatprep.subr.mxu0 0.0
      %1621 = vmatpush2.msra.mxu0 0.0
      %1622 = vmatprep.subr.mxu0 0.0
      %1623 = vmatpush2.msra.mxu0 0.0
      %1624 = vmatprep.subr.mxu0 0.0
      %1625 = vmatpush2.msra.mxu0 0.0
      %1626 = vmatprep.subr.mxu0 0.0
      %1627 = vmatpush2.msra.mxu0 0.0
      %1628 = vmatprep.subr.mxu0 0.0
      %1629 = vmatpush2.msra.mxu0 0.0
      %1630 = vmatprep.subr.mxu0 0.0
      %1631 = vmatpush2.msra.mxu0 0.0
      %1632 = vmatprep.subr.mxu0 0.0
      %1633 = vmatpush2.msra.mxu0 0.0
      %1634 = vmatprep.subr.mxu0 0.0
      %1635 = vmatpush2.msra.mxu0 0.0
      %1636 = vmatprep.subr.mxu0 0.0
      %1637 = vmatpush2.msra.mxu0 0.0
      %1638 = vmatprep.mubr.f32.mxu0 0.0
      %1639 = vmatmul.mubr.f32.gmra.mxu0 %v1554
      %v1640 = vpop.f32.mrf.mxu0
      %v1641 = vadd.f32 %v1545, %v1640
      %v1642 = vpop.f32.mrf.mxu0
      %1643 = vmatprep.mubr.f32.mxu0 0.0
      %1644 = vmatmul.mubr.f32.gmra.mxu0 %v1557
      %v1645 = vpop.f32.mrf.mxu0
      %v1646 = vadd.f32 %v1546, %v1645
      %v1647 = vpop.f32.mrf.mxu0
      %1648 = vmatprep.mubr.f32.mxu0 0.0
      %1649 = vmatmul.mubr.f32.gmra.mxu0 %v1560
      %v1650 = vpop.f32.mrf.mxu0
      %v1651 = vadd.f32 %v1547, %v1650
      %v1652 = vpop.f32.mrf.mxu0
      %1653 = vmatprep.mubr.f32.mxu0 0.0
      %1654 = vmatmul.mubr.f32.gmra.mxu0 %v1563
      %v1655 = vpop.f32.mrf.mxu0
      %v1656 = vadd.f32 %v1548, %v1655
      %v1657 = vpop.f32.mrf.mxu0
      %1658 = vmatprep.mubr.f32.mxu0 0.0
      %1659 = vmatmul.mubr.f32.gmra.mxu0 %v1566
      %v1660 = vpop.f32.mrf.mxu0
      %v1661 = vadd.f32 %v1549, %v1660
      %v1662 = vpop.f32.mrf.mxu0
      %1663 = vmatprep.mubr.f32.mxu0 0.0
      %1664 = vmatmul.mubr.f32.gmra.mxu0 %v1569
      %v1665 = vpop.f32.mrf.mxu0
      %v1666 = vadd.f32 %v1550, %v1665
      %v1667 = vpop.f32.mrf.mxu0
      %1668 = vmatprep.mubr.f32.mxu0 0.0
      %1669 = vmatmul.mubr.f32.gmra.mxu0 %v1572
      %v1670 = vpop.f32.mrf.mxu0
      %v1671 = vadd.f32 %v1551, %v1670
      %v1672 = vpop.f32.mrf.mxu0
      %1673 = vdwg.mxu0
      %v1675 = vlaneseq
      %v1676 = vshrl.u32 %v1675, 7
      %v1677 = vsub.s32 0, %v1676
      %v1678 = vrot.slane %v1095, %v1677
      %v1680 = vadd.f32 %v1641, %v1678
      %v1681 = vadd.f32 %v1646, %v1678
      %v1682 = vadd.f32 %v1651, %v1678
      %v1683 = vadd.f32 %v1656, %v1678
      %v1684 = vadd.f32 %v1661, %v1678
      %v1685 = vadd.f32 %v1666, %v1678
      %v1686 = vadd.f32 %v1671, %v1678
      %v1687 = vxor.u32 %v1680, 2147483648
      %v1688 = vxor.u32 %v1681, 2147483648
      %v1689 = vxor.u32 %v1682, 2147483648
      %v1690 = vxor.u32 %v1683, 2147483648
      %v1691 = vxor.u32 %v1684, 2147483648
      %v1692 = vxor.u32 %v1685, 2147483648
      %v1693 = vxor.u32 %v1686, 2147483648
      %v1694 = vmul.f32 %v1687, 1.442695
      %v1695 = vpow.pop %v1694
      %v1696 = vmul.f32 %v1688, 1.442695
      %v1697 = vpow.pop %v1696
      %v1698 = vmul.f32 %v1689, 1.442695
      %v1699 = vpow.pop %v1698
      %v1700 = vmul.f32 %v1690, 1.442695
      %v1701 = vpow.pop %v1700
      %v1702 = vmul.f32 %v1691, 1.442695
      %v1703 = vpow.pop %v1702
      %v1704 = vmul.f32 %v1692, 1.442695
      %v1705 = vpow.pop %v1704
      %v1706 = vmul.f32 %v1693, 1.442695
      %v1707 = vpow.pop %v1706
      %v1708 = vadd.f32 %v1695, 1.0
      %v1709 = vadd.f32 %v1697, 1.0
      %v1710 = vadd.f32 %v1699, 1.0
      %v1711 = vadd.f32 %v1701, 1.0
      %v1712 = vadd.f32 %v1703, 1.0
      %v1713 = vadd.f32 %v1705, 1.0
      %v1714 = vadd.f32 %v1707, 1.0
      %v1715 = vrcp.pop %v1708
      %v1716 = vmul.f32 1.0, %v1715
      %v1717 = vrcp.pop %v1709
      %v1718 = vmul.f32 1.0, %v1717
      %v1719 = vrcp.pop %v1710
      %v1720 = vmul.f32 1.0, %v1719
      %v1721 = vrcp.pop %v1711
      %v1722 = vmul.f32 1.0, %v1721
      %v1723 = vrcp.pop %v1712
      %v1724 = vmul.f32 1.0, %v1723
      %v1725 = vrcp.pop %v1713
      %v1726 = vmul.f32 1.0, %v1725
      %v1727 = vrcp.pop %v1714
      %v1728 = vmul.f32 1.0, %v1727
      %v1729 = vmul.f32 %v1680, %v1716
      %v1730 = vmul.f32 %v1681, %v1718
      %v1731 = vmul.f32 %v1682, %v1720
      %v1732 = vmul.f32 %v1683, %v1722
      %v1733 = vmul.f32 %v1684, %v1724
      %v1734 = vmul.f32 %v1685, %v1726
      %v1735 = vmul.f32 %v1686, %v1728
      %v1737 = vlaneseq
      %v1738 = vshrl.u32 %v1737, 7
      %v1739 = vsub.s32 0, %v1738
      %v1740 = vrot.slane %v1098, %v1739
      %v1743 = vsel %vm1260, %v1729, 0
      %v1746 = vsel %vm1260, %v1730, 0
      %v1749 = vsel %vm1260, %v1731, 0
      %v1752 = vsel %vm1260, %v1732, 0
      %v1755 = vsel %vm1260, %v1733, 0
      %v1758 = vsel %vm1260, %v1734, 0
      %v1761 = vsel %vm1260, %v1735, 0
      %1763 = vmatprep.subr.mxu0 0.0
      %1764 = vmatpush1.msra.mxu0 0.0
      %1765 = vmatprep.subr.mxu0 0.0
      %1766 = vmatpush1.msra.mxu0 0.0
      %1767 = vmatprep.subr.mxu0 0.0
      %1768 = vmatpush1.msra.mxu0 0.0
      %1769 = vmatprep.subr.mxu0 0.0
      %1770 = vmatpush1.msra.mxu0 0.0
      %1771 = vmatprep.subr.mxu0 0.0
      %1772 = vmatpush1.msra.mxu0 0.0
      %1773 = vmatprep.subr.mxu0 0.0
      %1774 = vmatpush1.msra.mxu0 0.0
      %1775 = vmatprep.subr.mxu0 0.0
      %1776 = vmatpush1.msra.mxu0 0.0
      %1777 = vmatprep.subr.mxu0 0.0
      %1778 = vmatpush1.msra.mxu0 0.0
      %1779 = vmatprep.subr.mxu0 0.0
      %1780 = vmatpush1.msra.mxu0 0.0
      %1781 = vmatprep.subr.mxu0 0.0
      %1782 = vmatpush1.msra.mxu0 0.0
      %1783 = vmatprep.subr.mxu0 0.0
      %1784 = vmatpush1.msra.mxu0 0.0
      %1785 = vmatprep.subr.mxu0 0.0
      %1786 = vmatpush1.msra.mxu0 0.0
      %1787 = vmatprep.subr.mxu0 0.0
      %1788 = vmatpush1.msra.mxu0 0.0
      %1789 = vmatprep.subr.mxu0 0.0
      %1790 = vmatpush1.msra.mxu0 0.0
      %1791 = vmatprep.subr.mxu0 0.0
      %1792 = vmatpush1.msra.mxu0 %v1097
      %1793 = vmatprep.subr.mxu0 0.0
      %1794 = vmatpush1.msra.mxu0 %v1096
      %1795 = vmatprep.subr.mxu0 0.0
      %1796 = vmatpush2.msra.mxu0 0.0
      %1797 = vmatprep.subr.mxu0 0.0
      %1798 = vmatpush2.msra.mxu0 0.0
      %1799 = vmatprep.subr.mxu0 0.0
      %1800 = vmatpush2.msra.mxu0 0.0
      %1801 = vmatprep.subr.mxu0 0.0
      %1802 = vmatpush2.msra.mxu0 0.0
      %1803 = vmatprep.subr.mxu0 0.0
      %1804 = vmatpush2.msra.mxu0 0.0
      %1805 = vmatprep.subr.mxu0 0.0
      %1806 = vmatpush2.msra.mxu0 0.0
      %1807 = vmatprep.subr.mxu0 0.0
      %1808 = vmatpush2.msra.mxu0 0.0
      %1809 = vmatprep.subr.mxu0 0.0
      %1810 = vmatpush2.msra.mxu0 0.0
      %1811 = vmatprep.subr.mxu0 0.0
      %1812 = vmatpush2.msra.mxu0 0.0
      %1813 = vmatprep.subr.mxu0 0.0
      %1814 = vmatpush2.msra.mxu0 0.0
      %1815 = vmatprep.subr.mxu0 0.0
      %1816 = vmatpush2.msra.mxu0 0.0
      %1817 = vmatprep.subr.mxu0 0.0
      %1818 = vmatpush2.msra.mxu0 0.0
      %1819 = vmatprep.subr.mxu0 0.0
      %1820 = vmatpush2.msra.mxu0 0.0
      %1821 = vmatprep.subr.mxu0 0.0
      %1822 = vmatpush2.msra.mxu0 0.0
      %1823 = vmatprep.subr.mxu0 0.0
      %1824 = vmatpush2.msra.mxu0 0.0
      %1825 = vmatprep.subr.mxu0 0.0
      %1826 = vmatpush2.msra.mxu0 0.0
      %1827 = vmatprep.mubr.f32.mxu0 0.0
      %1828 = vmatmul.mubr.f32.gmra.mxu0 %v1743
      %v1829 = vpop.f32.mrf.mxu0
      %v1830 = vadd.f32 %v1740, %v1829
      %v1831 = vpop.f32.mrf.mxu0
      %1832 = vmatprep.mubr.f32.mxu0 0.0
      %1833 = vmatmul.mubr.f32.gmra.mxu0 %v1746
      %v1834 = vpop.f32.mrf.mxu0
      %v1835 = vadd.f32 %v1740, %v1834
      %v1836 = vpop.f32.mrf.mxu0
      %1837 = vmatprep.mubr.f32.mxu0 0.0
      %1838 = vmatmul.mubr.f32.gmra.mxu0 %v1749
      %v1839 = vpop.f32.mrf.mxu0
      %v1840 = vadd.f32 %v1740, %v1839
      %v1841 = vpop.f32.mrf.mxu0
      %1842 = vmatprep.mubr.f32.mxu0 0.0
      %1843 = vmatmul.mubr.f32.gmra.mxu0 %v1752
      %v1844 = vpop.f32.mrf.mxu0
      %v1845 = vadd.f32 %v1740, %v1844
      %v1846 = vpop.f32.mrf.mxu0
      %1847 = vmatprep.mubr.f32.mxu0 0.0
      %1848 = vmatmul.mubr.f32.gmra.mxu0 %v1755
      %v1849 = vpop.f32.mrf.mxu0
      %v1850 = vadd.f32 %v1740, %v1849
      %v1851 = vpop.f32.mrf.mxu0
      %1852 = vmatprep.mubr.f32.mxu0 0.0
      %1853 = vmatmul.mubr.f32.gmra.mxu0 %v1758
      %v1854 = vpop.f32.mrf.mxu0
      %v1855 = vadd.f32 %v1740, %v1854
      %v1856 = vpop.f32.mrf.mxu0
      %1857 = vmatprep.mubr.f32.mxu0 0.0
      %1858 = vmatmul.mubr.f32.gmra.mxu0 %v1761
      %v1859 = vpop.f32.mrf.mxu0
      %v1860 = vadd.f32 %v1740, %v1859
      %v1861 = vpop.f32.mrf.mxu0
      %1862 = vdwg.mxu0
      %v1863 = vxor.u32 %v1830, 2147483648
      %v1864 = vxor.u32 %v1835, 2147483648
      %v1865 = vxor.u32 %v1840, 2147483648
      %v1866 = vxor.u32 %v1845, 2147483648
      %v1867 = vxor.u32 %v1850, 2147483648
      %v1868 = vxor.u32 %v1855, 2147483648
      %v1869 = vxor.u32 %v1860, 2147483648
      %v1870 = vmul.f32 %v1863, 1.442695
      %v1871 = vpow.pop %v1870
      %v1872 = vmul.f32 %v1864, 1.442695
      %v1873 = vpow.pop %v1872
      %v1874 = vmul.f32 %v1865, 1.442695
      %v1875 = vpow.pop %v1874
      %v1876 = vmul.f32 %v1866, 1.442695
      %v1877 = vpow.pop %v1876
      %v1878 = vmul.f32 %v1867, 1.442695
      %v1879 = vpow.pop %v1878
      %v1880 = vmul.f32 %v1868, 1.442695
      %v1881 = vpow.pop %v1880
      %v1882 = vmul.f32 %v1869, 1.442695
      %v1883 = vpow.pop %v1882
      %v1884 = vadd.f32 %v1871, 1.0
      %v1885 = vadd.f32 %v1873, 1.0
      %v1886 = vadd.f32 %v1875, 1.0
      %v1887 = vadd.f32 %v1877, 1.0
      %v1888 = vadd.f32 %v1879, 1.0
      %v1889 = vadd.f32 %v1881, 1.0
      %v1890 = vadd.f32 %v1883, 1.0
      %v1891 = vrcp.pop %v1884
      %v1892 = vmul.f32 1.0, %v1891
      %v1893 = vrcp.pop %v1885
      %v1894 = vmul.f32 1.0, %v1893
      %v1895 = vrcp.pop %v1886
      %v1896 = vmul.f32 1.0, %v1895
      %v1897 = vrcp.pop %v1887
      %v1898 = vmul.f32 1.0, %v1897
      %v1899 = vrcp.pop %v1888
      %v1900 = vmul.f32 1.0, %v1899
      %v1901 = vrcp.pop %v1889
      %v1902 = vmul.f32 1.0, %v1901
      %v1903 = vrcp.pop %v1890
      %v1904 = vmul.f32 1.0, %v1903
      %v1905 = vmul.f32 %v1830, %v1892
      %v1906 = vmul.f32 %v1835, %v1894
      %v1907 = vmul.f32 %v1840, %v1896
      %v1908 = vmul.f32 %v1845, %v1898
      %v1909 = vmul.f32 %v1850, %v1900
      %v1910 = vmul.f32 %v1855, %v1902
      %v1911 = vmul.f32 %v1860, %v1904
      %v1913 = vsel %vm1260, %v1905, 0
      %v1916 = vsel %vm1260, %v1906, 0
      %v1919 = vsel %vm1260, %v1907, 0
      %v1922 = vsel %vm1260, %v1908, 0
      %v1925 = vsel %vm1260, %v1909, 0
      %v1928 = vsel %vm1260, %v1910, 0
      %v1931 = vsel %vm1260, %v1911, 0
      %1933 = vmatprep.subr.mxu0 0.0
      %1934 = vmatpush1.msra.mxu0 0.0
      %1935 = vmatprep.subr.mxu0 0.0
      %1936 = vmatpush1.msra.mxu0 0.0
      %1937 = vmatprep.subr.mxu0 0.0
      %1938 = vmatpush1.msra.mxu0 0.0
      %1939 = vmatprep.subr.mxu0 0.0
      %1940 = vmatpush1.msra.mxu0 0.0
      %1941 = vmatprep.subr.mxu0 0.0
      %1942 = vmatpush1.msra.mxu0 0.0
      %1943 = vmatprep.subr.mxu0 0.0
      %1944 = vmatpush1.msra.mxu0 0.0
      %1945 = vmatprep.subr.mxu0 0.0
      %1946 = vmatpush1.msra.mxu0 0.0
      %1947 = vmatprep.subr.mxu0 0.0
      %1948 = vmatpush1.msra.mxu0 0.0
      %1949 = vmatprep.subr.mxu0 0.0
      %1950 = vmatpush1.msra.mxu0 0.0
      %1951 = vmatprep.subr.mxu0 0.0
      %1952 = vmatpush1.msra.mxu0 0.0
      %1953 = vmatprep.subr.mxu0 0.0
      %1954 = vmatpush1.msra.mxu0 0.0
      %1955 = vmatprep.subr.mxu0 0.0
      %1956 = vmatpush1.msra.mxu0 0.0
      %1957 = vmatprep.subr.mxu0 0.0
      %1958 = vmatpush1.msra.mxu0 0.0
      %1959 = vmatprep.subr.mxu0 0.0
      %1960 = vmatpush1.msra.mxu0 0.0
      %1961 = vmatprep.subr.mxu0 0.0
      %1962 = vmatpush1.msra.mxu0 %v1100
      %1963 = vmatprep.subr.mxu0 0.0
      %1964 = vmatpush1.msra.mxu0 %v1099
      %1965 = vmatprep.subr.mxu0 0.0
      %1966 = vmatpush2.msra.mxu0 0.0
      %1967 = vmatprep.subr.mxu0 0.0
      %1968 = vmatpush2.msra.mxu0 0.0
      %1969 = vmatprep.subr.mxu0 0.0
      %1970 = vmatpush2.msra.mxu0 0.0
      %1971 = vmatprep.subr.mxu0 0.0
      %1972 = vmatpush2.msra.mxu0 0.0
      %1973 = vmatprep.subr.mxu0 0.0
      %1974 = vmatpush2.msra.mxu0 0.0
      %1975 = vmatprep.subr.mxu0 0.0
      %1976 = vmatpush2.msra.mxu0 0.0
      %1977 = vmatprep.subr.mxu0 0.0
      %1978 = vmatpush2.msra.mxu0 0.0
      %1979 = vmatprep.subr.mxu0 0.0
      %1980 = vmatpush2.msra.mxu0 0.0
      %1981 = vmatprep.subr.mxu0 0.0
      %1982 = vmatpush2.msra.mxu0 0.0
      %1983 = vmatprep.subr.mxu0 0.0
      %1984 = vmatpush2.msra.mxu0 0.0
      %1985 = vmatprep.subr.mxu0 0.0
      %1986 = vmatpush2.msra.mxu0 0.0
      %1987 = vmatprep.subr.mxu0 0.0
      %1988 = vmatpush2.msra.mxu0 0.0
      %1989 = vmatprep.subr.mxu0 0.0
      %1990 = vmatpush2.msra.mxu0 0.0
      %1991 = vmatprep.subr.mxu0 0.0
      %1992 = vmatpush2.msra.mxu0 0.0
      %1993 = vmatprep.subr.mxu0 0.0
      %1994 = vmatpush2.msra.mxu0 0.0
      %1995 = vmatprep.subr.mxu0 0.0
      %1996 = vmatpush2.msra.mxu0 0.0
      %1997 = vmatprep.mubr.f32.mxu0 0.0
      %1998 = vmatmul.mubr.f32.gmra.mxu0 %v1913
      %v1999 = vpop.f32.mrf.mxu0
      %v2000 = vadd.f32 0.0, %v1999
      %v2001 = vpop.f32.mrf.mxu0
      %2002 = vmatprep.mubr.f32.mxu0 0.0
      %2003 = vmatmul.mubr.f32.gmra.mxu0 %v1916
      %v2004 = vpop.f32.mrf.mxu0
      %v2005 = vadd.f32 0.0, %v2004
      %v2006 = vpop.f32.mrf.mxu0
      %2007 = vmatprep.mubr.f32.mxu0 0.0
      %2008 = vmatmul.mubr.f32.gmra.mxu0 %v1919
      %v2009 = vpop.f32.mrf.mxu0
      %v2010 = vadd.f32 0.0, %v2009
      %v2011 = vpop.f32.mrf.mxu0
      %2012 = vmatprep.mubr.f32.mxu0 0.0
      %2013 = vmatmul.mubr.f32.gmra.mxu0 %v1922
      %v2014 = vpop.f32.mrf.mxu0
      %v2015 = vadd.f32 0.0, %v2014
      %v2016 = vpop.f32.mrf.mxu0
      %2017 = vmatprep.mubr.f32.mxu0 0.0
      %2018 = vmatmul.mubr.f32.gmra.mxu0 %v1925
      %v2019 = vpop.f32.mrf.mxu0
      %v2020 = vadd.f32 0.0, %v2019
      %v2021 = vpop.f32.mrf.mxu0
      %2022 = vmatprep.mubr.f32.mxu0 0.0
      %2023 = vmatmul.mubr.f32.gmra.mxu0 %v1928
      %v2024 = vpop.f32.mrf.mxu0
      %v2025 = vadd.f32 0.0, %v2024
      %v2026 = vpop.f32.mrf.mxu0
      %2027 = vmatprep.mubr.f32.mxu0 0.0
      %2028 = vmatmul.mubr.f32.gmra.mxu0 %v1931
      %v2029 = vpop.f32.mrf.mxu0
      %v2030 = vadd.f32 0.0, %v2029
      %v2031 = vpop.f32.mrf.mxu0
      %2032 = vdwg.mxu0
      %v2034 = vlaneseq
      %v2035 = vshrl.u32 %v2034, 7
      %v2036 = vsub.s32 0, %v2035
      %v2037 = vrot.slane %v1101, %v2036
      %v2039 = vadd.f32 %v2000, %v2037
      %v2040 = vadd.f32 %v2005, %v2037
      %v2041 = vadd.f32 %v2010, %v2037
      %v2042 = vadd.f32 %v2015, %v2037
      %v2043 = vadd.f32 %v2020, %v2037
      %v2044 = vadd.f32 %v2025, %v2037
      %v2045 = vadd.f32 %v2030, %v2037
      %v2046 = vxor.u32 %v2039, 2147483648
      %v2047 = vxor.u32 %v2040, 2147483648
      %v2048 = vxor.u32 %v2041, 2147483648
      %v2049 = vxor.u32 %v2042, 2147483648
      %v2050 = vxor.u32 %v2043, 2147483648
      %v2051 = vxor.u32 %v2044, 2147483648
      %v2052 = vxor.u32 %v2045, 2147483648
      %v2053 = vmul.f32 %v2046, 1.442695
      %v2054 = vpow.pop %v2053
      %v2055 = vmul.f32 %v2047, 1.442695
      %v2056 = vpow.pop %v2055
      %v2057 = vmul.f32 %v2048, 1.442695
      %v2058 = vpow.pop %v2057
      %v2059 = vmul.f32 %v2049, 1.442695
      %v2060 = vpow.pop %v2059
      %v2061 = vmul.f32 %v2050, 1.442695
      %v2062 = vpow.pop %v2061
      %v2063 = vmul.f32 %v2051, 1.442695
      %v2064 = vpow.pop %v2063
      %v2065 = vmul.f32 %v2052, 1.442695
      %v2066 = vpow.pop %v2065
      %v2067 = vadd.f32 %v2054, 1.0
      %v2068 = vadd.f32 %v2056, 1.0
      %v2069 = vadd.f32 %v2058, 1.0
      %v2070 = vadd.f32 %v2060, 1.0
      %v2071 = vadd.f32 %v2062, 1.0
      %v2072 = vadd.f32 %v2064, 1.0
      %v2073 = vadd.f32 %v2066, 1.0
      %v2074 = vrcp.pop %v2067
      %v2075 = vmul.f32 1.0, %v2074
      %v2076 = vrcp.pop %v2068
      %v2077 = vmul.f32 1.0, %v2076
      %v2078 = vrcp.pop %v2069
      %v2079 = vmul.f32 1.0, %v2078
      %v2080 = vrcp.pop %v2070
      %v2081 = vmul.f32 1.0, %v2080
      %v2082 = vrcp.pop %v2071
      %v2083 = vmul.f32 1.0, %v2082
      %v2084 = vrcp.pop %v2072
      %v2085 = vmul.f32 1.0, %v2084
      %v2086 = vrcp.pop %v2073
      %v2087 = vmul.f32 1.0, %v2086
      %2089 = vset.pattern.permute.xlu0 0
      %2090 = vperm.xlu0 %2089, %v2075
      %v2091 = vpop.permute.xlu0 %2090
      %2094 = vset.pattern.permute.xlu0 0
      %2095 = vperm.xlu0 %2094, %v2077
      %v2096 = vpop.permute.xlu0 %2095
      %2099 = vset.pattern.permute.xlu0 0
      %2100 = vperm.xlu0 %2099, %v2079
      %v2101 = vpop.permute.xlu0 %2100
      %2104 = vset.pattern.permute.xlu0 0
      %2105 = vperm.xlu0 %2104, %v2081
      %v2106 = vpop.permute.xlu0 %2105
      %2109 = vset.pattern.permute.xlu0 0
      %2110 = vperm.xlu0 %2109, %v2083
      %v2111 = vpop.permute.xlu0 %2110
      %2114 = vset.pattern.permute.xlu0 0
      %2115 = vperm.xlu0 %2114, %v2085
      %v2116 = vpop.permute.xlu0 %2115
      %2119 = vset.pattern.permute.xlu0 0
      %2120 = vperm.xlu0 %2119, %v2087
      %v2121 = vpop.permute.xlu0 %2120
      %v2123 = vmul.f32 %v2091, %v2000
      %v2124 = vmul.f32 %v2096, %v2005
      %v2125 = vmul.f32 %v2101, %v2010
      %v2126 = vmul.f32 %v2106, %v2015
      %v2127 = vmul.f32 %v2111, %v2020
      %v2128 = vmul.f32 %v2116, %v2025
      %v2129 = vmul.f32 %v2121, %v2030
      %v2131 = vlaneseq
      %v2132 = vshrl.u32 %v2131, 7
      %v2133 = vsub.s32 0, %v2132
      %v2134 = vrot.slane %v1102, %v2133
      %2135 = vrot.lane.b32.xlu0 %v2134, 1
      %v2136 = vpop.permute.xlu0 %2135
      %v2138 = vadd.f32 %v2123, %v2136
      %v2139 = vadd.f32 %v2124, %v2136
      %v2140 = vadd.f32 %v2125, %v2136
      %v2141 = vadd.f32 %v2126, %v2136
      %v2142 = vadd.f32 %v2127, %v2136
      %v2143 = vadd.f32 %v2128, %v2136
      %v2144 = vadd.f32 %v2129, %v2136
      %v2145 = vxor.u32 %v2138, 2147483648
      %v2146 = vxor.u32 %v2139, 2147483648
      %v2147 = vxor.u32 %v2140, 2147483648
      %v2148 = vxor.u32 %v2141, 2147483648
      %v2149 = vxor.u32 %v2142, 2147483648
      %v2150 = vxor.u32 %v2143, 2147483648
      %v2151 = vxor.u32 %v2144, 2147483648
      %v2152 = vmul.f32 %v2145, 1.442695
      %v2153 = vpow.pop %v2152
      %v2154 = vmul.f32 %v2146, 1.442695
      %v2155 = vpow.pop %v2154
      %v2156 = vmul.f32 %v2147, 1.442695
      %v2157 = vpow.pop %v2156
      %v2158 = vmul.f32 %v2148, 1.442695
      %v2159 = vpow.pop %v2158
      %v2160 = vmul.f32 %v2149, 1.442695
      %v2161 = vpow.pop %v2160
      %v2162 = vmul.f32 %v2150, 1.442695
      %v2163 = vpow.pop %v2162
      %v2164 = vmul.f32 %v2151, 1.442695
      %v2165 = vpow.pop %v2164
      %v2166 = vadd.f32 %v2153, 1.0
      %v2167 = vadd.f32 %v2155, 1.0
      %v2168 = vadd.f32 %v2157, 1.0
      %v2169 = vadd.f32 %v2159, 1.0
      %v2170 = vadd.f32 %v2161, 1.0
      %v2171 = vadd.f32 %v2163, 1.0
      %v2172 = vadd.f32 %v2165, 1.0
      %v2173 = vrcp.pop %v2166
      %v2174 = vmul.f32 1.0, %v2173
      %v2175 = vrcp.pop %v2167
      %v2176 = vmul.f32 1.0, %v2175
      %v2177 = vrcp.pop %v2168
      %v2178 = vmul.f32 1.0, %v2177
      %v2179 = vrcp.pop %v2169
      %v2180 = vmul.f32 1.0, %v2179
      %v2181 = vrcp.pop %v2170
      %v2182 = vmul.f32 1.0, %v2181
      %v2183 = vrcp.pop %v2171
      %v2184 = vmul.f32 1.0, %v2183
      %v2185 = vrcp.pop %v2172
      %v2186 = vmul.f32 1.0, %v2185
      %v2187 = vmul.f32 %v2138, %v2174
      %v2188 = vmul.f32 %v2139, %v2176
      %v2189 = vmul.f32 %v2140, %v2178
      %v2190 = vmul.f32 %v2141, %v2180
      %v2191 = vmul.f32 %v2142, %v2182
      %v2192 = vmul.f32 %v2143, %v2184
      %v2193 = vmul.f32 %v2144, %v2186
      %v2194 = vmul.f32 %v1905, %v2091
      %v2195 = vmul.f32 %v1906, %v2096
      %v2196 = vmul.f32 %v1907, %v2101
      %v2197 = vmul.f32 %v1908, %v2106
      %v2198 = vmul.f32 %v1909, %v2111
      %v2199 = vmul.f32 %v1910, %v2116
      %v2200 = vmul.f32 %v1911, %v2121
      %2208 = vrot.lane.b32.xlu0 %v2187, 127
      %v2209 = vpop.permute.xlu0 %2208
      %2210 = vrot.lane.b32.xlu0 %v2188, 127
      %v2211 = vpop.permute.xlu0 %2210
      %2212 = vrot.lane.b32.xlu0 %v2189, 127
      %v2213 = vpop.permute.xlu0 %2212
      %2214 = vrot.lane.b32.xlu0 %v2190, 127
      %v2215 = vpop.permute.xlu0 %2214
      %2216 = vrot.lane.b32.xlu0 %v2191, 127
      %v2217 = vpop.permute.xlu0 %2216
      %2218 = vrot.lane.b32.xlu0 %v2192, 127
      %v2219 = vpop.permute.xlu0 %2218
      %2220 = vrot.lane.b32.xlu0 %v2193, 127
      %v2221 = vpop.permute.xlu0 %2220
      %v2222 = vsel %vm1260, %v2209, 0
      %v2224 = vsel %vm1260, %v2211, 0
      %v2226 = vsel %vm1260, %v2213, 0
      %v2228 = vsel %vm1260, %v2215, 0
      %v2230 = vsel %vm1260, %v2217, 0
      %v2232 = vsel %vm1260, %v2219, 0
      %v2234 = vsel %vm1260, %v2221, 0
      %2236 = vmatprep.subr.mxu0 0.0
      %2237 = vmatpush1.msra.mxu0 0.0
      %2238 = vmatprep.subr.mxu0 0.0
      %2239 = vmatpush1.msra.mxu0 0.0
      %2240 = vmatprep.subr.mxu0 0.0
      %2241 = vmatpush1.msra.mxu0 0.0
      %2242 = vmatprep.subr.mxu0 0.0
      %2243 = vmatpush1.msra.mxu0 0.0
      %2244 = vmatprep.subr.mxu0 0.0
      %2245 = vmatpush1.msra.mxu0 0.0
      %2246 = vmatprep.subr.mxu0 0.0
      %2247 = vmatpush1.msra.mxu0 0.0
      %2248 = vmatprep.subr.mxu0 0.0
      %2249 = vmatpush1.msra.mxu0 0.0
      %2250 = vmatprep.subr.mxu0 0.0
      %2251 = vmatpush1.msra.mxu0 0.0
      %2252 = vmatprep.subr.mxu0 0.0
      %2253 = vmatpush1.msra.mxu0 0.0
      %2254 = vmatprep.subr.mxu0 0.0
      %2255 = vmatpush1.msra.mxu0 0.0
      %2256 = vmatprep.subr.mxu0 0.0
      %2257 = vmatpush1.msra.mxu0 0.0
      %2258 = vmatprep.subr.mxu0 0.0
      %2259 = vmatpush1.msra.mxu0 0.0
      %2260 = vmatprep.subr.mxu0 0.0
      %2261 = vmatpush1.msra.mxu0 0.0
      %2262 = vmatprep.subr.mxu0 0.0
      %2263 = vmatpush1.msra.mxu0 0.0
      %2264 = vmatprep.subr.mxu0 0.0
      %2265 = vmatpush1.msra.mxu0 %v1104
      %2266 = vmatprep.subr.mxu0 0.0
      %2267 = vmatpush1.msra.mxu0 %v1103
      %2268 = vmatprep.subr.mxu0 0.0
      %2269 = vmatpush2.msra.mxu0 0.0
      %2270 = vmatprep.subr.mxu0 0.0
      %2271 = vmatpush2.msra.mxu0 0.0
      %2272 = vmatprep.subr.mxu0 0.0
      %2273 = vmatpush2.msra.mxu0 0.0
      %2274 = vmatprep.subr.mxu0 0.0
      %2275 = vmatpush2.msra.mxu0 0.0
      %2276 = vmatprep.subr.mxu0 0.0
      %2277 = vmatpush2.msra.mxu0 0.0
      %2278 = vmatprep.subr.mxu0 0.0
      %2279 = vmatpush2.msra.mxu0 0.0
      %2280 = vmatprep.subr.mxu0 0.0
      %2281 = vmatpush2.msra.mxu0 0.0
      %2282 = vmatprep.subr.mxu0 0.0
      %2283 = vmatpush2.msra.mxu0 0.0
      %2284 = vmatprep.subr.mxu0 0.0
      %2285 = vmatpush2.msra.mxu0 0.0
      %2286 = vmatprep.subr.mxu0 0.0
      %2287 = vmatpush2.msra.mxu0 0.0
      %2288 = vmatprep.subr.mxu0 0.0
      %2289 = vmatpush2.msra.mxu0 0.0
      %2290 = vmatprep.subr.mxu0 0.0
      %2291 = vmatpush2.msra.mxu0 0.0
      %2292 = vmatprep.subr.mxu0 0.0
      %2293 = vmatpush2.msra.mxu0 0.0
      %2294 = vmatprep.subr.mxu0 0.0
      %2295 = vmatpush2.msra.mxu0 0.0
      %2296 = vmatprep.subr.mxu0 0.0
      %2297 = vmatpush2.msra.mxu0 0.0
      %2298 = vmatprep.subr.mxu0 0.0
      %2299 = vmatpush2.msra.mxu0 0.0
      %2300 = vmatprep.mubr.f32.mxu0 0.0
      %2301 = vmatmul.mubr.f32.gmra.mxu0 %v2222
      %v2302 = vpop.f32.mrf.mxu0
      %v2303 = vadd.f32 0.0, %v2302
      %v2304 = vpop.f32.mrf.mxu0
      %2305 = vmatprep.mubr.f32.mxu0 0.0
      %2306 = vmatmul.mubr.f32.gmra.mxu0 %v2224
      %v2307 = vpop.f32.mrf.mxu0
      %v2308 = vadd.f32 0.0, %v2307
      %v2309 = vpop.f32.mrf.mxu0
      %2310 = vmatprep.mubr.f32.mxu0 0.0
      %2311 = vmatmul.mubr.f32.gmra.mxu0 %v2226
      %v2312 = vpop.f32.mrf.mxu0
      %v2313 = vadd.f32 0.0, %v2312
      %v2314 = vpop.f32.mrf.mxu0
      %2315 = vmatprep.mubr.f32.mxu0 0.0
      %2316 = vmatmul.mubr.f32.gmra.mxu0 %v2228
      %v2317 = vpop.f32.mrf.mxu0
      %v2318 = vadd.f32 0.0, %v2317
      %v2319 = vpop.f32.mrf.mxu0
      %2320 = vmatprep.mubr.f32.mxu0 0.0
      %2321 = vmatmul.mubr.f32.gmra.mxu0 %v2230
      %v2322 = vpop.f32.mrf.mxu0
      %v2323 = vadd.f32 0.0, %v2322
      %v2324 = vpop.f32.mrf.mxu0
      %2325 = vmatprep.mubr.f32.mxu0 0.0
      %2326 = vmatmul.mubr.f32.gmra.mxu0 %v2232
      %v2327 = vpop.f32.mrf.mxu0
      %v2328 = vadd.f32 0.0, %v2327
      %v2329 = vpop.f32.mrf.mxu0
      %2330 = vmatprep.mubr.f32.mxu0 0.0
      %2331 = vmatmul.mubr.f32.gmra.mxu0 %v2234
      %v2332 = vpop.f32.mrf.mxu0
      %v2333 = vadd.f32 0.0, %v2332
      %v2334 = vpop.f32.mrf.mxu0
      %2335 = vdwg.mxu0
      %2337 = vset.pattern.permute.xlu0 0
      %2338 = vperm.xlu0 %2337, %v2303
      %v2339 = vpop.permute.xlu0 %2338
      %2342 = vset.pattern.permute.xlu0 0
      %2343 = vperm.xlu0 %2342, %v2308
      %v2344 = vpop.permute.xlu0 %2343
      %2347 = vset.pattern.permute.xlu0 0
      %2348 = vperm.xlu0 %2347, %v2313
      %v2349 = vpop.permute.xlu0 %2348
      %2352 = vset.pattern.permute.xlu0 0
      %2353 = vperm.xlu0 %2352, %v2318
      %v2354 = vpop.permute.xlu0 %2353
      %2357 = vset.pattern.permute.xlu0 0
      %2358 = vperm.xlu0 %2357, %v2323
      %v2359 = vpop.permute.xlu0 %2358
      %2362 = vset.pattern.permute.xlu0 0
      %2363 = vperm.xlu0 %2362, %v2328
      %v2364 = vpop.permute.xlu0 %2363
      %2367 = vset.pattern.permute.xlu0 0
      %2368 = vperm.xlu0 %2367, %v2333
      %v2369 = vpop.permute.xlu0 %2368
      %v2371 = vmul.f32 %v1440, %v2339
      %v2372 = vmul.f32 %v1441, %v2344
      %v2373 = vmul.f32 %v1442, %v2349
      %v2374 = vmul.f32 %v1443, %v2354
      %v2375 = vmul.f32 %v1444, %v2359
      %v2376 = vmul.f32 %v1445, %v2364
      %v2377 = vmul.f32 %v1446, %v2369
      %v2378 = vsel %vm1260, %v2194, %v2371
      %v2379 = vsel %vm1260, %v2195, %v2372
      %v2380 = vsel %vm1260, %v2196, %v2373
      %v2381 = vsel %vm1260, %v2197, %v2374
      %v2382 = vsel %vm1260, %v2198, %v2375
      %v2383 = vsel %vm1260, %v2199, %v2376
      %v2384 = vsel %vm1260, %v2200, %v2377
      %vm2385 = vcmask 457728
      %v2387 = vsel %vm2385, %v1168, 0
      %2389 = vmatprep.subr.mxu0 0.0
      %2390 = vmatpush1.msra.mxu0 0.0
      %2391 = vmatprep.subr.mxu0 0.0
      %2392 = vmatpush1.msra.mxu0 0.0
      %2393 = vmatprep.subr.mxu0 0.0
      %2394 = vmatpush1.msra.mxu0 0.0
      %2395 = vmatprep.subr.mxu0 0.0
      %2396 = vmatpush1.msra.mxu0 0.0
      %2397 = vmatprep.subr.mxu0 0.0
      %2398 = vmatpush1.msra.mxu0 0.0
      %2399 = vmatprep.subr.mxu0 0.0
      %2400 = vmatpush1.msra.mxu0 0.0
      %2401 = vmatprep.subr.mxu0 0.0
      %2402 = vmatpush1.msra.mxu0 0.0
      %2403 = vmatprep.subr.mxu0 0.0
      %2404 = vmatpush1.msra.mxu0 0.0
      %2405 = vmatprep.subr.mxu0 0.0
      %2406 = vmatpush1.msra.mxu0 0.0
      %2407 = vmatprep.subr.mxu0 0.0
      %2408 = vmatpush1.msra.mxu0 %v2384
      %2409 = vmatprep.subr.mxu0 0.0
      %2410 = vmatpush1.msra.mxu0 %v2383
      %2411 = vmatprep.subr.mxu0 0.0
      %2412 = vmatpush1.msra.mxu0 %v2382
      %2413 = vmatprep.subr.mxu0 0.0
      %2414 = vmatpush1.msra.mxu0 %v2381
      %2415 = vmatprep.subr.mxu0 0.0
      %2416 = vmatpush1.msra.mxu0 %v2380
      %2417 = vmatprep.subr.mxu0 0.0
      %2418 = vmatpush1.msra.mxu0 %v2379
      %2419 = vmatprep.subr.mxu0 0.0
      %2420 = vmatpush1.msra.mxu0 %v2378
      %2421 = vmatprep.subr.mxu0 0.0
      %2422 = vmatpush2.msra.mxu0 0.0
      %2423 = vmatprep.subr.mxu0 0.0
      %2424 = vmatpush2.msra.mxu0 0.0
      %2425 = vmatprep.subr.mxu0 0.0
      %2426 = vmatpush2.msra.mxu0 0.0
      %2427 = vmatprep.subr.mxu0 0.0
      %2428 = vmatpush2.msra.mxu0 0.0
      %2429 = vmatprep.subr.mxu0 0.0
      %2430 = vmatpush2.msra.mxu0 0.0
      %2431 = vmatprep.subr.mxu0 0.0
      %2432 = vmatpush2.msra.mxu0 0.0
      %2433 = vmatprep.subr.mxu0 0.0
      %2434 = vmatpush2.msra.mxu0 0.0
      %2435 = vmatprep.subr.mxu0 0.0
      %2436 = vmatpush2.msra.mxu0 0.0
      %2437 = vmatprep.subr.mxu0 0.0
      %2438 = vmatpush2.msra.mxu0 0.0
      %2439 = vmatprep.subr.mxu0 0.0
      %2440 = vmatpush2.msra.mxu0 0.0
      %2441 = vmatprep.subr.mxu0 0.0
      %2442 = vmatpush2.msra.mxu0 0.0
      %2443 = vmatprep.subr.mxu0 0.0
      %2444 = vmatpush2.msra.mxu0 0.0
      %2445 = vmatprep.subr.mxu0 0.0
      %2446 = vmatpush2.msra.mxu0 0.0
      %2447 = vmatprep.subr.mxu0 0.0
      %2448 = vmatpush2.msra.mxu0 0.0
      %2449 = vmatprep.subr.mxu0 0.0
      %2450 = vmatpush2.msra.mxu0 0.0
      %2451 = vmatprep.subr.mxu0 0.0
      %2452 = vmatpush2.msra.mxu0 0.0
      %2453 = vmatprep.mubr.f32.mxu0 0.0
      %2454 = vmatmul.mubr.f32.gmra.mxu0 %v2387
      %v2455 = vpop.f32.mrf.mxu0
      %v2456 = vadd.f32 0.0, %v2455
      %v2457 = vpop.f32.mrf.mxu0
      %2458 = vdwg.mxu0
      %2460 = vset.pattern.permute.xlu0 0
      %2461 = vperm.xlu0 %2460, %v1169
      %v2462 = vpop.permute.xlu0 %2461
      %v2464 = vmul.f32 %v2456, %v2462
      %2466 = vrot.lane.b32.xlu0 %v2464, 112
      %v2467 = vpop.permute.xlu0 %2466
      %v2469 = vadd.f32 %v1255, %v2467
      %2471 = vrot.lane.b32.xlu0 %v2456, 16
      %v2472 = vpop.permute.xlu0 %2471
      %v2474 = vsel %vm1260, %v1252, %v2472
      %v2476 = vlaneseq
      %v2477 = vshrl.u32 %v2476, 7
      %v2478 = vsub.s32 0, %v2477
      %v2479 = vrot.slane %v1109, %v2478
      %v2482 = vsel %vm1552, %v2474, 0
      %2484 = vmatprep.subr.mxu0 0.0
      %2485 = vmatpush1.msra.mxu0 0.0
      %2486 = vmatprep.subr.mxu0 0.0
      %2487 = vmatpush1.msra.mxu0 0.0
      %2488 = vmatprep.subr.mxu0 0.0
      %2489 = vmatpush1.msra.mxu0 0.0
      %2490 = vmatprep.subr.mxu0 0.0
      %2491 = vmatpush1.msra.mxu0 0.0
      %2492 = vmatprep.subr.mxu0 0.0
      %2493 = vmatpush1.msra.mxu0 0.0
      %2494 = vmatprep.subr.mxu0 0.0
      %2495 = vmatpush1.msra.mxu0 0.0
      %2496 = vmatprep.subr.mxu0 0.0
      %2497 = vmatpush1.msra.mxu0 0.0
      %2498 = vmatprep.subr.mxu0 0.0
      %2499 = vmatpush1.msra.mxu0 0.0
      %2500 = vmatprep.subr.mxu0 0.0
      %2501 = vmatpush1.msra.mxu0 0.0
      %2502 = vmatprep.subr.mxu0 0.0
      %2503 = vmatpush1.msra.mxu0 0.0
      %2504 = vmatprep.subr.mxu0 0.0
      %2505 = vmatpush1.msra.mxu0 0.0
      %2506 = vmatprep.subr.mxu0 0.0
      %2507 = vmatpush1.msra.mxu0 0.0
      %2508 = vmatprep.subr.mxu0 0.0
      %2509 = vmatpush1.msra.mxu0 %v1108
      %2510 = vmatprep.subr.mxu0 0.0
      %2511 = vmatpush1.msra.mxu0 %v1107
      %2512 = vmatprep.subr.mxu0 0.0
      %2513 = vmatpush1.msra.mxu0 %v1106
      %2514 = vmatprep.subr.mxu0 0.0
      %2515 = vmatpush1.msra.mxu0 %v1105
      %2516 = vmatprep.subr.mxu0 0.0
      %2517 = vmatpush2.msra.mxu0 0.0
      %2518 = vmatprep.subr.mxu0 0.0
      %2519 = vmatpush2.msra.mxu0 0.0
      %2520 = vmatprep.subr.mxu0 0.0
      %2521 = vmatpush2.msra.mxu0 0.0
      %2522 = vmatprep.subr.mxu0 0.0
      %2523 = vmatpush2.msra.mxu0 0.0
      %2524 = vmatprep.subr.mxu0 0.0
      %2525 = vmatpush2.msra.mxu0 0.0
      %2526 = vmatprep.subr.mxu0 0.0
      %2527 = vmatpush2.msra.mxu0 0.0
      %2528 = vmatprep.subr.mxu0 0.0
      %2529 = vmatpush2.msra.mxu0 0.0
      %2530 = vmatprep.subr.mxu0 0.0
      %2531 = vmatpush2.msra.mxu0 0.0
      %2532 = vmatprep.subr.mxu0 0.0
      %2533 = vmatpush2.msra.mxu0 0.0
      %2534 = vmatprep.subr.mxu0 0.0
      %2535 = vmatpush2.msra.mxu0 0.0
      %2536 = vmatprep.subr.mxu0 0.0
      %2537 = vmatpush2.msra.mxu0 0.0
      %2538 = vmatprep.subr.mxu0 0.0
      %2539 = vmatpush2.msra.mxu0 0.0
      %2540 = vmatprep.subr.mxu0 0.0
      %2541 = vmatpush2.msra.mxu0 0.0
      %2542 = vmatprep.subr.mxu0 0.0
      %2543 = vmatpush2.msra.mxu0 0.0
      %2544 = vmatprep.subr.mxu0 0.0
      %2545 = vmatpush2.msra.mxu0 0.0
      %2546 = vmatprep.subr.mxu0 0.0
      %2547 = vmatpush2.msra.mxu0 0.0
      %2548 = vmatprep.mubr.f32.mxu0 0.0
      %2549 = vmatmul.mubr.f32.gmra.mxu0 %v2482
      %v2550 = vpop.f32.mrf.mxu0
      %v2551 = vadd.f32 %v2479, %v2550
      %v2552 = vpop.f32.mrf.mxu0
      %2553 = vdwg.mxu0
      %v2554 = vxor.u32 %v2551, 2147483648
      %v2555 = vmul.f32 %v2554, 1.442695
      %v2556 = vpow.pop %v2555
      %v2557 = vadd.f32 %v2556, 1.0
      %v2558 = vrcp.pop %v2557
      %v2559 = vmul.f32 1.0, %v2558
      %v2560 = vmul.f32 %v2551, %v2559
      %v2562 = vsel %vm1260, %v2560, 0
      %2564 = vmatprep.subr.mxu0 0.0
      %2565 = vmatpush1.msra.mxu0 0.0
      %2566 = vmatprep.subr.mxu0 0.0
      %2567 = vmatpush1.msra.mxu0 0.0
      %2568 = vmatprep.subr.mxu0 0.0
      %2569 = vmatpush1.msra.mxu0 0.0
      %2570 = vmatprep.subr.mxu0 0.0
      %2571 = vmatpush1.msra.mxu0 0.0
      %2572 = vmatprep.subr.mxu0 0.0
      %2573 = vmatpush1.msra.mxu0 0.0
      %2574 = vmatprep.subr.mxu0 0.0
      %2575 = vmatpush1.msra.mxu0 0.0
      %2576 = vmatprep.subr.mxu0 0.0
      %2577 = vmatpush1.msra.mxu0 0.0
      %2578 = vmatprep.subr.mxu0 0.0
      %2579 = vmatpush1.msra.mxu0 0.0
      %2580 = vmatprep.subr.mxu0 0.0
      %2581 = vmatpush1.msra.mxu0 0.0
      %2582 = vmatprep.subr.mxu0 0.0
      %2583 = vmatpush1.msra.mxu0 0.0
      %2584 = vmatprep.subr.mxu0 0.0
      %2585 = vmatpush1.msra.mxu0 0.0
      %2586 = vmatprep.subr.mxu0 0.0
      %2587 = vmatpush1.msra.mxu0 0.0
      %2588 = vmatprep.subr.mxu0 0.0
      %2589 = vmatpush1.msra.mxu0 0.0
      %2590 = vmatprep.subr.mxu0 0.0
      %2591 = vmatpush1.msra.mxu0 0.0
      %2592 = vmatprep.subr.mxu0 0.0
      %2593 = vmatpush1.msra.mxu0 %v1111
      %2594 = vmatprep.subr.mxu0 0.0
      %2595 = vmatpush1.msra.mxu0 %v1110
      %2596 = vmatprep.subr.mxu0 0.0
      %2597 = vmatpush2.msra.mxu0 0.0
      %2598 = vmatprep.subr.mxu0 0.0
      %2599 = vmatpush2.msra.mxu0 0.0
      %2600 = vmatprep.subr.mxu0 0.0
      %2601 = vmatpush2.msra.mxu0 0.0
      %2602 = vmatprep.subr.mxu0 0.0
      %2603 = vmatpush2.msra.mxu0 0.0
      %2604 = vmatprep.subr.mxu0 0.0
      %2605 = vmatpush2.msra.mxu0 0.0
      %2606 = vmatprep.subr.mxu0 0.0
      %2607 = vmatpush2.msra.mxu0 0.0
      %2608 = vmatprep.subr.mxu0 0.0
      %2609 = vmatpush2.msra.mxu0 0.0
      %2610 = vmatprep.subr.mxu0 0.0
      %2611 = vmatpush2.msra.mxu0 0.0
      %2612 = vmatprep.subr.mxu0 0.0
      %2613 = vmatpush2.msra.mxu0 0.0
      %2614 = vmatprep.subr.mxu0 0.0
      %2615 = vmatpush2.msra.mxu0 0.0
      %2616 = vmatprep.subr.mxu0 0.0
      %2617 = vmatpush2.msra.mxu0 0.0
      %2618 = vmatprep.subr.mxu0 0.0
      %2619 = vmatpush2.msra.mxu0 0.0
      %2620 = vmatprep.subr.mxu0 0.0
      %2621 = vmatpush2.msra.mxu0 0.0
      %2622 = vmatprep.subr.mxu0 0.0
      %2623 = vmatpush2.msra.mxu0 0.0
      %2624 = vmatprep.subr.mxu0 0.0
      %2625 = vmatpush2.msra.mxu0 0.0
      %2626 = vmatprep.subr.mxu0 0.0
      %2627 = vmatpush2.msra.mxu0 0.0
      %2628 = vmatprep.mubr.f32.mxu0 0.0
      %2629 = vmatmul.mubr.f32.gmra.mxu0 %v2562
      %v2630 = vpop.f32.mrf.mxu0
      %v2631 = vadd.f32 0.0, %v2630
      %v2632 = vpop.f32.mrf.mxu0
      %2633 = vdwg.mxu0
      %v2634 = vadd.f32 %v1252, %v2631
      %v2636 = vlaneseq
      %v2637 = vshrl.u32 %v2636, 7
      %v2638 = vsub.s32 0, %v2637
      %v2639 = vrot.slane %v1112, %v2638
      %v2641 = vadd.f32 %v2634, %v2639
      %2643 = vrot.lane.b32.xlu0 %v2469, 16
      %v2644 = vpop.permute.xlu0 %2643
      %v2646 = vsel %vm1260, %v2641, %v2644
      %2647 = vmatprep.subr.mxu0 0.0
      %2648 = vmatpush1.msra.mxu0 0.0
      %2649 = vmatprep.subr.mxu0 0.0
      %2650 = vmatpush1.msra.mxu0 0.0
      %2651 = vmatprep.subr.mxu0 0.0
      %2652 = vmatpush1.msra.mxu0 0.0
      %2653 = vmatprep.subr.mxu0 0.0
      %2654 = vmatpush1.msra.mxu0 0.0
      %2655 = vmatprep.subr.mxu0 0.0
      %2656 = vmatpush1.msra.mxu0 0.0
      %2657 = vmatprep.subr.mxu0 0.0
      %2658 = vmatpush1.msra.mxu0 0.0
      %2659 = vmatprep.subr.mxu0 0.0
      %2660 = vmatpush1.msra.mxu0 0.0
      %2661 = vmatprep.subr.mxu0 0.0
      %2662 = vmatpush1.msra.mxu0 0.0
      %2663 = vmatprep.subr.mxu0 0.0
      %2664 = vmatpush1.msra.mxu0 0.0
      %2665 = vmatprep.subr.mxu0 0.0
      %2666 = vmatpush1.msra.mxu0 0.0
      %2667 = vmatprep.subr.mxu0 0.0
      %2668 = vmatpush1.msra.mxu0 0.0
      %2669 = vmatprep.subr.mxu0 0.0
      %2670 = vmatpush1.msra.mxu0 0.0
      %2671 = vmatprep.subr.mxu0 0.0
      %2672 = vmatpush1.msra.mxu0 0.0
      %2673 = vmatprep.subr.mxu0 0.0
      %2674 = vmatpush1.msra.mxu0 0.0
      %2675 = vmatprep.subr.mxu0 0.0
      %2676 = vmatpush1.msra.mxu0 0.0
      %2677 = vmatprep.subr.mxu0 0.0
      %2678 = vmatpush1.msra.mxu0 %v2646
      %2679 = vmatprep.subr.mxu0 0.0
      %2680 = vmatpush2.msra.mxu0 0.0
      %2681 = vmatprep.subr.mxu0 0.0
      %2682 = vmatpush2.msra.mxu0 0.0
      %2683 = vmatprep.subr.mxu0 0.0
      %2684 = vmatpush2.msra.mxu0 0.0
      %2685 = vmatprep.subr.mxu0 0.0
      %2686 = vmatpush2.msra.mxu0 0.0
      %2687 = vmatprep.subr.mxu0 0.0
      %2688 = vmatpush2.msra.mxu0 0.0
      %2689 = vmatprep.subr.mxu0 0.0
      %2690 = vmatpush2.msra.mxu0 0.0
      %2691 = vmatprep.subr.mxu0 0.0
      %2692 = vmatpush2.msra.mxu0 0.0
      %2693 = vmatprep.subr.mxu0 0.0
      %2694 = vmatpush2.msra.mxu0 0.0
      %2695 = vmatprep.subr.mxu0 0.0
      %2696 = vmatpush2.msra.mxu0 0.0
      %2697 = vmatprep.subr.mxu0 0.0
      %2698 = vmatpush2.msra.mxu0 0.0
      %2699 = vmatprep.subr.mxu0 0.0
      %2700 = vmatpush2.msra.mxu0 0.0
      %2701 = vmatprep.subr.mxu0 0.0
      %2702 = vmatpush2.msra.mxu0 0.0
      %2703 = vmatprep.subr.mxu0 0.0
      %2704 = vmatpush2.msra.mxu0 0.0
      %2705 = vmatprep.subr.mxu0 0.0
      %2706 = vmatpush2.msra.mxu0 0.0
      %2707 = vmatprep.subr.mxu0 0.0
      %2708 = vmatpush2.msra.mxu0 0.0
      %2709 = vmatprep.subr.mxu0 0.0
      %2710 = vmatpush2.msra.mxu0 0.0
      %2711 = vmatprep.mubr.f32.mxu0 0.0
      %2712 = vmatmul.mubr.f32.gmra.mxu0 %v1264
      %v2713 = vpop.f32.mrf.mxu0
      %v2714 = vadd.f32 0.0, %v2713
      %v2715 = vpop.f32.mrf.mxu0
      %2716 = vmatprep.mubr.f32.mxu0 0.0
      %2717 = vmatmul.mubr.f32.gmra.mxu0 %v1267
      %v2718 = vpop.f32.mrf.mxu0
      %v2719 = vadd.f32 0.0, %v2718
      %v2720 = vpop.f32.mrf.mxu0
      %2721 = vmatprep.mubr.f32.mxu0 0.0
      %2722 = vmatmul.mubr.f32.gmra.mxu0 %v1270
      %v2723 = vpop.f32.mrf.mxu0
      %v2724 = vadd.f32 0.0, %v2723
      %v2725 = vpop.f32.mrf.mxu0
      %2726 = vmatprep.mubr.f32.mxu0 0.0
      %2727 = vmatmul.mubr.f32.gmra.mxu0 %v1273
      %v2728 = vpop.f32.mrf.mxu0
      %v2729 = vadd.f32 0.0, %v2728
      %v2730 = vpop.f32.mrf.mxu0
      %2731 = vmatprep.mubr.f32.mxu0 0.0
      %2732 = vmatmul.mubr.f32.gmra.mxu0 %v1276
      %v2733 = vpop.f32.mrf.mxu0
      %v2734 = vadd.f32 0.0, %v2733
      %v2735 = vpop.f32.mrf.mxu0
      %2736 = vmatprep.mubr.f32.mxu0 0.0
      %2737 = vmatmul.mubr.f32.gmra.mxu0 %v1279
      %v2738 = vpop.f32.mrf.mxu0
      %v2739 = vadd.f32 0.0, %v2738
      %v2740 = vpop.f32.mrf.mxu0
      %2741 = vmatprep.mubr.f32.mxu0 0.0
      %2742 = vmatmul.mubr.f32.gmra.mxu0 %v1282
      %v2743 = vpop.f32.mrf.mxu0
      %v2744 = vadd.f32 0.0, %v2743
      %v2745 = vpop.f32.mrf.mxu0
      %2746 = vmatprep.mubr.f32.mxu0 0.0
      %2747 = vmatmul.mubr.f32.gmra.mxu0 %v1285
      %v2748 = vpop.f32.mrf.mxu0
      %v2749 = vadd.f32 0.0, %v2748
      %v2750 = vpop.f32.mrf.mxu0
      %2751 = vmatprep.mubr.f32.mxu0 0.0
      %2752 = vmatmul.mubr.f32.gmra.mxu0 %v1288
      %v2753 = vpop.f32.mrf.mxu0
      %v2754 = vadd.f32 0.0, %v2753
      %v2755 = vpop.f32.mrf.mxu0
      %2756 = vmatprep.mubr.f32.mxu0 0.0
      %2757 = vmatmul.mubr.f32.gmra.mxu0 %v1291
      %v2758 = vpop.f32.mrf.mxu0
      %v2759 = vadd.f32 0.0, %v2758
      %v2760 = vpop.f32.mrf.mxu0
      %2761 = vmatprep.mubr.f32.mxu0 0.0
      %2762 = vmatmul.mubr.f32.gmra.mxu0 %v1294
      %v2763 = vpop.f32.mrf.mxu0
      %v2764 = vadd.f32 0.0, %v2763
      %v2765 = vpop.f32.mrf.mxu0
      %2766 = vmatprep.mubr.f32.mxu0 0.0
      %2767 = vmatmul.mubr.f32.gmra.mxu0 %v1297
      %v2768 = vpop.f32.mrf.mxu0
      %v2769 = vadd.f32 0.0, %v2768
      %v2770 = vpop.f32.mrf.mxu0
      %2771 = vmatprep.mubr.f32.mxu0 0.0
      %2772 = vmatmul.mubr.f32.gmra.mxu0 %v1300
      %v2773 = vpop.f32.mrf.mxu0
      %v2774 = vadd.f32 0.0, %v2773
      %v2775 = vpop.f32.mrf.mxu0
      %2776 = vmatprep.mubr.f32.mxu0 0.0
      %2777 = vmatmul.mubr.f32.gmra.mxu0 %v1303
      %v2778 = vpop.f32.mrf.mxu0
      %v2779 = vadd.f32 0.0, %v2778
      %v2780 = vpop.f32.mrf.mxu0
      %2781 = vdwg.mxu0
      %v2782 = vsub.f32 %v2714, %v2749
      %v2783 = vsub.f32 %v2719, %v2754
      %v2784 = vsub.f32 %v2724, %v2759
      %v2785 = vsub.f32 %v2729, %v2764
      %v2786 = vsub.f32 %v2734, %v2769
      %v2787 = vsub.f32 %v2739, %v2774
      %v2788 = vsub.f32 %v2744, %v2779
      %v2789 = vmul.f32 %v2782, %v2782
      %v2790 = vmul.f32 %v2783, %v2783
      %v2791 = vmul.f32 %v2784, %v2784
      %v2792 = vmul.f32 %v2785, %v2785
      %v2793 = vmul.f32 %v2786, %v2786
      %v2794 = vmul.f32 %v2787, %v2787
      %v2795 = vmul.f32 %v2788, %v2788
      %2803 = vrot.lane.b32.xlu0 %v2789, 112
      %v2804 = vpop.permute.xlu0 %2803
      %2805 = vrot.lane.b32.xlu0 %v2790, 112
      %v2806 = vpop.permute.xlu0 %2805
      %2807 = vrot.lane.b32.xlu0 %v2791, 112
      %v2808 = vpop.permute.xlu0 %2807
      %2809 = vrot.lane.b32.xlu0 %v2792, 112
      %v2810 = vpop.permute.xlu0 %2809
      %2811 = vrot.lane.b32.xlu0 %v2793, 112
      %v2812 = vpop.permute.xlu0 %2811
      %2813 = vrot.lane.b32.xlu0 %v2794, 112
      %v2814 = vpop.permute.xlu0 %2813
      %2815 = vrot.lane.b32.xlu0 %v2795, 112
      %v2816 = vpop.permute.xlu0 %2815
      %v2824 = vsel %vm1482, %v2804, 0.0
      %2825 = vadd.xlane.f32.xlu0 %v2824
      %v2826 = vpop.xlane.xlu0 %2825
      %v2827 = vsel %vm1482, %v2806, 0.0
      %2828 = vadd.xlane.f32.xlu0 %v2827
      %v2829 = vpop.xlane.xlu0 %2828
      %v2830 = vsel %vm1482, %v2808, 0.0
      %2831 = vadd.xlane.f32.xlu0 %v2830
      %v2832 = vpop.xlane.xlu0 %2831
      %v2833 = vsel %vm1482, %v2810, 0.0
      %2834 = vadd.xlane.f32.xlu0 %v2833
      %v2835 = vpop.xlane.xlu0 %2834
      %v2836 = vsel %vm1482, %v2812, 0.0
      %2837 = vadd.xlane.f32.xlu0 %v2836
      %v2838 = vpop.xlane.xlu0 %2837
      %v2839 = vsel %vm1482, %v2814, 0.0
      %2840 = vadd.xlane.f32.xlu0 %v2839
      %v2841 = vpop.xlane.xlu0 %2840
      %v2842 = vsel %vm1482, %v2816, 0.0
      %2843 = vadd.xlane.f32.xlu0 %v2842
      %v2844 = vpop.xlane.xlu0 %2843
      %2852 = vrot.lane.b32.xlu0 %v2749, 16
      %v2853 = vpop.permute.xlu0 %2852
      %2854 = vrot.lane.b32.xlu0 %v2754, 16
      %v2855 = vpop.permute.xlu0 %2854
      %2856 = vrot.lane.b32.xlu0 %v2759, 16
      %v2857 = vpop.permute.xlu0 %2856
      %2858 = vrot.lane.b32.xlu0 %v2764, 16
      %v2859 = vpop.permute.xlu0 %2858
      %2860 = vrot.lane.b32.xlu0 %v2769, 16
      %v2861 = vpop.permute.xlu0 %2860
      %2862 = vrot.lane.b32.xlu0 %v2774, 16
      %v2863 = vpop.permute.xlu0 %2862
      %2864 = vrot.lane.b32.xlu0 %v2779, 16
      %v2865 = vpop.permute.xlu0 %2864
      %v2873 = vsel %vm1260, %v2714, %v2853
      %v2874 = vsel %vm1260, %v2719, %v2855
      %v2875 = vsel %vm1260, %v2724, %v2857
      %v2876 = vsel %vm1260, %v2729, %v2859
      %v2877 = vsel %vm1260, %v2734, %v2861
      %v2878 = vsel %vm1260, %v2739, %v2863
      %v2879 = vsel %vm1260, %v2744, %v2865
      %v2881 = vlaneseq
      %v2882 = vshrl.u32 %v2881, 7
      %v2883 = vsub.s32 0, %v2882
      %v2884 = vrot.slane %v1117, %v2883
      %v2886 = vmul.f32 %v2826, %v2884
      %v2887 = vmul.f32 %v2829, %v2884
      %v2888 = vmul.f32 %v2832, %v2884
      %v2889 = vmul.f32 %v2835, %v2884
      %v2890 = vmul.f32 %v2838, %v2884
      %v2891 = vmul.f32 %v2841, %v2884
      %v2892 = vmul.f32 %v2844, %v2884
      %v2894 = vsel %vm1552, %v2873, 0
      %v2897 = vsel %vm1552, %v2874, 0
      %v2900 = vsel %vm1552, %v2875, 0
      %v2903 = vsel %vm1552, %v2876, 0
      %v2906 = vsel %vm1552, %v2877, 0
      %v2909 = vsel %vm1552, %v2878, 0
      %v2912 = vsel %vm1552, %v2879, 0
      %2914 = vmatprep.subr.mxu0 0.0
      %2915 = vmatpush1.msra.mxu0 0.0
      %2916 = vmatprep.subr.mxu0 0.0
      %2917 = vmatpush1.msra.mxu0 0.0
      %2918 = vmatprep.subr.mxu0 0.0
      %2919 = vmatpush1.msra.mxu0 0.0
      %2920 = vmatprep.subr.mxu0 0.0
      %2921 = vmatpush1.msra.mxu0 0.0
      %2922 = vmatprep.subr.mxu0 0.0
      %2923 = vmatpush1.msra.mxu0 0.0
      %2924 = vmatprep.subr.mxu0 0.0
      %2925 = vmatpush1.msra.mxu0 0.0
      %2926 = vmatprep.subr.mxu0 0.0
      %2927 = vmatpush1.msra.mxu0 0.0
      %2928 = vmatprep.subr.mxu0 0.0
      %2929 = vmatpush1.msra.mxu0 0.0
      %2930 = vmatprep.subr.mxu0 0.0
      %2931 = vmatpush1.msra.mxu0 0.0
      %2932 = vmatprep.subr.mxu0 0.0
      %2933 = vmatpush1.msra.mxu0 0.0
      %2934 = vmatprep.subr.mxu0 0.0
      %2935 = vmatpush1.msra.mxu0 0.0
      %2936 = vmatprep.subr.mxu0 0.0
      %2937 = vmatpush1.msra.mxu0 0.0
      %2938 = vmatprep.subr.mxu0 0.0
      %2939 = vmatpush1.msra.mxu0 %v1116
      %2940 = vmatprep.subr.mxu0 0.0
      %2941 = vmatpush1.msra.mxu0 %v1115
      %2942 = vmatprep.subr.mxu0 0.0
      %2943 = vmatpush1.msra.mxu0 %v1114
      %2944 = vmatprep.subr.mxu0 0.0
      %2945 = vmatpush1.msra.mxu0 %v1113
      %2946 = vmatprep.subr.mxu0 0.0
      %2947 = vmatpush2.msra.mxu0 0.0
      %2948 = vmatprep.subr.mxu0 0.0
      %2949 = vmatpush2.msra.mxu0 0.0
      %2950 = vmatprep.subr.mxu0 0.0
      %2951 = vmatpush2.msra.mxu0 0.0
      %2952 = vmatprep.subr.mxu0 0.0
      %2953 = vmatpush2.msra.mxu0 0.0
      %2954 = vmatprep.subr.mxu0 0.0
      %2955 = vmatpush2.msra.mxu0 0.0
      %2956 = vmatprep.subr.mxu0 0.0
      %2957 = vmatpush2.msra.mxu0 0.0
      %2958 = vmatprep.subr.mxu0 0.0
      %2959 = vmatpush2.msra.mxu0 0.0
      %2960 = vmatprep.subr.mxu0 0.0
      %2961 = vmatpush2.msra.mxu0 0.0
      %2962 = vmatprep.subr.mxu0 0.0
      %2963 = vmatpush2.msra.mxu0 0.0
      %2964 = vmatprep.subr.mxu0 0.0
      %2965 = vmatpush2.msra.mxu0 0.0
      %2966 = vmatprep.subr.mxu0 0.0
      %2967 = vmatpush2.msra.mxu0 0.0
      %2968 = vmatprep.subr.mxu0 0.0
      %2969 = vmatpush2.msra.mxu0 0.0
      %2970 = vmatprep.subr.mxu0 0.0
      %2971 = vmatpush2.msra.mxu0 0.0
      %2972 = vmatprep.subr.mxu0 0.0
      %2973 = vmatpush2.msra.mxu0 0.0
      %2974 = vmatprep.subr.mxu0 0.0
      %2975 = vmatpush2.msra.mxu0 0.0
      %2976 = vmatprep.subr.mxu0 0.0
      %2977 = vmatpush2.msra.mxu0 0.0
      %2978 = vmatprep.mubr.f32.mxu0 0.0
      %2979 = vmatmul.mubr.f32.gmra.mxu0 %v2894
      %v2980 = vpop.f32.mrf.mxu0
      %v2981 = vadd.f32 %v2886, %v2980
      %v2982 = vpop.f32.mrf.mxu0
      %2983 = vmatprep.mubr.f32.mxu0 0.0
      %2984 = vmatmul.mubr.f32.gmra.mxu0 %v2897
      %v2985 = vpop.f32.mrf.mxu0
      %v2986 = vadd.f32 %v2887, %v2985
      %v2987 = vpop.f32.mrf.mxu0
      %2988 = vmatprep.mubr.f32.mxu0 0.0
      %2989 = vmatmul.mubr.f32.gmra.mxu0 %v2900
      %v2990 = vpop.f32.mrf.mxu0
      %v2991 = vadd.f32 %v2888, %v2990
      %v2992 = vpop.f32.mrf.mxu0
      %2993 = vmatprep.mubr.f32.mxu0 0.0
      %2994 = vmatmul.mubr.f32.gmra.mxu0 %v2903
      %v2995 = vpop.f32.mrf.mxu0
      %v2996 = vadd.f32 %v2889, %v2995
      %v2997 = vpop.f32.mrf.mxu0
      %2998 = vmatprep.mubr.f32.mxu0 0.0
      %2999 = vmatmul.mubr.f32.gmra.mxu0 %v2906
      %v3000 = vpop.f32.mrf.mxu0
      %v3001 = vadd.f32 %v2890, %v3000
      %v3002 = vpop.f32.mrf.mxu0
      %3003 = vmatprep.mubr.f32.mxu0 0.0
      %3004 = vmatmul.mubr.f32.gmra.mxu0 %v2909
      %v3005 = vpop.f32.mrf.mxu0
      %v3006 = vadd.f32 %v2891, %v3005
      %v3007 = vpop.f32.mrf.mxu0
      %3008 = vmatprep.mubr.f32.mxu0 0.0
      %3009 = vmatmul.mubr.f32.gmra.mxu0 %v2912
      %v3010 = vpop.f32.mrf.mxu0
      %v3011 = vadd.f32 %v2892, %v3010
      %v3012 = vpop.f32.mrf.mxu0
      %3013 = vdwg.mxu0
      %v3015 = vlaneseq
      %v3016 = vshrl.u32 %v3015, 7
      %v3017 = vsub.s32 0, %v3016
      %v3018 = vrot.slane %v1118, %v3017
      %v3020 = vadd.f32 %v2981, %v3018
      %v3021 = vadd.f32 %v2986, %v3018
      %v3022 = vadd.f32 %v2991, %v3018
      %v3023 = vadd.f32 %v2996, %v3018
      %v3024 = vadd.f32 %v3001, %v3018
      %v3025 = vadd.f32 %v3006, %v3018
      %v3026 = vadd.f32 %v3011, %v3018
      %v3027 = vxor.u32 %v3020, 2147483648
      %v3028 = vxor.u32 %v3021, 2147483648
      %v3029 = vxor.u32 %v3022, 2147483648
      %v3030 = vxor.u32 %v3023, 2147483648
      %v3031 = vxor.u32 %v3024, 2147483648
      %v3032 = vxor.u32 %v3025, 2147483648
      %v3033 = vxor.u32 %v3026, 2147483648
      %v3034 = vmul.f32 %v3027, 1.442695
      %v3035 = vpow.pop %v3034
      %v3036 = vmul.f32 %v3028, 1.442695
      %v3037 = vpow.pop %v3036
      %v3038 = vmul.f32 %v3029, 1.442695
      %v3039 = vpow.pop %v3038
      %v3040 = vmul.f32 %v3030, 1.442695
      %v3041 = vpow.pop %v3040
      %v3042 = vmul.f32 %v3031, 1.442695
      %v3043 = vpow.pop %v3042
      %v3044 = vmul.f32 %v3032, 1.442695
      %v3045 = vpow.pop %v3044
      %v3046 = vmul.f32 %v3033, 1.442695
      %v3047 = vpow.pop %v3046
      %v3048 = vadd.f32 %v3035, 1.0
      %v3049 = vadd.f32 %v3037, 1.0
      %v3050 = vadd.f32 %v3039, 1.0
      %v3051 = vadd.f32 %v3041, 1.0
      %v3052 = vadd.f32 %v3043, 1.0
      %v3053 = vadd.f32 %v3045, 1.0
      %v3054 = vadd.f32 %v3047, 1.0
      %v3055 = vrcp.pop %v3048
      %v3056 = vmul.f32 1.0, %v3055
      %v3057 = vrcp.pop %v3049
      %v3058 = vmul.f32 1.0, %v3057
      %v3059 = vrcp.pop %v3050
      %v3060 = vmul.f32 1.0, %v3059
      %v3061 = vrcp.pop %v3051
      %v3062 = vmul.f32 1.0, %v3061
      %v3063 = vrcp.pop %v3052
      %v3064 = vmul.f32 1.0, %v3063
      %v3065 = vrcp.pop %v3053
      %v3066 = vmul.f32 1.0, %v3065
      %v3067 = vrcp.pop %v3054
      %v3068 = vmul.f32 1.0, %v3067
      %v3069 = vmul.f32 %v3020, %v3056
      %v3070 = vmul.f32 %v3021, %v3058
      %v3071 = vmul.f32 %v3022, %v3060
      %v3072 = vmul.f32 %v3023, %v3062
      %v3073 = vmul.f32 %v3024, %v3064
      %v3074 = vmul.f32 %v3025, %v3066
      %v3075 = vmul.f32 %v3026, %v3068
      %v3077 = vlaneseq
      %v3078 = vshrl.u32 %v3077, 7
      %v3079 = vsub.s32 0, %v3078
      %v3080 = vrot.slane %v1121, %v3079
      %v3083 = vsel %vm1260, %v3069, 0
      %v3086 = vsel %vm1260, %v3070, 0
      %v3089 = vsel %vm1260, %v3071, 0
      %v3092 = vsel %vm1260, %v3072, 0
      %v3095 = vsel %vm1260, %v3073, 0
      %v3098 = vsel %vm1260, %v3074, 0
      %v3101 = vsel %vm1260, %v3075, 0
      %3103 = vmatprep.subr.mxu0 0.0
      %3104 = vmatpush1.msra.mxu0 0.0
      %3105 = vmatprep.subr.mxu0 0.0
      %3106 = vmatpush1.msra.mxu0 0.0
      %3107 = vmatprep.subr.mxu0 0.0
      %3108 = vmatpush1.msra.mxu0 0.0
      %3109 = vmatprep.subr.mxu0 0.0
      %3110 = vmatpush1.msra.mxu0 0.0
      %3111 = vmatprep.subr.mxu0 0.0
      %3112 = vmatpush1.msra.mxu0 0.0
      %3113 = vmatprep.subr.mxu0 0.0
      %3114 = vmatpush1.msra.mxu0 0.0
      %3115 = vmatprep.subr.mxu0 0.0
      %3116 = vmatpush1.msra.mxu0 0.0
      %3117 = vmatprep.subr.mxu0 0.0
      %3118 = vmatpush1.msra.mxu0 0.0
      %3119 = vmatprep.subr.mxu0 0.0
      %3120 = vmatpush1.msra.mxu0 0.0
      %3121 = vmatprep.subr.mxu0 0.0
      %3122 = vmatpush1.msra.mxu0 0.0
      %3123 = vmatprep.subr.mxu0 0.0
      %3124 = vmatpush1.msra.mxu0 0.0
      %3125 = vmatprep.subr.mxu0 0.0
      %3126 = vmatpush1.msra.mxu0 0.0
      %3127 = vmatprep.subr.mxu0 0.0
      %3128 = vmatpush1.msra.mxu0 0.0
      %3129 = vmatprep.subr.mxu0 0.0
      %3130 = vmatpush1.msra.mxu0 0.0
      %3131 = vmatprep.subr.mxu0 0.0
      %3132 = vmatpush1.msra.mxu0 %v1120
      %3133 = vmatprep.subr.mxu0 0.0
      %3134 = vmatpush1.msra.mxu0 %v1119
      %3135 = vmatprep.subr.mxu0 0.0
      %3136 = vmatpush2.msra.mxu0 0.0
      %3137 = vmatprep.subr.mxu0 0.0
      %3138 = vmatpush2.msra.mxu0 0.0
      %3139 = vmatprep.subr.mxu0 0.0
      %3140 = vmatpush2.msra.mxu0 0.0
      %3141 = vmatprep.subr.mxu0 0.0
      %3142 = vmatpush2.msra.mxu0 0.0
      %3143 = vmatprep.subr.mxu0 0.0
      %3144 = vmatpush2.msra.mxu0 0.0
      %3145 = vmatprep.subr.mxu0 0.0
      %3146 = vmatpush2.msra.mxu0 0.0
      %3147 = vmatprep.subr.mxu0 0.0
      %3148 = vmatpush2.msra.mxu0 0.0
      %3149 = vmatprep.subr.mxu0 0.0
      %3150 = vmatpush2.msra.mxu0 0.0
      %3151 = vmatprep.subr.mxu0 0.0
      %3152 = vmatpush2.msra.mxu0 0.0
      %3153 = vmatprep.subr.mxu0 0.0
      %3154 = vmatpush2.msra.mxu0 0.0
      %3155 = vmatprep.subr.mxu0 0.0
      %3156 = vmatpush2.msra.mxu0 0.0
      %3157 = vmatprep.subr.mxu0 0.0
      %3158 = vmatpush2.msra.mxu0 0.0
      %3159 = vmatprep.subr.mxu0 0.0
      %3160 = vmatpush2.msra.mxu0 0.0
      %3161 = vmatprep.subr.mxu0 0.0
      %3162 = vmatpush2.msra.mxu0 0.0
      %3163 = vmatprep.subr.mxu0 0.0
      %3164 = vmatpush2.msra.mxu0 0.0
      %3165 = vmatprep.subr.mxu0 0.0
      %3166 = vmatpush2.msra.mxu0 0.0
      %3167 = vmatprep.mubr.f32.mxu0 0.0
      %3168 = vmatmul.mubr.f32.gmra.mxu0 %v3083
      %v3169 = vpop.f32.mrf.mxu0
      %v3170 = vadd.f32 %v3080, %v3169
      %v3171 = vpop.f32.mrf.mxu0
      %3172 = vmatprep.mubr.f32.mxu0 0.0
      %3173 = vmatmul.mubr.f32.gmra.mxu0 %v3086
      %v3174 = vpop.f32.mrf.mxu0
      %v3175 = vadd.f32 %v3080, %v3174
      %v3176 = vpop.f32.mrf.mxu0
      %3177 = vmatprep.mubr.f32.mxu0 0.0
      %3178 = vmatmul.mubr.f32.gmra.mxu0 %v3089
      %v3179 = vpop.f32.mrf.mxu0
      %v3180 = vadd.f32 %v3080, %v3179
      %v3181 = vpop.f32.mrf.mxu0
      %3182 = vmatprep.mubr.f32.mxu0 0.0
      %3183 = vmatmul.mubr.f32.gmra.mxu0 %v3092
      %v3184 = vpop.f32.mrf.mxu0
      %v3185 = vadd.f32 %v3080, %v3184
      %v3186 = vpop.f32.mrf.mxu0
      %3187 = vmatprep.mubr.f32.mxu0 0.0
      %3188 = vmatmul.mubr.f32.gmra.mxu0 %v3095
      %v3189 = vpop.f32.mrf.mxu0
      %v3190 = vadd.f32 %v3080, %v3189
      %v3191 = vpop.f32.mrf.mxu0
      %3192 = vmatprep.mubr.f32.mxu0 0.0
      %3193 = vmatmul.mubr.f32.gmra.mxu0 %v3098
      %v3194 = vpop.f32.mrf.mxu0
      %v3195 = vadd.f32 %v3080, %v3194
      %v3196 = vpop.f32.mrf.mxu0
      %3197 = vmatprep.mubr.f32.mxu0 0.0
      %3198 = vmatmul.mubr.f32.gmra.mxu0 %v3101
      %v3199 = vpop.f32.mrf.mxu0
      %v3200 = vadd.f32 %v3080, %v3199
      %v3201 = vpop.f32.mrf.mxu0
      %3202 = vdwg.mxu0
      %v3203 = vxor.u32 %v3170, 2147483648
      %v3204 = vxor.u32 %v3175, 2147483648
      %v3205 = vxor.u32 %v3180, 2147483648
      %v3206 = vxor.u32 %v3185, 2147483648
      %v3207 = vxor.u32 %v3190, 2147483648
      %v3208 = vxor.u32 %v3195, 2147483648
      %v3209 = vxor.u32 %v3200, 2147483648
      %v3210 = vmul.f32 %v3203, 1.442695
      %v3211 = vpow.pop %v3210
      %v3212 = vmul.f32 %v3204, 1.442695
      %v3213 = vpow.pop %v3212
      %v3214 = vmul.f32 %v3205, 1.442695
      %v3215 = vpow.pop %v3214
      %v3216 = vmul.f32 %v3206, 1.442695
      %v3217 = vpow.pop %v3216
      %v3218 = vmul.f32 %v3207, 1.442695
      %v3219 = vpow.pop %v3218
      %v3220 = vmul.f32 %v3208, 1.442695
      %v3221 = vpow.pop %v3220
      %v3222 = vmul.f32 %v3209, 1.442695
      %v3223 = vpow.pop %v3222
      %v3224 = vadd.f32 %v3211, 1.0
      %v3225 = vadd.f32 %v3213, 1.0
      %v3226 = vadd.f32 %v3215, 1.0
      %v3227 = vadd.f32 %v3217, 1.0
      %v3228 = vadd.f32 %v3219, 1.0
      %v3229 = vadd.f32 %v3221, 1.0
      %v3230 = vadd.f32 %v3223, 1.0
      %v3231 = vrcp.pop %v3224
      %v3232 = vmul.f32 1.0, %v3231
      %v3233 = vrcp.pop %v3225
      %v3234 = vmul.f32 1.0, %v3233
      %v3235 = vrcp.pop %v3226
      %v3236 = vmul.f32 1.0, %v3235
      %v3237 = vrcp.pop %v3227
      %v3238 = vmul.f32 1.0, %v3237
      %v3239 = vrcp.pop %v3228
      %v3240 = vmul.f32 1.0, %v3239
      %v3241 = vrcp.pop %v3229
      %v3242 = vmul.f32 1.0, %v3241
      %v3243 = vrcp.pop %v3230
      %v3244 = vmul.f32 1.0, %v3243
      %v3245 = vmul.f32 %v3170, %v3232
      %v3246 = vmul.f32 %v3175, %v3234
      %v3247 = vmul.f32 %v3180, %v3236
      %v3248 = vmul.f32 %v3185, %v3238
      %v3249 = vmul.f32 %v3190, %v3240
      %v3250 = vmul.f32 %v3195, %v3242
      %v3251 = vmul.f32 %v3200, %v3244
      %v3253 = vsel %vm1260, %v3245, 0
      %v3256 = vsel %vm1260, %v3246, 0
      %v3259 = vsel %vm1260, %v3247, 0
      %v3262 = vsel %vm1260, %v3248, 0
      %v3265 = vsel %vm1260, %v3249, 0
      %v3268 = vsel %vm1260, %v3250, 0
      %v3271 = vsel %vm1260, %v3251, 0
      %3273 = vmatprep.subr.mxu0 0.0
      %3274 = vmatpush1.msra.mxu0 0.0
      %3275 = vmatprep.subr.mxu0 0.0
      %3276 = vmatpush1.msra.mxu0 0.0
      %3277 = vmatprep.subr.mxu0 0.0
      %3278 = vmatpush1.msra.mxu0 0.0
      %3279 = vmatprep.subr.mxu0 0.0
      %3280 = vmatpush1.msra.mxu0 0.0
      %3281 = vmatprep.subr.mxu0 0.0
      %3282 = vmatpush1.msra.mxu0 0.0
      %3283 = vmatprep.subr.mxu0 0.0
      %3284 = vmatpush1.msra.mxu0 0.0
      %3285 = vmatprep.subr.mxu0 0.0
      %3286 = vmatpush1.msra.mxu0 0.0
      %3287 = vmatprep.subr.mxu0 0.0
      %3288 = vmatpush1.msra.mxu0 0.0
      %3289 = vmatprep.subr.mxu0 0.0
      %3290 = vmatpush1.msra.mxu0 0.0
      %3291 = vmatprep.subr.mxu0 0.0
      %3292 = vmatpush1.msra.mxu0 0.0
      %3293 = vmatprep.subr.mxu0 0.0
      %3294 = vmatpush1.msra.mxu0 0.0
      %3295 = vmatprep.subr.mxu0 0.0
      %3296 = vmatpush1.msra.mxu0 0.0
      %3297 = vmatprep.subr.mxu0 0.0
      %3298 = vmatpush1.msra.mxu0 0.0
      %3299 = vmatprep.subr.mxu0 0.0
      %3300 = vmatpush1.msra.mxu0 0.0
      %3301 = vmatprep.subr.mxu0 0.0
      %3302 = vmatpush1.msra.mxu0 %v1123
      %3303 = vmatprep.subr.mxu0 0.0
      %3304 = vmatpush1.msra.mxu0 %v1122
      %3305 = vmatprep.subr.mxu0 0.0
      %3306 = vmatpush2.msra.mxu0 0.0
      %3307 = vmatprep.subr.mxu0 0.0
      %3308 = vmatpush2.msra.mxu0 0.0
      %3309 = vmatprep.subr.mxu0 0.0
      %3310 = vmatpush2.msra.mxu0 0.0
      %3311 = vmatprep.subr.mxu0 0.0
      %3312 = vmatpush2.msra.mxu0 0.0
      %3313 = vmatprep.subr.mxu0 0.0
      %3314 = vmatpush2.msra.mxu0 0.0
      %3315 = vmatprep.subr.mxu0 0.0
      %3316 = vmatpush2.msra.mxu0 0.0
      %3317 = vmatprep.subr.mxu0 0.0
      %3318 = vmatpush2.msra.mxu0 0.0
      %3319 = vmatprep.subr.mxu0 0.0
      %3320 = vmatpush2.msra.mxu0 0.0
      %3321 = vmatprep.subr.mxu0 0.0
      %3322 = vmatpush2.msra.mxu0 0.0
      %3323 = vmatprep.subr.mxu0 0.0
      %3324 = vmatpush2.msra.mxu0 0.0
      %3325 = vmatprep.subr.mxu0 0.0
      %3326 = vmatpush2.msra.mxu0 0.0
      %3327 = vmatprep.subr.mxu0 0.0
      %3328 = vmatpush2.msra.mxu0 0.0
      %3329 = vmatprep.subr.mxu0 0.0
      %3330 = vmatpush2.msra.mxu0 0.0
      %3331 = vmatprep.subr.mxu0 0.0
      %3332 = vmatpush2.msra.mxu0 0.0
      %3333 = vmatprep.subr.mxu0 0.0
      %3334 = vmatpush2.msra.mxu0 0.0
      %3335 = vmatprep.subr.mxu0 0.0
      %3336 = vmatpush2.msra.mxu0 0.0
      %3337 = vmatprep.mubr.f32.mxu0 0.0
      %3338 = vmatmul.mubr.f32.gmra.mxu0 %v3253
      %v3339 = vpop.f32.mrf.mxu0
      %v3340 = vadd.f32 0.0, %v3339
      %v3341 = vpop.f32.mrf.mxu0
      %3342 = vmatprep.mubr.f32.mxu0 0.0
      %3343 = vmatmul.mubr.f32.gmra.mxu0 %v3256
      %v3344 = vpop.f32.mrf.mxu0
      %v3345 = vadd.f32 0.0, %v3344
      %v3346 = vpop.f32.mrf.mxu0
      %3347 = vmatprep.mubr.f32.mxu0 0.0
      %3348 = vmatmul.mubr.f32.gmra.mxu0 %v3259
      %v3349 = vpop.f32.mrf.mxu0
      %v3350 = vadd.f32 0.0, %v3349
      %v3351 = vpop.f32.mrf.mxu0
      %3352 = vmatprep.mubr.f32.mxu0 0.0
      %3353 = vmatmul.mubr.f32.gmra.mxu0 %v3262
      %v3354 = vpop.f32.mrf.mxu0
      %v3355 = vadd.f32 0.0, %v3354
      %v3356 = vpop.f32.mrf.mxu0
      %3357 = vmatprep.mubr.f32.mxu0 0.0
      %3358 = vmatmul.mubr.f32.gmra.mxu0 %v3265
      %v3359 = vpop.f32.mrf.mxu0
      %v3360 = vadd.f32 0.0, %v3359
      %v3361 = vpop.f32.mrf.mxu0
      %3362 = vmatprep.mubr.f32.mxu0 0.0
      %3363 = vmatmul.mubr.f32.gmra.mxu0 %v3268
      %v3364 = vpop.f32.mrf.mxu0
      %v3365 = vadd.f32 0.0, %v3364
      %v3366 = vpop.f32.mrf.mxu0
      %3367 = vmatprep.mubr.f32.mxu0 0.0
      %3368 = vmatmul.mubr.f32.gmra.mxu0 %v3271
      %v3369 = vpop.f32.mrf.mxu0
      %v3370 = vadd.f32 0.0, %v3369
      %v3371 = vpop.f32.mrf.mxu0
      %3372 = vdwg.mxu0
      %v3374 = vlaneseq
      %v3375 = vshrl.u32 %v3374, 7
      %v3376 = vsub.s32 0, %v3375
      %v3377 = vrot.slane %v1124, %v3376
      %v3379 = vadd.f32 %v3340, %v3377
      %v3380 = vadd.f32 %v3345, %v3377
      %v3381 = vadd.f32 %v3350, %v3377
      %v3382 = vadd.f32 %v3355, %v3377
      %v3383 = vadd.f32 %v3360, %v3377
      %v3384 = vadd.f32 %v3365, %v3377
      %v3385 = vadd.f32 %v3370, %v3377
      %v3386 = vxor.u32 %v3379, 2147483648
      %v3387 = vxor.u32 %v3380, 2147483648
      %v3388 = vxor.u32 %v3381, 2147483648
      %v3389 = vxor.u32 %v3382, 2147483648
      %v3390 = vxor.u32 %v3383, 2147483648
      %v3391 = vxor.u32 %v3384, 2147483648
      %v3392 = vxor.u32 %v3385, 2147483648
      %v3393 = vmul.f32 %v3386, 1.442695
      %v3394 = vpow.pop %v3393
      %v3395 = vmul.f32 %v3387, 1.442695
      %v3396 = vpow.pop %v3395
      %v3397 = vmul.f32 %v3388, 1.442695
      %v3398 = vpow.pop %v3397
      %v3399 = vmul.f32 %v3389, 1.442695
      %v3400 = vpow.pop %v3399
      %v3401 = vmul.f32 %v3390, 1.442695
      %v3402 = vpow.pop %v3401
      %v3403 = vmul.f32 %v3391, 1.442695
      %v3404 = vpow.pop %v3403
      %v3405 = vmul.f32 %v3392, 1.442695
      %v3406 = vpow.pop %v3405
      %v3407 = vadd.f32 %v3394, 1.0
      %v3408 = vadd.f32 %v3396, 1.0
      %v3409 = vadd.f32 %v3398, 1.0
      %v3410 = vadd.f32 %v3400, 1.0
      %v3411 = vadd.f32 %v3402, 1.0
      %v3412 = vadd.f32 %v3404, 1.0
      %v3413 = vadd.f32 %v3406, 1.0
      %v3414 = vrcp.pop %v3407
      %v3415 = vmul.f32 1.0, %v3414
      %v3416 = vrcp.pop %v3408
      %v3417 = vmul.f32 1.0, %v3416
      %v3418 = vrcp.pop %v3409
      %v3419 = vmul.f32 1.0, %v3418
      %v3420 = vrcp.pop %v3410
      %v3421 = vmul.f32 1.0, %v3420
      %v3422 = vrcp.pop %v3411
      %v3423 = vmul.f32 1.0, %v3422
      %v3424 = vrcp.pop %v3412
      %v3425 = vmul.f32 1.0, %v3424
      %v3426 = vrcp.pop %v3413
      %v3427 = vmul.f32 1.0, %v3426
      %3429 = vset.pattern.permute.xlu0 0
      %3430 = vperm.xlu0 %3429, %v3415
      %v3431 = vpop.permute.xlu0 %3430
      %3434 = vset.pattern.permute.xlu0 0
      %3435 = vperm.xlu0 %3434, %v3417
      %v3436 = vpop.permute.xlu0 %3435
      %3439 = vset.pattern.permute.xlu0 0
      %3440 = vperm.xlu0 %3439, %v3419
      %v3441 = vpop.permute.xlu0 %3440
      %3444 = vset.pattern.permute.xlu0 0
      %3445 = vperm.xlu0 %3444, %v3421
      %v3446 = vpop.permute.xlu0 %3445
      %3449 = vset.pattern.permute.xlu0 0
      %3450 = vperm.xlu0 %3449, %v3423
      %v3451 = vpop.permute.xlu0 %3450
      %3454 = vset.pattern.permute.xlu0 0
      %3455 = vperm.xlu0 %3454, %v3425
      %v3456 = vpop.permute.xlu0 %3455
      %3459 = vset.pattern.permute.xlu0 0
      %3460 = vperm.xlu0 %3459, %v3427
      %v3461 = vpop.permute.xlu0 %3460
      %v3463 = vmul.f32 %v3431, %v3340
      %v3464 = vmul.f32 %v3436, %v3345
      %v3465 = vmul.f32 %v3441, %v3350
      %v3466 = vmul.f32 %v3446, %v3355
      %v3467 = vmul.f32 %v3451, %v3360
      %v3468 = vmul.f32 %v3456, %v3365
      %v3469 = vmul.f32 %v3461, %v3370
      %v3471 = vlaneseq
      %v3472 = vshrl.u32 %v3471, 7
      %v3473 = vsub.s32 0, %v3472
      %v3474 = vrot.slane %v1125, %v3473
      %3475 = vrot.lane.b32.xlu0 %v3474, 1
      %v3476 = vpop.permute.xlu0 %3475
      %v3478 = vadd.f32 %v3463, %v3476
      %v3479 = vadd.f32 %v3464, %v3476
      %v3480 = vadd.f32 %v3465, %v3476
      %v3481 = vadd.f32 %v3466, %v3476
      %v3482 = vadd.f32 %v3467, %v3476
      %v3483 = vadd.f32 %v3468, %v3476
      %v3484 = vadd.f32 %v3469, %v3476
      %v3485 = vxor.u32 %v3478, 2147483648
      %v3486 = vxor.u32 %v3479, 2147483648
      %v3487 = vxor.u32 %v3480, 2147483648
      %v3488 = vxor.u32 %v3481, 2147483648
      %v3489 = vxor.u32 %v3482, 2147483648
      %v3490 = vxor.u32 %v3483, 2147483648
      %v3491 = vxor.u32 %v3484, 2147483648
      %v3492 = vmul.f32 %v3485, 1.442695
      %v3493 = vpow.pop %v3492
      %v3494 = vmul.f32 %v3486, 1.442695
      %v3495 = vpow.pop %v3494
      %v3496 = vmul.f32 %v3487, 1.442695
      %v3497 = vpow.pop %v3496
      %v3498 = vmul.f32 %v3488, 1.442695
      %v3499 = vpow.pop %v3498
      %v3500 = vmul.f32 %v3489, 1.442695
      %v3501 = vpow.pop %v3500
      %v3502 = vmul.f32 %v3490, 1.442695
      %v3503 = vpow.pop %v3502
      %v3504 = vmul.f32 %v3491, 1.442695
      %v3505 = vpow.pop %v3504
      %v3506 = vadd.f32 %v3493, 1.0
      %v3507 = vadd.f32 %v3495, 1.0
      %v3508 = vadd.f32 %v3497, 1.0
      %v3509 = vadd.f32 %v3499, 1.0
      %v3510 = vadd.f32 %v3501, 1.0
      %v3511 = vadd.f32 %v3503, 1.0
      %v3512 = vadd.f32 %v3505, 1.0
      %v3513 = vrcp.pop %v3506
      %v3514 = vmul.f32 1.0, %v3513
      %v3515 = vrcp.pop %v3507
      %v3516 = vmul.f32 1.0, %v3515
      %v3517 = vrcp.pop %v3508
      %v3518 = vmul.f32 1.0, %v3517
      %v3519 = vrcp.pop %v3509
      %v3520 = vmul.f32 1.0, %v3519
      %v3521 = vrcp.pop %v3510
      %v3522 = vmul.f32 1.0, %v3521
      %v3523 = vrcp.pop %v3511
      %v3524 = vmul.f32 1.0, %v3523
      %v3525 = vrcp.pop %v3512
      %v3526 = vmul.f32 1.0, %v3525
      %v3527 = vmul.f32 %v3478, %v3514
      %v3528 = vmul.f32 %v3479, %v3516
      %v3529 = vmul.f32 %v3480, %v3518
      %v3530 = vmul.f32 %v3481, %v3520
      %v3531 = vmul.f32 %v3482, %v3522
      %v3532 = vmul.f32 %v3483, %v3524
      %v3533 = vmul.f32 %v3484, %v3526
      %v3534 = vmul.f32 %v3245, %v3431
      %v3535 = vmul.f32 %v3246, %v3436
      %v3536 = vmul.f32 %v3247, %v3441
      %v3537 = vmul.f32 %v3248, %v3446
      %v3538 = vmul.f32 %v3249, %v3451
      %v3539 = vmul.f32 %v3250, %v3456
      %v3540 = vmul.f32 %v3251, %v3461
      %3548 = vrot.lane.b32.xlu0 %v3527, 127
      %v3549 = vpop.permute.xlu0 %3548
      %3550 = vrot.lane.b32.xlu0 %v3528, 127
      %v3551 = vpop.permute.xlu0 %3550
      %3552 = vrot.lane.b32.xlu0 %v3529, 127
      %v3553 = vpop.permute.xlu0 %3552
      %3554 = vrot.lane.b32.xlu0 %v3530, 127
      %v3555 = vpop.permute.xlu0 %3554
      %3556 = vrot.lane.b32.xlu0 %v3531, 127
      %v3557 = vpop.permute.xlu0 %3556
      %3558 = vrot.lane.b32.xlu0 %v3532, 127
      %v3559 = vpop.permute.xlu0 %3558
      %3560 = vrot.lane.b32.xlu0 %v3533, 127
      %v3561 = vpop.permute.xlu0 %3560
      %v3562 = vsel %vm1260, %v3549, 0
      %v3564 = vsel %vm1260, %v3551, 0
      %v3566 = vsel %vm1260, %v3553, 0
      %v3568 = vsel %vm1260, %v3555, 0
      %v3570 = vsel %vm1260, %v3557, 0
      %v3572 = vsel %vm1260, %v3559, 0
      %v3574 = vsel %vm1260, %v3561, 0
      %3576 = vmatprep.subr.mxu0 0.0
      %3577 = vmatpush1.msra.mxu0 0.0
      %3578 = vmatprep.subr.mxu0 0.0
      %3579 = vmatpush1.msra.mxu0 0.0
      %3580 = vmatprep.subr.mxu0 0.0
      %3581 = vmatpush1.msra.mxu0 0.0
      %3582 = vmatprep.subr.mxu0 0.0
      %3583 = vmatpush1.msra.mxu0 0.0
      %3584 = vmatprep.subr.mxu0 0.0
      %3585 = vmatpush1.msra.mxu0 0.0
      %3586 = vmatprep.subr.mxu0 0.0
      %3587 = vmatpush1.msra.mxu0 0.0
      %3588 = vmatprep.subr.mxu0 0.0
      %3589 = vmatpush1.msra.mxu0 0.0
      %3590 = vmatprep.subr.mxu0 0.0
      %3591 = vmatpush1.msra.mxu0 0.0
      %3592 = vmatprep.subr.mxu0 0.0
      %3593 = vmatpush1.msra.mxu0 0.0
      %3594 = vmatprep.subr.mxu0 0.0
      %3595 = vmatpush1.msra.mxu0 0.0
      %3596 = vmatprep.subr.mxu0 0.0
      %3597 = vmatpush1.msra.mxu0 0.0
      %3598 = vmatprep.subr.mxu0 0.0
      %3599 = vmatpush1.msra.mxu0 0.0
      %3600 = vmatprep.subr.mxu0 0.0
      %3601 = vmatpush1.msra.mxu0 0.0
      %3602 = vmatprep.subr.mxu0 0.0
      %3603 = vmatpush1.msra.mxu0 0.0
      %3604 = vmatprep.subr.mxu0 0.0
      %3605 = vmatpush1.msra.mxu0 %v1127
      %3606 = vmatprep.subr.mxu0 0.0
      %3607 = vmatpush1.msra.mxu0 %v1126
      %3608 = vmatprep.subr.mxu0 0.0
      %3609 = vmatpush2.msra.mxu0 0.0
      %3610 = vmatprep.subr.mxu0 0.0
      %3611 = vmatpush2.msra.mxu0 0.0
      %3612 = vmatprep.subr.mxu0 0.0
      %3613 = vmatpush2.msra.mxu0 0.0
      %3614 = vmatprep.subr.mxu0 0.0
      %3615 = vmatpush2.msra.mxu0 0.0
      %3616 = vmatprep.subr.mxu0 0.0
      %3617 = vmatpush2.msra.mxu0 0.0
      %3618 = vmatprep.subr.mxu0 0.0
      %3619 = vmatpush2.msra.mxu0 0.0
      %3620 = vmatprep.subr.mxu0 0.0
      %3621 = vmatpush2.msra.mxu0 0.0
      %3622 = vmatprep.subr.mxu0 0.0
      %3623 = vmatpush2.msra.mxu0 0.0
      %3624 = vmatprep.subr.mxu0 0.0
      %3625 = vmatpush2.msra.mxu0 0.0
      %3626 = vmatprep.subr.mxu0 0.0
      %3627 = vmatpush2.msra.mxu0 0.0
      %3628 = vmatprep.subr.mxu0 0.0
      %3629 = vmatpush2.msra.mxu0 0.0
      %3630 = vmatprep.subr.mxu0 0.0
      %3631 = vmatpush2.msra.mxu0 0.0
      %3632 = vmatprep.subr.mxu0 0.0
      %3633 = vmatpush2.msra.mxu0 0.0
      %3634 = vmatprep.subr.mxu0 0.0
      %3635 = vmatpush2.msra.mxu0 0.0
      %3636 = vmatprep.subr.mxu0 0.0
      %3637 = vmatpush2.msra.mxu0 0.0
      %3638 = vmatprep.subr.mxu0 0.0
      %3639 = vmatpush2.msra.mxu0 0.0
      %3640 = vmatprep.mubr.f32.mxu0 0.0
      %3641 = vmatmul.mubr.f32.gmra.mxu0 %v3562
      %v3642 = vpop.f32.mrf.mxu0
      %v3643 = vadd.f32 0.0, %v3642
      %v3644 = vpop.f32.mrf.mxu0
      %3645 = vmatprep.mubr.f32.mxu0 0.0
      %3646 = vmatmul.mubr.f32.gmra.mxu0 %v3564
      %v3647 = vpop.f32.mrf.mxu0
      %v3648 = vadd.f32 0.0, %v3647
      %v3649 = vpop.f32.mrf.mxu0
      %3650 = vmatprep.mubr.f32.mxu0 0.0
      %3651 = vmatmul.mubr.f32.gmra.mxu0 %v3566
      %v3652 = vpop.f32.mrf.mxu0
      %v3653 = vadd.f32 0.0, %v3652
      %v3654 = vpop.f32.mrf.mxu0
      %3655 = vmatprep.mubr.f32.mxu0 0.0
      %3656 = vmatmul.mubr.f32.gmra.mxu0 %v3568
      %v3657 = vpop.f32.mrf.mxu0
      %v3658 = vadd.f32 0.0, %v3657
      %v3659 = vpop.f32.mrf.mxu0
      %3660 = vmatprep.mubr.f32.mxu0 0.0
      %3661 = vmatmul.mubr.f32.gmra.mxu0 %v3570
      %v3662 = vpop.f32.mrf.mxu0
      %v3663 = vadd.f32 0.0, %v3662
      %v3664 = vpop.f32.mrf.mxu0
      %3665 = vmatprep.mubr.f32.mxu0 0.0
      %3666 = vmatmul.mubr.f32.gmra.mxu0 %v3572
      %v3667 = vpop.f32.mrf.mxu0
      %v3668 = vadd.f32 0.0, %v3667
      %v3669 = vpop.f32.mrf.mxu0
      %3670 = vmatprep.mubr.f32.mxu0 0.0
      %3671 = vmatmul.mubr.f32.gmra.mxu0 %v3574
      %v3672 = vpop.f32.mrf.mxu0
      %v3673 = vadd.f32 0.0, %v3672
      %v3674 = vpop.f32.mrf.mxu0
      %3675 = vdwg.mxu0
      %3677 = vset.pattern.permute.xlu0 0
      %3678 = vperm.xlu0 %3677, %v3643
      %v3679 = vpop.permute.xlu0 %3678
      %3682 = vset.pattern.permute.xlu0 0
      %3683 = vperm.xlu0 %3682, %v3648
      %v3684 = vpop.permute.xlu0 %3683
      %3687 = vset.pattern.permute.xlu0 0
      %3688 = vperm.xlu0 %3687, %v3653
      %v3689 = vpop.permute.xlu0 %3688
      %3692 = vset.pattern.permute.xlu0 0
      %3693 = vperm.xlu0 %3692, %v3658
      %v3694 = vpop.permute.xlu0 %3693
      %3697 = vset.pattern.permute.xlu0 0
      %3698 = vperm.xlu0 %3697, %v3663
      %v3699 = vpop.permute.xlu0 %3698
      %3702 = vset.pattern.permute.xlu0 0
      %3703 = vperm.xlu0 %3702, %v3668
      %v3704 = vpop.permute.xlu0 %3703
      %3707 = vset.pattern.permute.xlu0 0
      %3708 = vperm.xlu0 %3707, %v3673
      %v3709 = vpop.permute.xlu0 %3708
      %v3711 = vmul.f32 %v2782, %v3679
      %v3712 = vmul.f32 %v2783, %v3684
      %v3713 = vmul.f32 %v2784, %v3689
      %v3714 = vmul.f32 %v2785, %v3694
      %v3715 = vmul.f32 %v2786, %v3699
      %v3716 = vmul.f32 %v2787, %v3704
      %v3717 = vmul.f32 %v2788, %v3709
      %v3718 = vsel %vm1260, %v3534, %v3711
      %v3719 = vsel %vm1260, %v3535, %v3712
      %v3720 = vsel %vm1260, %v3536, %v3713
      %v3721 = vsel %vm1260, %v3537, %v3714
      %v3722 = vsel %vm1260, %v3538, %v3715
      %v3723 = vsel %vm1260, %v3539, %v3716
      %v3724 = vsel %vm1260, %v3540, %v3717
      %3725 = vmatprep.subr.mxu0 0.0
      %3726 = vmatpush1.msra.mxu0 0.0
      %3727 = vmatprep.subr.mxu0 0.0
      %3728 = vmatpush1.msra.mxu0 0.0
      %3729 = vmatprep.subr.mxu0 0.0
      %3730 = vmatpush1.msra.mxu0 0.0
      %3731 = vmatprep.subr.mxu0 0.0
      %3732 = vmatpush1.msra.mxu0 0.0
      %3733 = vmatprep.subr.mxu0 0.0
      %3734 = vmatpush1.msra.mxu0 0.0
      %3735 = vmatprep.subr.mxu0 0.0
      %3736 = vmatpush1.msra.mxu0 0.0
      %3737 = vmatprep.subr.mxu0 0.0
      %3738 = vmatpush1.msra.mxu0 0.0
      %3739 = vmatprep.subr.mxu0 0.0
      %3740 = vmatpush1.msra.mxu0 0.0
      %3741 = vmatprep.subr.mxu0 0.0
      %3742 = vmatpush1.msra.mxu0 0.0
      %3743 = vmatprep.subr.mxu0 0.0
      %3744 = vmatpush1.msra.mxu0 %v3724
      %3745 = vmatprep.subr.mxu0 0.0
      %3746 = vmatpush1.msra.mxu0 %v3723
      %3747 = vmatprep.subr.mxu0 0.0
      %3748 = vmatpush1.msra.mxu0 %v3722
      %3749 = vmatprep.subr.mxu0 0.0
      %3750 = vmatpush1.msra.mxu0 %v3721
      %3751 = vmatprep.subr.mxu0 0.0
      %3752 = vmatpush1.msra.mxu0 %v3720
      %3753 = vmatprep.subr.mxu0 0.0
      %3754 = vmatpush1.msra.mxu0 %v3719
      %3755 = vmatprep.subr.mxu0 0.0
      %3756 = vmatpush1.msra.mxu0 %v3718
      %3757 = vmatprep.subr.mxu0 0.0
      %3758 = vmatpush2.msra.mxu0 0.0
      %3759 = vmatprep.subr.mxu0 0.0
      %3760 = vmatpush2.msra.mxu0 0.0
      %3761 = vmatprep.subr.mxu0 0.0
      %3762 = vmatpush2.msra.mxu0 0.0
      %3763 = vmatprep.subr.mxu0 0.0
      %3764 = vmatpush2.msra.mxu0 0.0
      %3765 = vmatprep.subr.mxu0 0.0
      %3766 = vmatpush2.msra.mxu0 0.0
      %3767 = vmatprep.subr.mxu0 0.0
      %3768 = vmatpush2.msra.mxu0 0.0
      %3769 = vmatprep.subr.mxu0 0.0
      %3770 = vmatpush2.msra.mxu0 0.0
      %3771 = vmatprep.subr.mxu0 0.0
      %3772 = vmatpush2.msra.mxu0 0.0
      %3773 = vmatprep.subr.mxu0 0.0
      %3774 = vmatpush2.msra.mxu0 0.0
      %3775 = vmatprep.subr.mxu0 0.0
      %3776 = vmatpush2.msra.mxu0 0.0
      %3777 = vmatprep.subr.mxu0 0.0
      %3778 = vmatpush2.msra.mxu0 0.0
      %3779 = vmatprep.subr.mxu0 0.0
      %3780 = vmatpush2.msra.mxu0 0.0
      %3781 = vmatprep.subr.mxu0 0.0
      %3782 = vmatpush2.msra.mxu0 0.0
      %3783 = vmatprep.subr.mxu0 0.0
      %3784 = vmatpush2.msra.mxu0 0.0
      %3785 = vmatprep.subr.mxu0 0.0
      %3786 = vmatpush2.msra.mxu0 0.0
      %3787 = vmatprep.subr.mxu0 0.0
      %3788 = vmatpush2.msra.mxu0 0.0
      %3789 = vmatprep.mubr.f32.mxu0 0.0
      %3790 = vmatmul.mubr.f32.gmra.mxu0 %v2387
      %v3791 = vpop.f32.mrf.mxu0
      %v3792 = vadd.f32 0.0, %v3791
      %v3793 = vpop.f32.mrf.mxu0
      %3794 = vdwg.mxu0
      %3796 = vrot.lane.b32.xlu0 %v3792, 16
      %v3797 = vpop.permute.xlu0 %3796
      %v3799 = vsel %vm1260, %v2641, %v3797
      %v3801 = vlaneseq
      %v3802 = vshrl.u32 %v3801, 7
      %v3803 = vsub.s32 0, %v3802
      %v3804 = vrot.slane %v1132, %v3803
      %v3807 = vsel %vm1552, %v3799, 0
      %3809 = vmatprep.subr.mxu0 0.0
      %3810 = vmatpush1.msra.mxu0 0.0
      %3811 = vmatprep.subr.mxu0 0.0
      %3812 = vmatpush1.msra.mxu0 0.0
      %3813 = vmatprep.subr.mxu0 0.0
      %3814 = vmatpush1.msra.mxu0 0.0
      %3815 = vmatprep.subr.mxu0 0.0
      %3816 = vmatpush1.msra.mxu0 0.0
      %3817 = vmatprep.subr.mxu0 0.0
      %3818 = vmatpush1.msra.mxu0 0.0
      %3819 = vmatprep.subr.mxu0 0.0
      %3820 = vmatpush1.msra.mxu0 0.0
      %3821 = vmatprep.subr.mxu0 0.0
      %3822 = vmatpush1.msra.mxu0 0.0
      %3823 = vmatprep.subr.mxu0 0.0
      %3824 = vmatpush1.msra.mxu0 0.0
      %3825 = vmatprep.subr.mxu0 0.0
      %3826 = vmatpush1.msra.mxu0 0.0
      %3827 = vmatprep.subr.mxu0 0.0
      %3828 = vmatpush1.msra.mxu0 0.0
      %3829 = vmatprep.subr.mxu0 0.0
      %3830 = vmatpush1.msra.mxu0 0.0
      %3831 = vmatprep.subr.mxu0 0.0
      %3832 = vmatpush1.msra.mxu0 0.0
      %3833 = vmatprep.subr.mxu0 0.0
      %3834 = vmatpush1.msra.mxu0 %v1131
      %3835 = vmatprep.subr.mxu0 0.0
      %3836 = vmatpush1.msra.mxu0 %v1130
      %3837 = vmatprep.subr.mxu0 0.0
      %3838 = vmatpush1.msra.mxu0 %v1129
      %3839 = vmatprep.subr.mxu0 0.0
      %3840 = vmatpush1.msra.mxu0 %v1128
      %3841 = vmatprep.subr.mxu0 0.0
      %3842 = vmatpush2.msra.mxu0 0.0
      %3843 = vmatprep.subr.mxu0 0.0
      %3844 = vmatpush2.msra.mxu0 0.0
      %3845 = vmatprep.subr.mxu0 0.0
      %3846 = vmatpush2.msra.mxu0 0.0
      %3847 = vmatprep.subr.mxu0 0.0
      %3848 = vmatpush2.msra.mxu0 0.0
      %3849 = vmatprep.subr.mxu0 0.0
      %3850 = vmatpush2.msra.mxu0 0.0
      %3851 = vmatprep.subr.mxu0 0.0
      %3852 = vmatpush2.msra.mxu0 0.0
      %3853 = vmatprep.subr.mxu0 0.0
      %3854 = vmatpush2.msra.mxu0 0.0
      %3855 = vmatprep.subr.mxu0 0.0
      %3856 = vmatpush2.msra.mxu0 0.0
      %3857 = vmatprep.subr.mxu0 0.0
      %3858 = vmatpush2.msra.mxu0 0.0
      %3859 = vmatprep.subr.mxu0 0.0
      %3860 = vmatpush2.msra.mxu0 0.0
      %3861 = vmatprep.subr.mxu0 0.0
      %3862 = vmatpush2.msra.mxu0 0.0
      %3863 = vmatprep.subr.mxu0 0.0
      %3864 = vmatpush2.msra.mxu0 0.0
      %3865 = vmatprep.subr.mxu0 0.0
      %3866 = vmatpush2.msra.mxu0 0.0
      %3867 = vmatprep.subr.mxu0 0.0
      %3868 = vmatpush2.msra.mxu0 0.0
      %3869 = vmatprep.subr.mxu0 0.0
      %3870 = vmatpush2.msra.mxu0 0.0
      %3871 = vmatprep.subr.mxu0 0.0
      %3872 = vmatpush2.msra.mxu0 0.0
      %3873 = vmatprep.mubr.f32.mxu0 0.0
      %3874 = vmatmul.mubr.f32.gmra.mxu0 %v3807
      %v3875 = vpop.f32.mrf.mxu0
      %v3876 = vadd.f32 %v3804, %v3875
      %v3877 = vpop.f32.mrf.mxu0
      %3878 = vdwg.mxu0
      %v3879 = vxor.u32 %v3876, 2147483648
      %v3880 = vmul.f32 %v3879, 1.442695
      %v3881 = vpow.pop %v3880
      %v3882 = vadd.f32 %v3881, 1.0
      %v3883 = vrcp.pop %v3882
      %v3884 = vmul.f32 1.0, %v3883
      %v3885 = vmul.f32 %v3876, %v3884
      %v3887 = vsel %vm1260, %v3885, 0
      %3889 = vmatprep.subr.mxu0 0.0
      %3890 = vmatpush1.msra.mxu0 0.0
      %3891 = vmatprep.subr.mxu0 0.0
      %3892 = vmatpush1.msra.mxu0 0.0
      %3893 = vmatprep.subr.mxu0 0.0
      %3894 = vmatpush1.msra.mxu0 0.0
      %3895 = vmatprep.subr.mxu0 0.0
      %3896 = vmatpush1.msra.mxu0 0.0
      %3897 = vmatprep.subr.mxu0 0.0
      %3898 = vmatpush1.msra.mxu0 0.0
      %3899 = vmatprep.subr.mxu0 0.0
      %3900 = vmatpush1.msra.mxu0 0.0
      %3901 = vmatprep.subr.mxu0 0.0
      %3902 = vmatpush1.msra.mxu0 0.0
      %3903 = vmatprep.subr.mxu0 0.0
      %3904 = vmatpush1.msra.mxu0 0.0
      %3905 = vmatprep.subr.mxu0 0.0
      %3906 = vmatpush1.msra.mxu0 0.0
      %3907 = vmatprep.subr.mxu0 0.0
      %3908 = vmatpush1.msra.mxu0 0.0
      %3909 = vmatprep.subr.mxu0 0.0
      %3910 = vmatpush1.msra.mxu0 0.0
      %3911 = vmatprep.subr.mxu0 0.0
      %3912 = vmatpush1.msra.mxu0 0.0
      %3913 = vmatprep.subr.mxu0 0.0
      %3914 = vmatpush1.msra.mxu0 0.0
      %3915 = vmatprep.subr.mxu0 0.0
      %3916 = vmatpush1.msra.mxu0 0.0
      %3917 = vmatprep.subr.mxu0 0.0
      %3918 = vmatpush1.msra.mxu0 %v1134
      %3919 = vmatprep.subr.mxu0 0.0
      %3920 = vmatpush1.msra.mxu0 %v1133
      %3921 = vmatprep.subr.mxu0 0.0
      %3922 = vmatpush2.msra.mxu0 0.0
      %3923 = vmatprep.subr.mxu0 0.0
      %3924 = vmatpush2.msra.mxu0 0.0
      %3925 = vmatprep.subr.mxu0 0.0
      %3926 = vmatpush2.msra.mxu0 0.0
      %3927 = vmatprep.subr.mxu0 0.0
      %3928 = vmatpush2.msra.mxu0 0.0
      %3929 = vmatprep.subr.mxu0 0.0
      %3930 = vmatpush2.msra.mxu0 0.0
      %3931 = vmatprep.subr.mxu0 0.0
      %3932 = vmatpush2.msra.mxu0 0.0
      %3933 = vmatprep.subr.mxu0 0.0
      %3934 = vmatpush2.msra.mxu0 0.0
      %3935 = vmatprep.subr.mxu0 0.0
      %3936 = vmatpush2.msra.mxu0 0.0
      %3937 = vmatprep.subr.mxu0 0.0
      %3938 = vmatpush2.msra.mxu0 0.0
      %3939 = vmatprep.subr.mxu0 0.0
      %3940 = vmatpush2.msra.mxu0 0.0
      %3941 = vmatprep.subr.mxu0 0.0
      %3942 = vmatpush2.msra.mxu0 0.0
      %3943 = vmatprep.subr.mxu0 0.0
      %3944 = vmatpush2.msra.mxu0 0.0
      %3945 = vmatprep.subr.mxu0 0.0
      %3946 = vmatpush2.msra.mxu0 0.0
      %3947 = vmatprep.subr.mxu0 0.0
      %3948 = vmatpush2.msra.mxu0 0.0
      %3949 = vmatprep.subr.mxu0 0.0
      %3950 = vmatpush2.msra.mxu0 0.0
      %3951 = vmatprep.subr.mxu0 0.0
      %3952 = vmatpush2.msra.mxu0 0.0
      %3953 = vmatprep.mubr.f32.mxu0 0.0
      %3954 = vmatmul.mubr.f32.gmra.mxu0 %v3887
      %v3955 = vpop.f32.mrf.mxu0
      %v3956 = vadd.f32 0.0, %v3955
      %v3957 = vpop.f32.mrf.mxu0
      %3958 = vdwg.mxu0
      %v3959 = vadd.f32 %v2641, %v3956
      %v3961 = vlaneseq
      %v3962 = vshrl.u32 %v3961, 7
      %v3963 = vsub.s32 0, %v3962
      %v3964 = vrot.slane %v1135, %v3963
      %v3966 = vadd.f32 %v3959, %v3964
      %v3968 = vlaneseq
      %v3969 = vshrl.u32 %v3968, 7
      %v3970 = vsub.s32 0, %v3969
      %v3971 = vrot.slane %v1138, %v3970
      %v3974 = vsel %vm1260, %v3966, 0
      %3976 = vmatprep.subr.mxu0 0.0
      %3977 = vmatpush1.msra.mxu0 0.0
      %3978 = vmatprep.subr.mxu0 0.0
      %3979 = vmatpush1.msra.mxu0 0.0
      %3980 = vmatprep.subr.mxu0 0.0
      %3981 = vmatpush1.msra.mxu0 0.0
      %3982 = vmatprep.subr.mxu0 0.0
      %3983 = vmatpush1.msra.mxu0 0.0
      %3984 = vmatprep.subr.mxu0 0.0
      %3985 = vmatpush1.msra.mxu0 0.0
      %3986 = vmatprep.subr.mxu0 0.0
      %3987 = vmatpush1.msra.mxu0 0.0
      %3988 = vmatprep.subr.mxu0 0.0
      %3989 = vmatpush1.msra.mxu0 0.0
      %3990 = vmatprep.subr.mxu0 0.0
      %3991 = vmatpush1.msra.mxu0 0.0
      %3992 = vmatprep.subr.mxu0 0.0
      %3993 = vmatpush1.msra.mxu0 0.0
      %3994 = vmatprep.subr.mxu0 0.0
      %3995 = vmatpush1.msra.mxu0 0.0
      %3996 = vmatprep.subr.mxu0 0.0
      %3997 = vmatpush1.msra.mxu0 0.0
      %3998 = vmatprep.subr.mxu0 0.0
      %3999 = vmatpush1.msra.mxu0 0.0
      %4000 = vmatprep.subr.mxu0 0.0
      %4001 = vmatpush1.msra.mxu0 0.0
      %4002 = vmatprep.subr.mxu0 0.0
      %4003 = vmatpush1.msra.mxu0 0.0
      %4004 = vmatprep.subr.mxu0 0.0
      %4005 = vmatpush1.msra.mxu0 %v1137
      %4006 = vmatprep.subr.mxu0 0.0
      %4007 = vmatpush1.msra.mxu0 %v1136
      %4008 = vmatprep.subr.mxu0 0.0
      %4009 = vmatpush2.msra.mxu0 0.0
      %4010 = vmatprep.subr.mxu0 0.0
      %4011 = vmatpush2.msra.mxu0 0.0
      %4012 = vmatprep.subr.mxu0 0.0
      %4013 = vmatpush2.msra.mxu0 0.0
      %4014 = vmatprep.subr.mxu0 0.0
      %4015 = vmatpush2.msra.mxu0 0.0
      %4016 = vmatprep.subr.mxu0 0.0
      %4017 = vmatpush2.msra.mxu0 0.0
      %4018 = vmatprep.subr.mxu0 0.0
      %4019 = vmatpush2.msra.mxu0 0.0
      %4020 = vmatprep.subr.mxu0 0.0
      %4021 = vmatpush2.msra.mxu0 0.0
      %4022 = vmatprep.subr.mxu0 0.0
      %4023 = vmatpush2.msra.mxu0 0.0
      %4024 = vmatprep.subr.mxu0 0.0
      %4025 = vmatpush2.msra.mxu0 0.0
      %4026 = vmatprep.subr.mxu0 0.0
      %4027 = vmatpush2.msra.mxu0 0.0
      %4028 = vmatprep.subr.mxu0 0.0
      %4029 = vmatpush2.msra.mxu0 0.0
      %4030 = vmatprep.subr.mxu0 0.0
      %4031 = vmatpush2.msra.mxu0 0.0
      %4032 = vmatprep.subr.mxu0 0.0
      %4033 = vmatpush2.msra.mxu0 0.0
      %4034 = vmatprep.subr.mxu0 0.0
      %4035 = vmatpush2.msra.mxu0 0.0
      %4036 = vmatprep.subr.mxu0 0.0
      %4037 = vmatpush2.msra.mxu0 0.0
      %4038 = vmatprep.subr.mxu0 0.0
      %4039 = vmatpush2.msra.mxu0 0.0
      %4040 = vmatprep.mubr.f32.mxu0 0.0
      %4041 = vmatmul.mubr.f32.gmra.mxu0 %v3974
      %v4042 = vpop.f32.mrf.mxu0
      %v4043 = vadd.f32 %v3971, %v4042
      %v4044 = vpop.f32.mrf.mxu0
      %4045 = vdwg.mxu0
      %vm4046 = vcmask 15360
      %4047 = vst.msk [vmem:[%s1086] sm:$0xff] %vm4046, %v4043
      %p4048 = scmp.lt.s32.totalorder %s86, 1
      %s4049 = scalar_select %p4048, %s86, 1
      %s4050 = smul.addr %s4049, 8
      %s4051 = scalar_lea.vmem %s71, %s4050
      // Predicated region
      $region161: #{tpu_custom_call.1} parent=159 // pred_check
        %p4052 = pneg %p849
      $region162: #{tpu_custom_call.1} parent=159 // pred_check_branch
        %4054 = sbr.rel (%p4052) target = $region164
      $region163: #{tpu_custom_call.1} parent=159 // pred_region
        _
      $region164: #{tpu_custom_call.1} parent=159 // pred_fallthru
        _
    $region160: #{tpu_custom_call.1} parent=5 // pred_fallthru
      _
    %p4055 = scmp.le.s32.totalorder 2, %s81
    // Predicated region
    $region165: #{tpu_custom_call.1} parent=5 // pred_check
      %p4056 = pneg %p4055
    $region166: #{tpu_custom_call.1} parent=5 // pred_check_branch
      %4058 = sbr.rel (%p4056) target = $region168
    $region167: #{tpu_custom_call.1} parent=5 // pred_region
      %s4059 = ssub.s32 %s81, 2
      // Predicated region
      $region169: #{tpu_custom_call.1} parent=167 // pred_check
        %p4060 = pneg %p855
      $region170: #{tpu_custom_call.1} parent=167 // pred_check_branch
        %4062 = sbr.rel (%p4060) target = $region172
      $region171: #{tpu_custom_call.1} parent=167 // pred_region
        %p4063 = scmp.lt.s32.totalorder %s87, 1
        %s4064 = scalar_select %p4063, %s87, 1
        %s4065 = smul.addr %s4064, 8
        %s4066 = scalar_lea.vmem %s71, %s4065
      $region172: #{tpu_custom_call.1} parent=167 // pred_fallthru
        _
    $region168: #{tpu_custom_call.1} parent=5 // pred_fallthru
      _
  $region6: #{tpu_custom_call.1} parent=0 // loop_footer
    %s85 = sadd.s32 1, %s81
  $region7: #{tpu_custom_call.1} parent=0 // loop_footer_branch
    %80 = sbr.rel target = $region3
  $region8: #{tpu_custom_call.1} parent=0 // loop_exit
    _

</llo_original>
